<compile_context>
chip_gen: v6e
topology: v6e:2x2x1
jax: 0.10.0
libtpu: 0.0.40
codegen_flags: <defaults>
</compile_context>

<pallas_src>
import jax
import jax.numpy as jnp
from jax import lax
from jax.experimental import pallas as pl
from jax.experimental.pallas import tpu as pltpu


def _round_up(x, m):
    return (x + m - 1) // m * m


def _pad_gate_matrix(w_t, h, h_pad):
    """w_t: (in_dim, 3h) gate-ordered [r|z|n] -> (in_dim, 3*h_pad).

    Each gate block is zero-padded independently from h to h_pad so that the in-kernel
    gate slices (:Hp, Hp:2Hp, 2Hp:) stay 128-lane-tile aligned."""
    in_dim = w_t.shape[0]
    out = jnp.zeros((in_dim, 3 * h_pad), jnp.float32)
    for g in range(3):
        out = out.at[:, g * h_pad:g * h_pad + h].set(w_t[:, g * h:(g + 1) * h])
    return out


def _pad_gate_bias(b, h, h_pad):
    out = jnp.zeros((1, 3 * h_pad), jnp.float32)
    for g in range(3):
        out = out.at[0, g * h_pad:g * h_pad + h].set(b[g * h:(g + 1) * h])
    return out


def _sigmoid(x):
    # 0.5*(1 + tanh(x/2)): exact sigmoid identity; tanh rides the EUP slot, no divide.
    return 0.5 * (jnp.tanh(0.5 * x) + 1.0)


def gru_encode(x, h0, w_ih, w_hh, b_ih, b_hh, lengths, padding_value, t_block=16):
    """x: (T,B,E) f32, h0: (B,H) f32, w_ih: (3H,E), w_hh: (3H,H), biases (3H,),
    lengths: (B,) int32 (sorted descending), padding_value: python float (static).
    Returns output (T,B,H), hidden (B,H)."""
    T, B, E = x.shape
    H = h0.shape[-1]

    Hp = _round_up(H, 128)            # lane-dense hidden width
    Bp = _round_up(B, 8)              # sublane-aligned batch
    Tb = max(1, min(t_block, T))      # timesteps per grid step
    Tp = _round_up(T, Tb)             # padded time extent
    Rb = Tb * Bp                      # rows per block in (time*batch, feature) layout
    R = Tp * Bp

    f32 = jnp.float32
    b_ih = jnp.asarray(b_ih, f32)
    b_hh = jnp.asarray(b_hh, f32)

    # ---- zero/gate-padded operands ------------------------------------------------
    # Padded hidden columns stay exactly 0 through the recurrence (padded weight
    # rows/cols & biases are 0, h0 padding is 0); padded batch rows and t>=len
    # positions are masked via the length vector.
    wih_p = _pad_gate_matrix(jnp.asarray(w_ih, f32).T, H, Hp)                # (E, 3Hp)
    whh_p = jnp.zeros((Hp, 3 * Hp), f32).at[:H, :].set(
        _pad_gate_matrix(jnp.asarray(w_hh, f32).T, H, Hp))                   # (Hp, 3Hp)
    # fold b_hh's r and z slices into the projection bias (they are pure adds);
    # b_hn must stay separate because it is multiplied by the reset gate r.
    b_fold = jnp.concatenate([b_ih[:H] + b_hh[:H],
                              b_ih[H:2 * H] + b_hh[H:2 * H],
                              b_ih[2 * H:]], axis=0)
    bih_p = _pad_gate_bias(b_fold, H, Hp)                                    # (1, 3Hp)
    bhhn_p = jnp.zeros((1, Hp), f32).at[0, :H].set(b_hh[2 * H:])             # (1, Hp)
    h0_p = jnp.zeros((Bp, Hp), f32).at[:B, :H].set(h0)

    lengths = jnp.asarray(lengths, jnp.int32)
    len_vec = jnp.zeros((Bp, 1), jnp.int32).at[:B, 0].set(lengths)           # VMEM mask
    len_smem = jnp.zeros((Bp,), jnp.int32).at[:B].set(lengths)               # SMEM skip

    x_p = jnp.zeros((Tp, Bp, E), f32).at[:T, :B, :].set(x)
    x2d = x_p.reshape(R, E)           # time-major (T*B, E) row layout

    # ---- explicit VMEM budget (v5e scoped default is only 16 MiB) ------------------
    resident_bytes = 4 * (E * 3 * Hp + Hp * 3 * Hp + 4 * Hp + Bp * Hp + Bp)
    block_bytes = 4 * (2 * Rb * E + 2 * Rb * Hp + Rb * 3 * Hp + 3 * Bp * Hp)
    vmem_bytes = int(1.5 * (resident_bytes + block_bytes)) + (4 << 20)
    vmem_bytes = max(32 << 20, min(vmem_bytes, 64 << 20))   # cap at v7x physical VMEM

    # ---- fused recurrent kernel ----------------------------------------------------
    def rec_kernel(len_sm, x_ref, wih_ref, bih_ref, h0_ref, whh_ref, bhhn_ref,
                   lenv_ref, out_ref, hfin_ref, h_scr, gi_scr):
        tb = pl.program_id(0)
        t_base = tb * Tb
        max_len = len_sm[0]                       # lengths sorted descending

        @pl.when(tb == 0)
        def _init():
            h_scr[...] = h0_ref[...]

        @pl.when(t_base < max_len)
        def _compute():
            # Fused input projection for this Tb-step block: one big matmul, off the
            # serial h-chain, result staged in VMEM scratch (never fully in vregs).
            gi_scr[...] = (jnp.dot(x_ref[...], wih_ref[...],
                                   preferred_element_type=jnp.float32)
                           + bih_ref[...])
            lens = lenv_ref[...]                  # (Bp, 1) int32

            def step(i, h):
                r0 = pl.multiple_of(i * Bp, 8)
                gi_t = gi_scr[pl.ds(r0, Bp), :]                       # (Bp, 3Hp)
                gh = jnp.dot(h, whh_ref[...],
                             preferred_element_type=jnp.float32)      # (Bp, 3Hp)
                r = _sigmoid(gi_t[:, :Hp] + gh[:, :Hp])
                z = _sigmoid(gi_t[:, Hp:2 * Hp] + gh[:, Hp:2 * Hp])
                n = jnp.tanh(gi_t[:, 2 * Hp:] + r * (gh[:, 2 * Hp:] + bhhn_ref[...]))
                h_new = n + z * (h - n)
                valid = (t_base + i) < lens                           # packed-seq mask
                h = jnp.where(valid, h_new, h)                        # freeze past len
                out_ref[pl.ds(r0, Bp), :] = jnp.where(valid, h_new, padding_value)
                return h

            h_scr[...] = lax.fori_loop(0, Tb, step, h_scr[...], unroll=True)

        @pl.when(t_base >= max_len)
        def _pad_only():
            # Entire block is past every sequence end: skip all gate math.
            out_ref[...] = jnp.full((Rb, Hp), padding_value, f32)

        @pl.when(tb == pl.num_programs(0) - 1)
        def _finalize():
            hfin_ref[...] = h_scr[...]            # final hidden stored once

    out2d, h_fin = pl.pallas_call(
        rec_kernel,
        out_shape=(jax.ShapeDtypeStruct((R, Hp), f32),
                   jax.ShapeDtypeStruct((Bp, Hp), f32)),
        grid_spec=pltpu.PrefetchScalarGridSpec(
            num_scalar_prefetch=1,
            grid=(Tp // Tb,),
            in_specs=[
                pl.BlockSpec((Rb, E), lambda t, lens: (t, 0)),          # x rows (Tb steps)
                pl.BlockSpec((E, 3 * Hp), lambda t, lens: (0, 0)),      # W_ih^T (resident)
                pl.BlockSpec((1, 3 * Hp), lambda t, lens: (0, 0)),      # folded bias
                pl.BlockSpec((Bp, Hp), lambda t, lens: (0, 0)),         # h0
                pl.BlockSpec((Hp, 3 * Hp), lambda t, lens: (0, 0)),     # W_hh^T (resident)
                pl.BlockSpec((1, Hp), lambda t, lens: (0, 0)),          # b_hn
                pl.BlockSpec((Bp, 1), lambda t, lens: (0, 0)),          # lengths (vector)
            ],
            out_specs=[
                pl.BlockSpec((Rb, Hp), lambda t, lens: (t, 0)),         # lane-dense slab
                pl.BlockSpec((Bp, Hp), lambda t, lens: (0, 0)),         # final hidden
            ],
            scratch_shapes=[pltpu.VMEM((Bp, Hp), f32),                  # carried hidden
                            pltpu.VMEM((Rb, 3 * Hp), f32)],             # per-block gi
        ),
        compiler_params=pltpu.CompilerParams(
            dimension_semantics=("arbitrary",),   # time axis carries hidden state
            vmem_limit_bytes=vmem_bytes),
    )(len_smem, x2d, wih_p, bih_p, h0_p, whh_p, bhhn_p, len_vec)

    out = out2d.reshape(Tp, Bp, Hp)[:T, :B, :H]
    return out, h_fin[:B, :H]


def encoder_forward(params, pad_seqs, seq_lengths, hidden, padding_value):
    """JAX/Pallas equivalent of Encoder.forward.
    pad_seqs: (T, B) int32; seq_lengths: (B,) sorted descending; hidden: (1, B, H)."""
    # TODO(synk): fuse this embedding gather into the kernel (scalar-prefetch token ids,
    # per-row DMA from the table) to avoid the (T,B,E) HBM round trip.
    embedded = jnp.take(params["embedding"], pad_seqs, axis=0)   # (T, B, E) gather glue
    out, h_fin = gru_encode(
        embedded, hidden[0],
        params["w_ih"], params["w_hh"], params["b_ih"], params["b_hh"],
        seq_lengths, padding_value, t_block=16)
    return out, h_fin[None]   # output (T,B,H), hidden (1,B,H)


def _gru_reference(x, h0, w_ih, w_hh, b_ih, b_hh, lengths, padding_value):
    """Pure-JAX reference (lax.scan) mirroring torch packed GRU semantics."""
    T = x.shape[0]

    def step(h, inp):
        x_t, t = inp
        gi = x_t @ w_ih.T + b_ih
        gh = h @ w_hh.T + b_hh
        i_r, i_z, i_n = jnp.split(gi, 3, axis=-1)
        h_r, h_z, h_n = jnp.split(gh, 3, axis=-1)
        r = jax.nn.sigmoid(i_r + h_r)
        z = jax.nn.sigmoid(i_z + h_z)
        n = jnp.tanh(i_n + r * h_n)
        h_new = (1.0 - z) * n + z * h
        valid = (t < lengths)[:, None]
        h_out = jnp.where(valid, h_new, h)
        y = jnp.where(valid, h_new, padding_value)
        return h_out, y

    h_fin, ys = jax.lax.scan(step, h0, (x, jnp.arange(T)))
    return ys, h_fin


if __name__ == "__main__":
    key = jax.random.PRNGKey(0)
    VOCAB, EMB, HID = 20, 16, 32
    T, B = 8, 4
    PADDING_VALUE = -1.5   # non-zero so masking is actually exercised

    k0, k1, k2, k3, k4, k5 = jax.random.split(key, 6)
    scale = 1.0 / (HID ** 0.5)
    params = {
        "embedding": jax.random.normal(k0, (VOCAB, EMB), jnp.float32),
        "w_ih": jax.random.uniform(k1, (3 * HID, EMB), jnp.float32, -scale, scale),
        "w_hh": jax.random.uniform(k2, (3 * HID, HID), jnp.float32, -scale, scale),
        "b_ih": jax.random.uniform(k3, (3 * HID,), jnp.float32, -scale, scale),
        "b_hh": jax.random.uniform(k4, (3 * HID,), jnp.float32, -scale, scale),
    }

    # pad_seqs (T, B): lengths sorted descending (enforce_sorted=True in torch),
    # T == max(lengths) as produced by the pack/pad round trip.
    seq_lengths = jnp.array([8, 6, 5, 3], jnp.int32)
    pad_seqs = jax.random.randint(k5, (T, B), 0, VOCAB, jnp.int32)
    t_ids = jnp.arange(T)[:, None]
    pad_seqs = jnp.where(t_ids < seq_lengths[None, :], pad_seqs, 0)

    hidden0 = jnp.zeros((1, B, HID), jnp.float32)   # Encoder.init_hidden

    out, hidden = jax.jit(encoder_forward, static_argnums=(4,))(
        params, pad_seqs, seq_lengths, hidden0, PADDING_VALUE)
    jax.block_until_ready((out, hidden))

    # correctness check vs pure-JAX reference
    emb = jnp.take(params["embedding"], pad_seqs, axis=0)
    out_ref, h_ref = _gru_reference(
        emb, hidden0[0], params["w_ih"], params["w_hh"],
        params["b_ih"], params["b_hh"], seq_lengths, PADDING_VALUE)
    assert out.shape == (T, B, HID) and hidden.shape == (1, B, HID)
    assert jnp.allclose(out, out_ref, atol=1e-4), "output mismatch"
    assert jnp.allclose(hidden[0], h_ref, atol=1e-4), "hidden mismatch"

    print("KERNEL_OK")
</pallas_src>

<mosaic_0001>
module attributes {stable_mosaic.version = 11 : i64} {
  func.func @rec_kernel(%arg0: i32, %arg1: memref<8xi32, #tpu.memory_space<smem>>, %arg2: memref<64x16xf32, #tpu.memory_space<vmem>>, %arg3: memref<16x384xf32, #tpu.memory_space<vmem>>, %arg4: memref<1x384xf32, #tpu.memory_space<vmem>>, %arg5: memref<8x128xf32, #tpu.memory_space<vmem>>, %arg6: memref<128x384xf32, #tpu.memory_space<vmem>>, %arg7: memref<1x128xf32, #tpu.memory_space<vmem>>, %arg8: memref<8x1xi32, #tpu.memory_space<vmem>>, %arg9: memref<64x128xf32, #tpu.memory_space<vmem>>, %arg10: memref<8x128xf32, #tpu.memory_space<vmem>>, %arg11: memref<8x128xf32, #tpu.memory_space<vmem>>, %arg12: memref<64x384xf32, #tpu.memory_space<vmem>>) attributes {dimension_semantics = [#tpu.dimension_semantics<arbitrary>], iteration_bounds = array<i64: 1>, scalar_prefetch = 1 : i64, scratch_operands = 2 : i64, tpu.core_type = #tpu.core_type<tc>, window_params = [{transform_indices = @transform_0, window_bounds = array<i64: 64, 16>}, {pipeline_mode = #tpu.pipeline_mode<synchronous>, transform_indices = @transform_1, window_bounds = array<i64: 16, 384>}, {pipeline_mode = #tpu.pipeline_mode<synchronous>, transform_indices = @transform_2, window_bounds = array<i64: 1, 384>}, {pipeline_mode = #tpu.pipeline_mode<synchronous>, transform_indices = @transform_3, window_bounds = array<i64: 8, 128>}, {pipeline_mode = #tpu.pipeline_mode<synchronous>, transform_indices = @transform_4, window_bounds = array<i64: 128, 384>}, {pipeline_mode = #tpu.pipeline_mode<synchronous>, transform_indices = @transform_5, window_bounds = array<i64: 1, 128>}, {pipeline_mode = #tpu.pipeline_mode<synchronous>, transform_indices = @transform_6, window_bounds = array<i64: 8, 1>}, {transform_indices = @transform_7, window_bounds = array<i64: 64, 128>}, {pipeline_mode = #tpu.pipeline_mode<synchronous>, transform_indices = @transform_8, window_bounds = array<i64: 8, 128>}]} {
    %c8_i32 = arith.constant 8 : i32
    %0 = arith.muli %arg0, %c8_i32 : i32
    %c0 = arith.constant 0 : index
    %1 = memref.load %arg1[%c0] : memref<8xi32, #tpu.memory_space<smem>>
    %c0_i32 = arith.constant 0 : i32
    %2 = arith.cmpi eq, %arg0, %c0_i32 : i32
    %3 = arith.extui %2 : i1 to i32
    %c0_i32_0 = arith.constant 0 : i32
    %4 = arith.cmpi ne, %3, %c0_i32_0 : i32
    scf.if %4 {
      %c0_5 = arith.constant 0 : index
      %c0_6 = arith.constant 0 : index
      %14 = vector.load %arg5[%c0_5, %c0_6] : memref<8x128xf32, #tpu.memory_space<vmem>>, vector<8x128xf32>
      %c0_7 = arith.constant 0 : index
      %c0_8 = arith.constant 0 : index
      %15 = vector.load %arg11[%c0_7, %c0_8] : memref<8x128xf32, #tpu.memory_space<vmem>>, vector<8x128xf32>
      tpu.vector_store %arg11[%c0_7, %c0_8], %14 {strides = array<i32>} : memref<8x128xf32, #tpu.memory_space<vmem>>, vector<8x128xf32>,
    } else {
    }
    %5 = arith.cmpi slt, %0, %1 : i32
    %6 = arith.extui %5 : i1 to i32
    %c0_i32_1 = arith.constant 0 : i32
    %7 = arith.cmpi ne, %6, %c0_i32_1 : i32
    scf.if %7 {
      %c0_5 = arith.constant 0 : index
      %c0_6 = arith.constant 0 : index
      %14 = vector.load %arg2[%c0_5, %c0_6] : memref<64x16xf32, #tpu.memory_space<vmem>>, vector<64x16xf32>
      %c0_7 = arith.constant 0 : index
      %c0_8 = arith.constant 0 : index
      %15 = vector.load %arg3[%c0_7, %c0_8] : memref<16x384xf32, #tpu.memory_space<vmem>>, vector<16x384xf32>
      %cst = arith.constant dense<0.000000e+00> : vector<64x384xf32>
      %16 = tpu.matmul %14, %15, %cst {dimension_numbers = #tpu.dot_dimension_numbers<[1], [0], [0], [1], [0, 0, 1, 1], [], []>} : vector<64x16xf32>, vector<16x384xf32>, vector<64x384xf32> -> vector<64x384xf32>
      %c0_9 = arith.constant 0 : index
      %c0_10 = arith.constant 0 : index
      %17 = vector.load %arg4[%c0_9, %c0_10] : memref<1x384xf32, #tpu.memory_space<vmem>>, vector<1x384xf32>
      %18 = vector.broadcast %17 : vector<1x384xf32> to vector<64x384xf32>
      %19 = arith.addf %16, %18 : vector<64x384xf32>
      %c0_11 = arith.constant 0 : index
      %c0_12 = arith.constant 0 : index
      %20 = vector.load %arg12[%c0_11, %c0_12] : memref<64x384xf32, #tpu.memory_space<vmem>>, vector<64x384xf32>
      tpu.vector_store %arg12[%c0_11, %c0_12], %19 {strides = array<i32>} : memref<64x384xf32, #tpu.memory_space<vmem>>, vector<64x384xf32>,
      %c0_13 = arith.constant 0 : index
      %c0_14 = arith.constant 0 : index
      %21 = vector.load %arg8[%c0_13, %c0_14] : memref<8x1xi32, #tpu.memory_space<vmem>>, vector<8x1xi32>
      %c0_15 = arith.constant 0 : index
      %c0_16 = arith.constant 0 : index
      %22 = vector.load %arg11[%c0_15, %c0_16] : memref<8x128xf32, #tpu.memory_space<vmem>>, vector<8x128xf32>
      %c0_i32_17 = arith.constant 0 : i32
      %c8_i32_18 = arith.constant 8 : i32
      %23 = arith.muli %c0_i32_17, %c8_i32_18 : i32
      %24 = tpu.assume_multiple %23, 8 : i32
      %25 = arith.index_cast %24 : i32 to index
      %c0_19 = arith.constant 0 : index
      %26 = vector.load %arg12[%25, %c0_19] : memref<64x384xf32, #tpu.memory_space<vmem>>, vector<8x384xf32>
      %c0_20 = arith.constant 0 : index
      %c0_21 = arith.constant 0 : index
      %27 = vector.load %arg6[%c0_20, %c0_21] : memref<128x384xf32, #tpu.memory_space<vmem>>, vector<128x384xf32>
      %cst_22 = arith.constant dense<0.000000e+00> : vector<8x384xf32>
      %28 = tpu.matmul %22, %27, %cst_22 {dimension_numbers = #tpu.dot_dimension_numbers<[1], [0], [0], [1], [0, 0, 1, 1], [], []>} : vector<8x128xf32>, vector<128x384xf32>, vector<8x384xf32> -> vector<8x384xf32>
      %29 = vector.extract_strided_slice %26 {offsets = [0, 0], sizes = [8, 128], strides = [1, 1]} : vector<8x384xf32> to vector<8x128xf32>
      %30 = vector.extract_strided_slice %28 {offsets = [0, 0], sizes = [8, 128], strides = [1, 1]} : vector<8x384xf32> to vector<8x128xf32>
      %31 = arith.addf %29, %30 : vector<8x128xf32>
      %cst_23 = arith.constant 5.000000e-01 : f32
      %32 = vector.broadcast %cst_23 : f32 to vector<8x128xf32>
      %33 = arith.mulf %32, %31 : vector<8x128xf32>
      %34 = math.tanh %33 : vector<8x128xf32>
      %cst_24 = arith.constant 1.000000e+00 : f32
      %35 = vector.broadcast %cst_24 : f32 to vector<8x128xf32>
      %36 = arith.addf %34, %35 : vector<8x128xf32>
      %cst_25 = arith.constant 5.000000e-01 : f32
      %37 = vector.broadcast %cst_25 : f32 to vector<8x128xf32>
      %38 = arith.mulf %37, %36 : vector<8x128xf32>
      %39 = vector.extract_strided_slice %26 {offsets = [0, 128], sizes = [8, 128], strides = [1, 1]} : vector<8x384xf32> to vector<8x128xf32>
      %40 = vector.extract_strided_slice %28 {offsets = [0, 128], sizes = [8, 128], strides = [1, 1]} : vector<8x384xf32> to vector<8x128xf32>
      %41 = arith.addf %39, %40 : vector<8x128xf32>
      %cst_26 = arith.constant 5.000000e-01 : f32
      %42 = vector.broadcast %cst_26 : f32 to vector<8x128xf32>
      %43 = arith.mulf %42, %41 : vector<8x128xf32>
      %44 = math.tanh %43 : vector<8x128xf32>
      %cst_27 = arith.constant 1.000000e+00 : f32
      %45 = vector.broadcast %cst_27 : f32 to vector<8x128xf32>
      %46 = arith.addf %44, %45 : vector<8x128xf32>
      %cst_28 = arith.constant 5.000000e-01 : f32
      %47 = vector.broadcast %cst_28 : f32 to vector<8x128xf32>
      %48 = arith.mulf %47, %46 : vector<8x128xf32>
      %49 = vector.extract_strided_slice %26 {offsets = [0, 256], sizes = [8, 128], strides = [1, 1]} : vector<8x384xf32> to vector<8x128xf32>
      %50 = vector.extract_strided_slice %28 {offsets = [0, 256], sizes = [8, 128], strides = [1, 1]} : vector<8x384xf32> to vector<8x128xf32>
      %c0_29 = arith.constant 0 : index
      %c0_30 = arith.constant 0 : index
      %51 = vector.load %arg7[%c0_29, %c0_30] : memref<1x128xf32, #tpu.memory_space<vmem>>, vector<1x128xf32>
      %52 = vector.broadcast %51 : vector<1x128xf32> to vector<8x128xf32>
      %53 = arith.addf %50, %52 : vector<8x128xf32>
      %54 = arith.mulf %38, %53 : vector<8x128xf32>
      %55 = arith.addf %49, %54 : vector<8x128xf32>
      %56 = math.tanh %55 : vector<8x128xf32>
      %57 = arith.subf %22, %56 : vector<8x128xf32>
      %58 = arith.mulf %48, %57 : vector<8x128xf32>
      %59 = arith.addf %56, %58 : vector<8x128xf32>
      %60 = arith.addi %0, %c0_i32_17 : i32
      %61 = vector.broadcast %60 : i32 to vector<8x1xi32>
      %62 = arith.cmpi slt, %61, %21 : vector<8x1xi32>
      %63 = vector.shape_cast %62 : vector<8x1xi1> to vector<8x1xi1>
      %64 = vector.broadcast %63 : vector<8x1xi1> to vector<8x128xi1>
      %65 = arith.select %64, %59, %22 : vector<8x128xi1>, vector<8x128xf32>
      %cst_31 = arith.constant -1.500000e+00 : f32
      %66 = vector.shape_cast %62 : vector<8x1xi1> to vector<8x1xi1>
      %67 = vector.broadcast %66 : vector<8x1xi1> to vector<8x128xi1>
      %68 = vector.broadcast %cst_31 : f32 to vector<8x128xf32>
      %69 = arith.select %67, %59, %68 : vector<8x128xi1>, vector<8x128xf32>
      %70 = arith.index_cast %24 : i32 to index
      %c0_32 = arith.constant 0 : index
      %71 = vector.load %arg9[%70, %c0_32] : memref<64x128xf32, #tpu.memory_space<vmem>>, vector<8x128xf32>
      tpu.vector_store %arg9[%70, %c0_32], %69 {strides = array<i32>} : memref<64x128xf32, #tpu.memory_space<vmem>>, vector<8x128xf32>,
      %c1_i32 = arith.constant 1 : i32
      %c8_i32_33 = arith.constant 8 : i32
      %72 = arith.muli %c1_i32, %c8_i32_33 : i32
      %73 = tpu.assume_multiple %72, 8 : i32
      %74 = arith.index_cast %73 : i32 to index
      %c0_34 = arith.constant 0 : index
      %75 = vector.load %arg12[%74, %c0_34] : memref<64x384xf32, #tpu.memory_space<vmem>>, vector<8x384xf32>
      %c0_35 = arith.constant 0 : index
      %c0_36 = arith.constant 0 : index
      %76 = vector.load %arg6[%c0_35, %c0_36] : memref<128x384xf32, #tpu.memory_space<vmem>>, vector<128x384xf32>
      %cst_37 = arith.constant dense<0.000000e+00> : vector<8x384xf32>
      %77 = tpu.matmul %65, %76, %cst_37 {dimension_numbers = #tpu.dot_dimension_numbers<[1], [0], [0], [1], [0, 0, 1, 1], [], []>} : vector<8x128xf32>, vector<128x384xf32>, vector<8x384xf32> -> vector<8x384xf32>
      %78 = vector.extract_strided_slice %75 {offsets = [0, 0], sizes = [8, 128], strides = [1, 1]} : vector<8x384xf32> to vector<8x128xf32>
      %79 = vector.extract_strided_slice %77 {offsets = [0, 0], sizes = [8, 128], strides = [1, 1]} : vector<8x384xf32> to vector<8x128xf32>
      %80 = arith.addf %78, %79 : vector<8x128xf32>
      %cst_38 = arith.constant 5.000000e-01 : f32
      %81 = vector.broadcast %cst_38 : f32 to vector<8x128xf32>
      %82 = arith.mulf %81, %80 : vector<8x128xf32>
      %83 = math.tanh %82 : vector<8x128xf32>
      %cst_39 = arith.constant 1.000000e+00 : f32
      %84 = vector.broadcast %cst_39 : f32 to vector<8x128xf32>
      %85 = arith.addf %83, %84 : vector<8x128xf32>
      %cst_40 = arith.constant 5.000000e-01 : f32
      %86 = vector.broadcast %cst_40 : f32 to vector<8x128xf32>
      %87 = arith.mulf %86, %85 : vector<8x128xf32>
      %88 = vector.extract_strided_slice %75 {offsets = [0, 128], sizes = [8, 128], strides = [1, 1]} : vector<8x384xf32> to vector<8x128xf32>
      %89 = vector.extract_strided_slice %77 {offsets = [0, 128], sizes = [8, 128], strides = [1, 1]} : vector<8x384xf32> to vector<8x128xf32>
      %90 = arith.addf %88, %89 : vector<8x128xf32>
      %cst_41 = arith.constant 5.000000e-01 : f32
      %91 = vector.broadcast %cst_41 : f32 to vector<8x128xf32>
      %92 = arith.mulf %91, %90 : vector<8x128xf32>
      %93 = math.tanh %92 : vector<8x128xf32>
      %cst_42 = arith.constant 1.000000e+00 : f32
      %94 = vector.broadcast %cst_42 : f32 to vector<8x128xf32>
      %95 = arith.addf %93, %94 : vector<8x128xf32>
      %cst_43 = arith.constant 5.000000e-01 : f32
      %96 = vector.broadcast %cst_43 : f32 to vector<8x128xf32>
      %97 = arith.mulf %96, %95 : vector<8x128xf32>
      %98 = vector.extract_strided_slice %75 {offsets = [0, 256], sizes = [8, 128], strides = [1, 1]} : vector<8x384xf32> to vector<8x128xf32>
      %99 = vector.extract_strided_slice %77 {offsets = [0, 256], sizes = [8, 128], strides = [1, 1]} : vector<8x384xf32> to vector<8x128xf32>
      %c0_44 = arith.constant 0 : index
      %c0_45 = arith.constant 0 : index
      %100 = vector.load %arg7[%c0_44, %c0_45] : memref<1x128xf32, #tpu.memory_space<vmem>>, vector<1x128xf32>
      %101 = vector.broadcast %100 : vector<1x128xf32> to vector<8x128xf32>
      %102 = arith.addf %99, %101 : vector<8x128xf32>
      %103 = arith.mulf %87, %102 : vector<8x128xf32>
      %104 = arith.addf %98, %103 : vector<8x128xf32>
      %105 = math.tanh %104 : vector<8x128xf32>
      %106 = arith.subf %65, %105 : vector<8x128xf32>
      %107 = arith.mulf %97, %106 : vector<8x128xf32>
      %108 = arith.addf %105, %107 : vector<8x128xf32>
      %109 = arith.addi %0, %c1_i32 : i32
      %110 = vector.broadcast %109 : i32 to vector<8x1xi32>
      %111 = arith.cmpi slt, %110, %21 : vector<8x1xi32>
      %112 = vector.shape_cast %111 : vector<8x1xi1> to vector<8x1xi1>
      %113 = vector.broadcast %112 : vector<8x1xi1> to vector<8x128xi1>
      %114 = arith.select %113, %108, %65 : vector<8x128xi1>, vector<8x128xf32>
      %cst_46 = arith.constant -1.500000e+00 : f32
      %115 = vector.shape_cast %111 : vector<8x1xi1> to vector<8x1xi1>
      %116 = vector.broadcast %115 : vector<8x1xi1> to vector<8x128xi1>
      %117 = vector.broadcast %cst_46 : f32 to vector<8x128xf32>
      %118 = arith.select %116, %108, %117 : vector<8x128xi1>, vector<8x128xf32>
      %119 = arith.index_cast %73 : i32 to index
      %c0_47 = arith.constant 0 : index
      %120 = vector.load %arg9[%119, %c0_47] : memref<64x128xf32, #tpu.memory_space<vmem>>, vector<8x128xf32>
      tpu.vector_store %arg9[%119, %c0_47], %118 {strides = array<i32>} : memref<64x128xf32, #tpu.memory_space<vmem>>, vector<8x128xf32>,
      %c2_i32 = arith.constant 2 : i32
      %c8_i32_48 = arith.constant 8 : i32
      %121 = arith.muli %c2_i32, %c8_i32_48 : i32
      %122 = tpu.assume_multiple %121, 8 : i32
      %123 = arith.index_cast %122 : i32 to index
      %c0_49 = arith.constant 0 : index
      %124 = vector.load %arg12[%123, %c0_49] : memref<64x384xf32, #tpu.memory_space<vmem>>, vector<8x384xf32>
      %c0_50 = arith.constant 0 : index
      %c0_51 = arith.constant 0 : index
      %125 = vector.load %arg6[%c0_50, %c0_51] : memref<128x384xf32, #tpu.memory_space<vmem>>, vector<128x384xf32>
      %cst_52 = arith.constant dense<0.000000e+00> : vector<8x384xf32>
      %126 = tpu.matmul %114, %125, %cst_52 {dimension_numbers = #tpu.dot_dimension_numbers<[1], [0], [0], [1], [0, 0, 1, 1], [], []>} : vector<8x128xf32>, vector<128x384xf32>, vector<8x384xf32> -> vector<8x384xf32>
      %127 = vector.extract_strided_slice %124 {offsets = [0, 0], sizes = [8, 128], strides = [1, 1]} : vector<8x384xf32> to vector<8x128xf32>
      %128 = vector.extract_strided_slice %126 {offsets = [0, 0], sizes = [8, 128], strides = [1, 1]} : vector<8x384xf32> to vector<8x128xf32>
      %129 = arith.addf %127, %128 : vector<8x128xf32>
      %cst_53 = arith.constant 5.000000e-01 : f32
      %130 = vector.broadcast %cst_53 : f32 to vector<8x128xf32>
      %131 = arith.mulf %130, %129 : vector<8x128xf32>
      %132 = math.tanh %131 : vector<8x128xf32>
      %cst_54 = arith.constant 1.000000e+00 : f32
      %133 = vector.broadcast %cst_54 : f32 to vector<8x128xf32>
      %134 = arith.addf %132, %133 : vector<8x128xf32>
      %cst_55 = arith.constant 5.000000e-01 : f32
      %135 = vector.broadcast %cst_55 : f32 to vector<8x128xf32>
      %136 = arith.mulf %135, %134 : vector<8x128xf32>
      %137 = vector.extract_strided_slice %124 {offsets = [0, 128], sizes = [8, 128], strides = [1, 1]} : vector<8x384xf32> to vector<8x128xf32>
      %138 = vector.extract_strided_slice %126 {offsets = [0, 128], sizes = [8, 128], strides = [1, 1]} : vector<8x384xf32> to vector<8x128xf32>
      %139 = arith.addf %137, %138 : vector<8x128xf32>
      %cst_56 = arith.constant 5.000000e-01 : f32
      %140 = vector.broadcast %cst_56 : f32 to vector<8x128xf32>
      %141 = arith.mulf %140, %139 : vector<8x128xf32>
      %142 = math.tanh %141 : vector<8x128xf32>
      %cst_57 = arith.constant 1.000000e+00 : f32
      %143 = vector.broadcast %cst_57 : f32 to vector<8x128xf32>
      %144 = arith.addf %142, %143 : vector<8x128xf32>
      %cst_58 = arith.constant 5.000000e-01 : f32
      %145 = vector.broadcast %cst_58 : f32 to vector<8x128xf32>
      %146 = arith.mulf %145, %144 : vector<8x128xf32>
      %147 = vector.extract_strided_slice %124 {offsets = [0, 256], sizes = [8, 128], strides = [1, 1]} : vector<8x384xf32> to vector<8x128xf32>
      %148 = vector.extract_strided_slice %126 {offsets = [0, 256], sizes = [8, 128], strides = [1, 1]} : vector<8x384xf32> to vector<8x128xf32>
      %c0_59 = arith.constant 0 : index
      %c0_60 = arith.constant 0 : index
      %149 = vector.load %arg7[%c0_59, %c0_60] : memref<1x128xf32, #tpu.memory_space<vmem>>, vector<1x128xf32>
      %150 = vector.broadcast %149 : vector<1x128xf32> to vector<8x128xf32>
      %151 = arith.addf %148, %150 : vector<8x128xf32>
      %152 = arith.mulf %136, %151 : vector<8x128xf32>
      %153 = arith.addf %147, %152 : vector<8x128xf32>
      %154 = math.tanh %153 : vector<8x128xf32>
      %155 = arith.subf %114, %154 : vector<8x128xf32>
      %156 = arith.mulf %146, %155 : vector<8x128xf32>
      %157 = arith.addf %154, %156 : vector<8x128xf32>
      %158 = arith.addi %0, %c2_i32 : i32
      %159 = vector.broadcast %158 : i32 to vector<8x1xi32>
      %160 = arith.cmpi slt, %159, %21 : vector<8x1xi32>
      %161 = vector.shape_cast %160 : vector<8x1xi1> to vector<8x1xi1>
      %162 = vector.broadcast %161 : vector<8x1xi1> to vector<8x128xi1>
      %163 = arith.select %162, %157, %114 : vector<8x128xi1>, vector<8x128xf32>
      %cst_61 = arith.constant -1.500000e+00 : f32
      %164 = vector.shape_cast %160 : vector<8x1xi1> to vector<8x1xi1>
      %165 = vector.broadcast %164 : vector<8x1xi1> to vector<8x128xi1>
      %166 = vector.broadcast %cst_61 : f32 to vector<8x128xf32>
      %167 = arith.select %165, %157, %166 : vector<8x128xi1>, vector<8x128xf32>
      %168 = arith.index_cast %122 : i32 to index
      %c0_62 = arith.constant 0 : index
      %169 = vector.load %arg9[%168, %c0_62] : memref<64x128xf32, #tpu.memory_space<vmem>>, vector<8x128xf32>
      tpu.vector_store %arg9[%168, %c0_62], %167 {strides = array<i32>} : memref<64x128xf32, #tpu.memory_space<vmem>>, vector<8x128xf32>,
      %c3_i32 = arith.constant 3 : i32
      %c8_i32_63 = arith.constant 8 : i32
      %170 = arith.muli %c3_i32, %c8_i32_63 : i32
      %171 = tpu.assume_multiple %170, 8 : i32
      %172 = arith.index_cast %171 : i32 to index
      %c0_64 = arith.constant 0 : index
      %173 = vector.load %arg12[%172, %c0_64] : memref<64x384xf32, #tpu.memory_space<vmem>>, vector<8x384xf32>
      %c0_65 = arith.constant 0 : index
      %c0_66 = arith.constant 0 : index
      %174 = vector.load %arg6[%c0_65, %c0_66] : memref<128x384xf32, #tpu.memory_space<vmem>>, vector<128x384xf32>
      %cst_67 = arith.constant dense<0.000000e+00> : vector<8x384xf32>
      %175 = tpu.matmul %163, %174, %cst_67 {dimension_numbers = #tpu.dot_dimension_numbers<[1], [0], [0], [1], [0, 0, 1, 1], [], []>} : vector<8x128xf32>, vector<128x384xf32>, vector<8x384xf32> -> vector<8x384xf32>
      %176 = vector.extract_strided_slice %173 {offsets = [0, 0], sizes = [8, 128], strides = [1, 1]} : vector<8x384xf32> to vector<8x128xf32>
      %177 = vector.extract_strided_slice %175 {offsets = [0, 0], sizes = [8, 128], strides = [1, 1]} : vector<8x384xf32> to vector<8x128xf32>
      %178 = arith.addf %176, %177 : vector<8x128xf32>
      %cst_68 = arith.constant 5.000000e-01 : f32
      %179 = vector.broadcast %cst_68 : f32 to vector<8x128xf32>
      %180 = arith.mulf %179, %178 : vector<8x128xf32>
      %181 = math.tanh %180 : vector<8x128xf32>
      %cst_69 = arith.constant 1.000000e+00 : f32
      %182 = vector.broadcast %cst_69 : f32 to vector<8x128xf32>
      %183 = arith.addf %181, %182 : vector<8x128xf32>
      %cst_70 = arith.constant 5.000000e-01 : f32
      %184 = vector.broadcast %cst_70 : f32 to vector<8x128xf32>
      %185 = arith.mulf %184, %183 : vector<8x128xf32>
      %186 = vector.extract_strided_slice %173 {offsets = [0, 128], sizes = [8, 128], strides = [1, 1]} : vector<8x384xf32> to vector<8x128xf32>
      %187 = vector.extract_strided_slice %175 {offsets = [0, 128], sizes = [8, 128], strides = [1, 1]} : vector<8x384xf32> to vector<8x128xf32>
      %188 = arith.addf %186, %187 : vector<8x128xf32>
      %cst_71 = arith.constant 5.000000e-01 : f32
      %189 = vector.broadcast %cst_71 : f32 to vector<8x128xf32>
      %190 = arith.mulf %189, %188 : vector<8x128xf32>
      %191 = math.tanh %190 : vector<8x128xf32>
      %cst_72 = arith.constant 1.000000e+00 : f32
      %192 = vector.broadcast %cst_72 : f32 to vector<8x128xf32>
      %193 = arith.addf %191, %192 : vector<8x128xf32>
      %cst_73 = arith.constant 5.000000e-01 : f32
      %194 = vector.broadcast %cst_73 : f32 to vector<8x128xf32>
      %195 = arith.mulf %194, %193 : vector<8x128xf32>
      %196 = vector.extract_strided_slice %173 {offsets = [0, 256], sizes = [8, 128], strides = [1, 1]} : vector<8x384xf32> to vector<8x128xf32>
      %197 = vector.extract_strided_slice %175 {offsets = [0, 256], sizes = [8, 128], strides = [1, 1]} : vector<8x384xf32> to vector<8x128xf32>
      %c0_74 = arith.constant 0 : index
      %c0_75 = arith.constant 0 : index
      %198 = vector.load %arg7[%c0_74, %c0_75] : memref<1x128xf32, #tpu.memory_space<vmem>>, vector<1x128xf32>
      %199 = vector.broadcast %198 : vector<1x128xf32> to vector<8x128xf32>
      %200 = arith.addf %197, %199 : vector<8x128xf32>
      %201 = arith.mulf %185, %200 : vector<8x128xf32>
      %202 = arith.addf %196, %201 : vector<8x128xf32>
      %203 = math.tanh %202 : vector<8x128xf32>
      %204 = arith.subf %163, %203 : vector<8x128xf32>
      %205 = arith.mulf %195, %204 : vector<8x128xf32>
      %206 = arith.addf %203, %205 : vector<8x128xf32>
      %207 = arith.addi %0, %c3_i32 : i32
      %208 = vector.broadcast %207 : i32 to vector<8x1xi32>
      %209 = arith.cmpi slt, %208, %21 : vector<8x1xi32>
      %210 = vector.shape_cast %209 : vector<8x1xi1> to vector<8x1xi1>
      %211 = vector.broadcast %210 : vector<8x1xi1> to vector<8x128xi1>
      %212 = arith.select %211, %206, %163 : vector<8x128xi1>, vector<8x128xf32>
      %cst_76 = arith.constant -1.500000e+00 : f32
      %213 = vector.shape_cast %209 : vector<8x1xi1> to vector<8x1xi1>
      %214 = vector.broadcast %213 : vector<8x1xi1> to vector<8x128xi1>
      %215 = vector.broadcast %cst_76 : f32 to vector<8x128xf32>
      %216 = arith.select %214, %206, %215 : vector<8x128xi1>, vector<8x128xf32>
      %217 = arith.index_cast %171 : i32 to index
      %c0_77 = arith.constant 0 : index
      %218 = vector.load %arg9[%217, %c0_77] : memref<64x128xf32, #tpu.memory_space<vmem>>, vector<8x128xf32>
      tpu.vector_store %arg9[%217, %c0_77], %216 {strides = array<i32>} : memref<64x128xf32, #tpu.memory_space<vmem>>, vector<8x128xf32>,
      %c4_i32 = arith.constant 4 : i32
      %c8_i32_78 = arith.constant 8 : i32
      %219 = arith.muli %c4_i32, %c8_i32_78 : i32
      %220 = tpu.assume_multiple %219, 8 : i32
      %221 = arith.index_cast %220 : i32 to index
      %c0_79 = arith.constant 0 : index
      %222 = vector.load %arg12[%221, %c0_79] : memref<64x384xf32, #tpu.memory_space<vmem>>, vector<8x384xf32>
      %c0_80 = arith.constant 0 : index
      %c0_81 = arith.constant 0 : index
      %223 = vector.load %arg6[%c0_80, %c0_81] : memref<128x384xf32, #tpu.memory_space<vmem>>, vector<128x384xf32>
      %cst_82 = arith.constant dense<0.000000e+00> : vector<8x384xf32>
      %224 = tpu.matmul %212, %223, %cst_82 {dimension_numbers = #tpu.dot_dimension_numbers<[1], [0], [0], [1], [0, 0, 1, 1], [], []>} : vector<8x128xf32>, vector<128x384xf32>, vector<8x384xf32> -> vector<8x384xf32>
      %225 = vector.extract_strided_slice %222 {offsets = [0, 0], sizes = [8, 128], strides = [1, 1]} : vector<8x384xf32> to vector<8x128xf32>
      %226 = vector.extract_strided_slice %224 {offsets = [0, 0], sizes = [8, 128], strides = [1, 1]} : vector<8x384xf32> to vector<8x128xf32>
      %227 = arith.addf %225, %226 : vector<8x128xf32>
      %cst_83 = arith.constant 5.000000e-01 : f32
      %228 = vector.broadcast %cst_83 : f32 to vector<8x128xf32>
      %229 = arith.mulf %228, %227 : vector<8x128xf32>
      %230 = math.tanh %229 : vector<8x128xf32>
      %cst_84 = arith.constant 1.000000e+00 : f32
      %231 = vector.broadcast %cst_84 : f32 to vector<8x128xf32>
      %232 = arith.addf %230, %231 : vector<8x128xf32>
      %cst_85 = arith.constant 5.000000e-01 : f32
      %233 = vector.broadcast %cst_85 : f32 to vector<8x128xf32>
      %234 = arith.mulf %233, %232 : vector<8x128xf32>
      %235 = vector.extract_strided_slice %222 {offsets = [0, 128], sizes = [8, 128], strides = [1, 1]} : vector<8x384xf32> to vector<8x128xf32>
      %236 = vector.extract_strided_slice %224 {offsets = [0, 128], sizes = [8, 128], strides = [1, 1]} : vector<8x384xf32> to vector<8x128xf32>
      %237 = arith.addf %235, %236 : vector<8x128xf32>
      %cst_86 = arith.constant 5.000000e-01 : f32
      %238 = vector.broadcast %cst_86 : f32 to vector<8x128xf32>
      %239 = arith.mulf %238, %237 : vector<8x128xf32>
      %240 = math.tanh %239 : vector<8x128xf32>
      %cst_87 = arith.constant 1.000000e+00 : f32
      %241 = vector.broadcast %cst_87 : f32 to vector<8x128xf32>
      %242 = arith.addf %240, %241 : vector<8x128xf32>
      %cst_88 = arith.constant 5.000000e-01 : f32
      %243 = vector.broadcast %cst_88 : f32 to vector<8x128xf32>
      %244 = arith.mulf %243, %242 : vector<8x128xf32>
      %245 = vector.extract_strided_slice %222 {offsets = [0, 256], sizes = [8, 128], strides = [1, 1]} : vector<8x384xf32> to vector<8x128xf32>
      %246 = vector.extract_strided_slice %224 {offsets = [0, 256], sizes = [8, 128], strides = [1, 1]} : vector<8x384xf32> to vector<8x128xf32>
      %c0_89 = arith.constant 0 : index
      %c0_90 = arith.constant 0 : index
      %247 = vector.load %arg7[%c0_89, %c0_90] : memref<1x128xf32, #tpu.memory_space<vmem>>, vector<1x128xf32>
      %248 = vector.broadcast %247 : vector<1x128xf32> to vector<8x128xf32>
      %249 = arith.addf %246, %248 : vector<8x128xf32>
      %250 = arith.mulf %234, %249 : vector<8x128xf32>
      %251 = arith.addf %245, %250 : vector<8x128xf32>
      %252 = math.tanh %251 : vector<8x128xf32>
      %253 = arith.subf %212, %252 : vector<8x128xf32>
      %254 = arith.mulf %244, %253 : vector<8x128xf32>
      %255 = arith.addf %252, %254 : vector<8x128xf32>
      %256 = arith.addi %0, %c4_i32 : i32
      %257 = vector.broadcast %256 : i32 to vector<8x1xi32>
      %258 = arith.cmpi slt, %257, %21 : vector<8x1xi32>
      %259 = vector.shape_cast %258 : vector<8x1xi1> to vector<8x1xi1>
      %260 = vector.broadcast %259 : vector<8x1xi1> to vector<8x128xi1>
      %261 = arith.select %260, %255, %212 : vector<8x128xi1>, vector<8x128xf32>
      %cst_91 = arith.constant -1.500000e+00 : f32
      %262 = vector.shape_cast %258 : vector<8x1xi1> to vector<8x1xi1>
      %263 = vector.broadcast %262 : vector<8x1xi1> to vector<8x128xi1>
      %264 = vector.broadcast %cst_91 : f32 to vector<8x128xf32>
      %265 = arith.select %263, %255, %264 : vector<8x128xi1>, vector<8x128xf32>
      %266 = arith.index_cast %220 : i32 to index
      %c0_92 = arith.constant 0 : index
      %267 = vector.load %arg9[%266, %c0_92] : memref<64x128xf32, #tpu.memory_space<vmem>>, vector<8x128xf32>
      tpu.vector_store %arg9[%266, %c0_92], %265 {strides = array<i32>} : memref<64x128xf32, #tpu.memory_space<vmem>>, vector<8x128xf32>,
      %c5_i32 = arith.constant 5 : i32
      %c8_i32_93 = arith.constant 8 : i32
      %268 = arith.muli %c5_i32, %c8_i32_93 : i32
      %269 = tpu.assume_multiple %268, 8 : i32
      %270 = arith.index_cast %269 : i32 to index
      %c0_94 = arith.constant 0 : index
      %271 = vector.load %arg12[%270, %c0_94] : memref<64x384xf32, #tpu.memory_space<vmem>>, vector<8x384xf32>
      %c0_95 = arith.constant 0 : index
      %c0_96 = arith.constant 0 : index
      %272 = vector.load %arg6[%c0_95, %c0_96] : memref<128x384xf32, #tpu.memory_space<vmem>>, vector<128x384xf32>
      %cst_97 = arith.constant dense<0.000000e+00> : vector<8x384xf32>
      %273 = tpu.matmul %261, %272, %cst_97 {dimension_numbers = #tpu.dot_dimension_numbers<[1], [0], [0], [1], [0, 0, 1, 1], [], []>} : vector<8x128xf32>, vector<128x384xf32>, vector<8x384xf32> -> vector<8x384xf32>
      %274 = vector.extract_strided_slice %271 {offsets = [0, 0], sizes = [8, 128], strides = [1, 1]} : vector<8x384xf32> to vector<8x128xf32>
      %275 = vector.extract_strided_slice %273 {offsets = [0, 0], sizes = [8, 128], strides = [1, 1]} : vector<8x384xf32> to vector<8x128xf32>
      %276 = arith.addf %274, %275 : vector<8x128xf32>
      %cst_98 = arith.constant 5.000000e-01 : f32
      %277 = vector.broadcast %cst_98 : f32 to vector<8x128xf32>
      %278 = arith.mulf %277, %276 : vector<8x128xf32>
      %279 = math.tanh %278 : vector<8x128xf32>
      %cst_99 = arith.constant 1.000000e+00 : f32
      %280 = vector.broadcast %cst_99 : f32 to vector<8x128xf32>
      %281 = arith.addf %279, %280 : vector<8x128xf32>
      %cst_100 = arith.constant 5.000000e-01 : f32
      %282 = vector.broadcast %cst_100 : f32 to vector<8x128xf32>
      %283 = arith.mulf %282, %281 : vector<8x128xf32>
      %284 = vector.extract_strided_slice %271 {offsets = [0, 128], sizes = [8, 128], strides = [1, 1]} : vector<8x384xf32> to vector<8x128xf32>
      %285 = vector.extract_strided_slice %273 {offsets = [0, 128], sizes = [8, 128], strides = [1, 1]} : vector<8x384xf32> to vector<8x128xf32>
      %286 = arith.addf %284, %285 : vector<8x128xf32>
      %cst_101 = arith.constant 5.000000e-01 : f32
      %287 = vector.broadcast %cst_101 : f32 to vector<8x128xf32>
      %288 = arith.mulf %287, %286 : vector<8x128xf32>
      %289 = math.tanh %288 : vector<8x128xf32>
      %cst_102 = arith.constant 1.000000e+00 : f32
      %290 = vector.broadcast %cst_102 : f32 to vector<8x128xf32>
      %291 = arith.addf %289, %290 : vector<8x128xf32>
      %cst_103 = arith.constant 5.000000e-01 : f32
      %292 = vector.broadcast %cst_103 : f32 to vector<8x128xf32>
      %293 = arith.mulf %292, %291 : vector<8x128xf32>
      %294 = vector.extract_strided_slice %271 {offsets = [0, 256], sizes = [8, 128], strides = [1, 1]} : vector<8x384xf32> to vector<8x128xf32>
      %295 = vector.extract_strided_slice %273 {offsets = [0, 256], sizes = [8, 128], strides = [1, 1]} : vector<8x384xf32> to vector<8x128xf32>
      %c0_104 = arith.constant 0 : index
      %c0_105 = arith.constant 0 : index
      %296 = vector.load %arg7[%c0_104, %c0_105] : memref<1x128xf32, #tpu.memory_space<vmem>>, vector<1x128xf32>
      %297 = vector.broadcast %296 : vector<1x128xf32> to vector<8x128xf32>
      %298 = arith.addf %295, %297 : vector<8x128xf32>
      %299 = arith.mulf %283, %298 : vector<8x128xf32>
      %300 = arith.addf %294, %299 : vector<8x128xf32>
      %301 = math.tanh %300 : vector<8x128xf32>
      %302 = arith.subf %261, %301 : vector<8x128xf32>
      %303 = arith.mulf %293, %302 : vector<8x128xf32>
      %304 = arith.addf %301, %303 : vector<8x128xf32>
      %305 = arith.addi %0, %c5_i32 : i32
      %306 = vector.broadcast %305 : i32 to vector<8x1xi32>
      %307 = arith.cmpi slt, %306, %21 : vector<8x1xi32>
      %308 = vector.shape_cast %307 : vector<8x1xi1> to vector<8x1xi1>
      %309 = vector.broadcast %308 : vector<8x1xi1> to vector<8x128xi1>
      %310 = arith.select %309, %304, %261 : vector<8x128xi1>, vector<8x128xf32>
      %cst_106 = arith.constant -1.500000e+00 : f32
      %311 = vector.shape_cast %307 : vector<8x1xi1> to vector<8x1xi1>
      %312 = vector.broadcast %311 : vector<8x1xi1> to vector<8x128xi1>
      %313 = vector.broadcast %cst_106 : f32 to vector<8x128xf32>
      %314 = arith.select %312, %304, %313 : vector<8x128xi1>, vector<8x128xf32>
      %315 = arith.index_cast %269 : i32 to index
      %c0_107 = arith.constant 0 : index
      %316 = vector.load %arg9[%315, %c0_107] : memref<64x128xf32, #tpu.memory_space<vmem>>, vector<8x128xf32>
      tpu.vector_store %arg9[%315, %c0_107], %314 {strides = array<i32>} : memref<64x128xf32, #tpu.memory_space<vmem>>, vector<8x128xf32>,
      %c6_i32 = arith.constant 6 : i32
      %c8_i32_108 = arith.constant 8 : i32
      %317 = arith.muli %c6_i32, %c8_i32_108 : i32
      %318 = tpu.assume_multiple %317, 8 : i32
      %319 = arith.index_cast %318 : i32 to index
      %c0_109 = arith.constant 0 : index
      %320 = vector.load %arg12[%319, %c0_109] : memref<64x384xf32, #tpu.memory_space<vmem>>, vector<8x384xf32>
      %c0_110 = arith.constant 0 : index
      %c0_111 = arith.constant 0 : index
      %321 = vector.load %arg6[%c0_110, %c0_111] : memref<128x384xf32, #tpu.memory_space<vmem>>, vector<128x384xf32>
      %cst_112 = arith.constant dense<0.000000e+00> : vector<8x384xf32>
      %322 = tpu.matmul %310, %321, %cst_112 {dimension_numbers = #tpu.dot_dimension_numbers<[1], [0], [0], [1], [0, 0, 1, 1], [], []>} : vector<8x128xf32>, vector<128x384xf32>, vector<8x384xf32> -> vector<8x384xf32>
      %323 = vector.extract_strided_slice %320 {offsets = [0, 0], sizes = [8, 128], strides = [1, 1]} : vector<8x384xf32> to vector<8x128xf32>
      %324 = vector.extract_strided_slice %322 {offsets = [0, 0], sizes = [8, 128], strides = [1, 1]} : vector<8x384xf32> to vector<8x128xf32>
      %325 = arith.addf %323, %324 : vector<8x128xf32>
      %cst_113 = arith.constant 5.000000e-01 : f32
      %326 = vector.broadcast %cst_113 : f32 to vector<8x128xf32>
      %327 = arith.mulf %326, %325 : vector<8x128xf32>
      %328 = math.tanh %327 : vector<8x128xf32>
      %cst_114 = arith.constant 1.000000e+00 : f32
      %329 = vector.broadcast %cst_114 : f32 to vector<8x128xf32>
      %330 = arith.addf %328, %329 : vector<8x128xf32>
      %cst_115 = arith.constant 5.000000e-01 : f32
      %331 = vector.broadcast %cst_115 : f32 to vector<8x128xf32>
      %332 = arith.mulf %331, %330 : vector<8x128xf32>
      %333 = vector.extract_strided_slice %320 {offsets = [0, 128], sizes = [8, 128], strides = [1, 1]} : vector<8x384xf32> to vector<8x128xf32>
      %334 = vector.extract_strided_slice %322 {offsets = [0, 128], sizes = [8, 128], strides = [1, 1]} : vector<8x384xf32> to vector<8x128xf32>
      %335 = arith.addf %333, %334 : vector<8x128xf32>
      %cst_116 = arith.constant 5.000000e-01 : f32
      %336 = vector.broadcast %cst_116 : f32 to vector<8x128xf32>
      %337 = arith.mulf %336, %335 : vector<8x128xf32>
      %338 = math.tanh %337 : vector<8x128xf32>
      %cst_117 = arith.constant 1.000000e+00 : f32
      %339 = vector.broadcast %cst_117 : f32 to vector<8x128xf32>
      %340 = arith.addf %338, %339 : vector<8x128xf32>
      %cst_118 = arith.constant 5.000000e-01 : f32
      %341 = vector.broadcast %cst_118 : f32 to vector<8x128xf32>
      %342 = arith.mulf %341, %340 : vector<8x128xf32>
      %343 = vector.extract_strided_slice %320 {offsets = [0, 256], sizes = [8, 128], strides = [1, 1]} : vector<8x384xf32> to vector<8x128xf32>
      %344 = vector.extract_strided_slice %322 {offsets = [0, 256], sizes = [8, 128], strides = [1, 1]} : vector<8x384xf32> to vector<8x128xf32>
      %c0_119 = arith.constant 0 : index
      %c0_120 = arith.constant 0 : index
      %345 = vector.load %arg7[%c0_119, %c0_120] : memref<1x128xf32, #tpu.memory_space<vmem>>, vector<1x128xf32>
      %346 = vector.broadcast %345 : vector<1x128xf32> to vector<8x128xf32>
      %347 = arith.addf %344, %346 : vector<8x128xf32>
      %348 = arith.mulf %332, %347 : vector<8x128xf32>
      %349 = arith.addf %343, %348 : vector<8x128xf32>
      %350 = math.tanh %349 : vector<8x128xf32>
      %351 = arith.subf %310, %350 : vector<8x128xf32>
      %352 = arith.mulf %342, %351 : vector<8x128xf32>
      %353 = arith.addf %350, %352 : vector<8x128xf32>
      %354 = arith.addi %0, %c6_i32 : i32
      %355 = vector.broadcast %354 : i32 to vector<8x1xi32>
      %356 = arith.cmpi slt, %355, %21 : vector<8x1xi32>
      %357 = vector.shape_cast %356 : vector<8x1xi1> to vector<8x1xi1>
      %358 = vector.broadcast %357 : vector<8x1xi1> to vector<8x128xi1>
      %359 = arith.select %358, %353, %310 : vector<8x128xi1>, vector<8x128xf32>
      %cst_121 = arith.constant -1.500000e+00 : f32
      %360 = vector.shape_cast %356 : vector<8x1xi1> to vector<8x1xi1>
      %361 = vector.broadcast %360 : vector<8x1xi1> to vector<8x128xi1>
      %362 = vector.broadcast %cst_121 : f32 to vector<8x128xf32>
      %363 = arith.select %361, %353, %362 : vector<8x128xi1>, vector<8x128xf32>
      %364 = arith.index_cast %318 : i32 to index
      %c0_122 = arith.constant 0 : index
      %365 = vector.load %arg9[%364, %c0_122] : memref<64x128xf32, #tpu.memory_space<vmem>>, vector<8x128xf32>
      tpu.vector_store %arg9[%364, %c0_122], %363 {strides = array<i32>} : memref<64x128xf32, #tpu.memory_space<vmem>>, vector<8x128xf32>,
      %c7_i32 = arith.constant 7 : i32
      %c8_i32_123 = arith.constant 8 : i32
      %366 = arith.muli %c7_i32, %c8_i32_123 : i32
      %367 = tpu.assume_multiple %366, 8 : i32
      %368 = arith.index_cast %367 : i32 to index
      %c0_124 = arith.constant 0 : index
      %369 = vector.load %arg12[%368, %c0_124] : memref<64x384xf32, #tpu.memory_space<vmem>>, vector<8x384xf32>
      %c0_125 = arith.constant 0 : index
      %c0_126 = arith.constant 0 : index
      %370 = vector.load %arg6[%c0_125, %c0_126] : memref<128x384xf32, #tpu.memory_space<vmem>>, vector<128x384xf32>
      %cst_127 = arith.constant dense<0.000000e+00> : vector<8x384xf32>
      %371 = tpu.matmul %359, %370, %cst_127 {dimension_numbers = #tpu.dot_dimension_numbers<[1], [0], [0], [1], [0, 0, 1, 1], [], []>} : vector<8x128xf32>, vector<128x384xf32>, vector<8x384xf32> -> vector<8x384xf32>
      %372 = vector.extract_strided_slice %369 {offsets = [0, 0], sizes = [8, 128], strides = [1, 1]} : vector<8x384xf32> to vector<8x128xf32>
      %373 = vector.extract_strided_slice %371 {offsets = [0, 0], sizes = [8, 128], strides = [1, 1]} : vector<8x384xf32> to vector<8x128xf32>
      %374 = arith.addf %372, %373 : vector<8x128xf32>
      %cst_128 = arith.constant 5.000000e-01 : f32
      %375 = vector.broadcast %cst_128 : f32 to vector<8x128xf32>
      %376 = arith.mulf %375, %374 : vector<8x128xf32>
      %377 = math.tanh %376 : vector<8x128xf32>
      %cst_129 = arith.constant 1.000000e+00 : f32
      %378 = vector.broadcast %cst_129 : f32 to vector<8x128xf32>
      %379 = arith.addf %377, %378 : vector<8x128xf32>
      %cst_130 = arith.constant 5.000000e-01 : f32
      %380 = vector.broadcast %cst_130 : f32 to vector<8x128xf32>
      %381 = arith.mulf %380, %379 : vector<8x128xf32>
      %382 = vector.extract_strided_slice %369 {offsets = [0, 128], sizes = [8, 128], strides = [1, 1]} : vector<8x384xf32> to vector<8x128xf32>
      %383 = vector.extract_strided_slice %371 {offsets = [0, 128], sizes = [8, 128], strides = [1, 1]} : vector<8x384xf32> to vector<8x128xf32>
      %384 = arith.addf %382, %383 : vector<8x128xf32>
      %cst_131 = arith.constant 5.000000e-01 : f32
      %385 = vector.broadcast %cst_131 : f32 to vector<8x128xf32>
      %386 = arith.mulf %385, %384 : vector<8x128xf32>
      %387 = math.tanh %386 : vector<8x128xf32>
      %cst_132 = arith.constant 1.000000e+00 : f32
      %388 = vector.broadcast %cst_132 : f32 to vector<8x128xf32>
      %389 = arith.addf %387, %388 : vector<8x128xf32>
      %cst_133 = arith.constant 5.000000e-01 : f32
      %390 = vector.broadcast %cst_133 : f32 to vector<8x128xf32>
      %391 = arith.mulf %390, %389 : vector<8x128xf32>
      %392 = vector.extract_strided_slice %369 {offsets = [0, 256], sizes = [8, 128], strides = [1, 1]} : vector<8x384xf32> to vector<8x128xf32>
      %393 = vector.extract_strided_slice %371 {offsets = [0, 256], sizes = [8, 128], strides = [1, 1]} : vector<8x384xf32> to vector<8x128xf32>
      %c0_134 = arith.constant 0 : index
      %c0_135 = arith.constant 0 : index
      %394 = vector.load %arg7[%c0_134, %c0_135] : memref<1x128xf32, #tpu.memory_space<vmem>>, vector<1x128xf32>
      %395 = vector.broadcast %394 : vector<1x128xf32> to vector<8x128xf32>
      %396 = arith.addf %393, %395 : vector<8x128xf32>
      %397 = arith.mulf %381, %396 : vector<8x128xf32>
      %398 = arith.addf %392, %397 : vector<8x128xf32>
      %399 = math.tanh %398 : vector<8x128xf32>
      %400 = arith.subf %359, %399 : vector<8x128xf32>
      %401 = arith.mulf %391, %400 : vector<8x128xf32>
      %402 = arith.addf %399, %401 : vector<8x128xf32>
      %403 = arith.addi %0, %c7_i32 : i32
      %404 = vector.broadcast %403 : i32 to vector<8x1xi32>
      %405 = arith.cmpi slt, %404, %21 : vector<8x1xi32>
      %406 = vector.shape_cast %405 : vector<8x1xi1> to vector<8x1xi1>
      %407 = vector.broadcast %406 : vector<8x1xi1> to vector<8x128xi1>
      %408 = arith.select %407, %402, %359 : vector<8x128xi1>, vector<8x128xf32>
      %cst_136 = arith.constant -1.500000e+00 : f32
      %409 = vector.shape_cast %405 : vector<8x1xi1> to vector<8x1xi1>
      %410 = vector.broadcast %409 : vector<8x1xi1> to vector<8x128xi1>
      %411 = vector.broadcast %cst_136 : f32 to vector<8x128xf32>
      %412 = arith.select %410, %402, %411 : vector<8x128xi1>, vector<8x128xf32>
      %413 = arith.index_cast %367 : i32 to index
      %c0_137 = arith.constant 0 : index
      %414 = vector.load %arg9[%413, %c0_137] : memref<64x128xf32, #tpu.memory_space<vmem>>, vector<8x128xf32>
      tpu.vector_store %arg9[%413, %c0_137], %412 {strides = array<i32>} : memref<64x128xf32, #tpu.memory_space<vmem>>, vector<8x128xf32>,
      %c8_i32_138 = arith.constant 8 : i32
      %c0_139 = arith.constant 0 : index
      %c0_140 = arith.constant 0 : index
      %415 = vector.load %arg11[%c0_139, %c0_140] : memref<8x128xf32, #tpu.memory_space<vmem>>, vector<8x128xf32>
      tpu.vector_store %arg11[%c0_139, %c0_140], %408 {strides = array<i32>} : memref<8x128xf32, #tpu.memory_space<vmem>>, vector<8x128xf32>,
    } else {
    }
    %8 = arith.cmpi sge, %0, %1 : i32
    %9 = arith.extui %8 : i1 to i32
    %c0_i32_2 = arith.constant 0 : i32
    %10 = arith.cmpi ne, %9, %c0_i32_2 : i32
    scf.if %10 {
      %cst = arith.constant -1.500000e+00 : f32
      %14 = vector.broadcast %cst : f32 to vector<64x128xf32>
      %c0_5 = arith.constant 0 : index
      %c0_6 = arith.constant 0 : index
      %15 = vector.load %arg9[%c0_5, %c0_6] : memref<64x128xf32, #tpu.memory_space<vmem>>, vector<64x128xf32>
      tpu.vector_store %arg9[%c0_5, %c0_6], %14 {strides = array<i32>} : memref<64x128xf32, #tpu.memory_space<vmem>>, vector<64x128xf32>,
    } else {
    }
    %c0_i32_3 = arith.constant 0 : i32
    %11 = arith.cmpi eq, %arg0, %c0_i32_3 : i32
    %12 = arith.extui %11 : i1 to i32
    %c0_i32_4 = arith.constant 0 : i32
    %13 = arith.cmpi ne, %12, %c0_i32_4 : i32
    scf.if %13 {
      %c0_5 = arith.constant 0 : index
      %c0_6 = arith.constant 0 : index
      %14 = vector.load %arg11[%c0_5, %c0_6] : memref<8x128xf32, #tpu.memory_space<vmem>>, vector<8x128xf32>
      %c0_7 = arith.constant 0 : index
      %c0_8 = arith.constant 0 : index
      %15 = vector.load %arg10[%c0_7, %c0_8] : memref<8x128xf32, #tpu.memory_space<vmem>>, vector<8x128xf32>
      tpu.vector_store %arg10[%c0_7, %c0_8], %14 {strides = array<i32>} : memref<8x128xf32, #tpu.memory_space<vmem>>, vector<8x128xf32>,
    } else {
    }
    return
  }
  func.func @transform_0(%arg0: i32, %arg1: memref<8xi32, #tpu.memory_space<smem>>) -> (i32, i32) {
    %c0_i32 = arith.constant 0 : i32
    %c0_i32_0 = arith.constant 0 : i32
    return %arg0, %c0_i32 : i32, i32
  }
  func.func @transform_1(%arg0: i32, %arg1: memref<8xi32, #tpu.memory_space<smem>>) -> (i32, i32) {
    %c0_i32 = arith.constant 0 : i32
    %c0_i32_0 = arith.constant 0 : i32
    %c0_i32_1 = arith.constant 0 : i32
    return %c0_i32, %c0_i32_0 : i32, i32
  }
  func.func @transform_2(%arg0: i32, %arg1: memref<8xi32, #tpu.memory_space<smem>>) -> (i32, i32) {
    %c0_i32 = arith.constant 0 : i32
    %c0_i32_0 = arith.constant 0 : i32
    %c0_i32_1 = arith.constant 0 : i32
    return %c0_i32, %c0_i32_0 : i32, i32
  }
  func.func @transform_3(%arg0: i32, %arg1: memref<8xi32, #tpu.memory_space<smem>>) -> (i32, i32) {
    %c0_i32 = arith.constant 0 : i32
    %c0_i32_0 = arith.constant 0 : i32
    %c0_i32_1 = arith.constant 0 : i32
    return %c0_i32, %c0_i32_0 : i32, i32
  }
  func.func @transform_4(%arg0: i32, %arg1: memref<8xi32, #tpu.memory_space<smem>>) -> (i32, i32) {
    %c0_i32 = arith.constant 0 : i32
    %c0_i32_0 = arith.constant 0 : i32
    %c0_i32_1 = arith.constant 0 : i32
    return %c0_i32, %c0_i32_0 : i32, i32
  }
  func.func @transform_5(%arg0: i32, %arg1: memref<8xi32, #tpu.memory_space<smem>>) -> (i32, i32) {
    %c0_i32 = arith.constant 0 : i32
    %c0_i32_0 = arith.constant 0 : i32
    %c0_i32_1 = arith.constant 0 : i32
    return %c0_i32, %c0_i32_0 : i32, i32
  }
  func.func @transform_6(%arg0: i32, %arg1: memref<8xi32, #tpu.memory_space<smem>>) -> (i32, i32) {
    %c0_i32 = arith.constant 0 : i32
    %c0_i32_0 = arith.constant 0 : i32
    %c0_i32_1 = arith.constant 0 : i32
    return %c0_i32, %c0_i32_0 : i32, i32
  }
  func.func @transform_7(%arg0: i32, %arg1: memref<8xi32, #tpu.memory_space<smem>>) -> (i32, i32) {
    %c0_i32 = arith.constant 0 : i32
    %c0_i32_0 = arith.constant 0 : i32
    return %arg0, %c0_i32 : i32, i32
  }
  func.func @transform_8(%arg0: i32, %arg1: memref<8xi32, #tpu.memory_space<smem>>) -> (i32, i32) {
    %c0_i32 = arith.constant 0 : i32
    %c0_i32_0 = arith.constant 0 : i32
    %c0_i32_1 = arith.constant 0 : i32
    return %c0_i32, %c0_i32_0 : i32, i32
  }
}

</mosaic_0001>

<llo_original>
// kernel: encoder_forward.1
$region0: #{encoder_forward.1}
  #allocation0 [shape = 'u32[]', space=smem, size = 0x4, offset = 0x4, fixed_abs, tag = 'smem constant byte address 0x4 - core index']
  #allocation1 [shape = 'u32[144,128]{1,0:T(1,128)}', space=vmem, size = 0x12000, scoped, tag = 'internal scratch']
  #allocation2 [shape = 'f32[8,128]{1,0:T(8,128)}', space=vmem, size = 0x1000, scoped, tag = 'scratch operand']
  #allocation3 [shape = 'f32[64,384]{1,0:T(8,128)}', space=vmem, size = 0x18000, scoped, tag = 'scratch operand']
  #allocation4 [shape = 's32[1]{0}', space=sflag, size = 0x4, scoped, tag = 'scoped memory for encoder_forward.1']
  #allocation5 [shape = 'u8[512]{0}', space=smem, size = 0x200, scoped, tag = 'prefetched SMEM operand 0']
  %s0 = inlined_call_operand.vmem [shape: s32[8], index: 0, kind: input, shape index: {}]
  %s1 = inlined_call_operand.vmem [shape: f32[64,16], index: 1, kind: input, shape index: {}]
  %s2 = inlined_call_operand.vmem [shape: f32[16,384], index: 2, kind: input, shape index: {}]
  %s3 = inlined_call_operand.vmem [shape: f32[1,384], index: 3, kind: input, shape index: {}]
  %s4 = inlined_call_operand.vmem [shape: f32[8,128], index: 4, kind: input, shape index: {}]
  %s5 = inlined_call_operand.vmem [shape: f32[128,384], index: 5, kind: input, shape index: {}]
  %s6 = inlined_call_operand.vmem [shape: f32[1,128], index: 6, kind: input, shape index: {}]
  %s7 = inlined_call_operand.vmem [shape: s32[8,1], index: 7, kind: input, shape index: {}]
  %s8 = inlined_call_operand.vmem [shape: f32[64,128], index: 8, kind: output, shape index: {0}]
  %s9 = inlined_call_operand.vmem [shape: f32[8,128], index: 9, kind: output, shape index: {1}]
  %10 = xla_tuple %s8, %s9
  %s11 = sld [smem:[#allocation0]]
  $region62: #{encoder_forward.1} parent=0
    _
  %s13 = ssub.s32 1, %s11
  %s14 = scalar_select 0, %s13, %s11
  %s15 = sshll.u32 %s0, 4
  %s16 = int_to_ptr.vmem [resolvable:$true] %s15
  %18 = dma.vmem_to_smem %s16, 16, [#allocation5], [#allocation4]
  %19 = dma.done [#allocation4], 16
  %20 = sfence
  // Predicated region
  $region2: #{encoder_forward.1} parent=0 // pred_check
    _
  $region3: #{encoder_forward.1} parent=0 // pred_check_branch
    %22 = sbr.rel (0) target = $region5
  $region4: #{encoder_forward.1} parent=0 // pred_region
    _
  $region5: #{encoder_forward.1} parent=0 // pred_fallthru
    _
  // Predicated region
  $region6: #{encoder_forward.1} parent=0 // pred_check
    _
  $region7: #{encoder_forward.1} parent=0 // pred_check_branch
    %24 = sbr.rel (0) target = $region9
  $region8: #{encoder_forward.1} parent=0 // pred_region
    _
  $region9: #{encoder_forward.1} parent=0 // pred_fallthru
    _
  // Predicated region
  $region10: #{encoder_forward.1} parent=0 // pred_check
    _
  $region11: #{encoder_forward.1} parent=0 // pred_check_branch
    %26 = sbr.rel (0) target = $region13
  $region12: #{encoder_forward.1} parent=0 // pred_region
    _
  $region13: #{encoder_forward.1} parent=0 // pred_fallthru
    _
  // Predicated region
  $region14: #{encoder_forward.1} parent=0 // pred_check
    _
  $region15: #{encoder_forward.1} parent=0 // pred_check_branch
    %28 = sbr.rel (0) target = $region17
  $region16: #{encoder_forward.1} parent=0 // pred_region
    _
  $region17: #{encoder_forward.1} parent=0 // pred_fallthru
    _
  // Predicated region
  $region18: #{encoder_forward.1} parent=0 // pred_check
    _
  $region19: #{encoder_forward.1} parent=0 // pred_check_branch
    %30 = sbr.rel (0) target = $region21
  $region20: #{encoder_forward.1} parent=0 // pred_region
    _
  $region21: #{encoder_forward.1} parent=0 // pred_fallthru
    _
  // Predicated region
  $region22: #{encoder_forward.1} parent=0 // pred_check
    _
  $region23: #{encoder_forward.1} parent=0 // pred_check_branch
    %32 = sbr.rel (0) target = $region25
  $region24: #{encoder_forward.1} parent=0 // pred_region
    _
  $region25: #{encoder_forward.1} parent=0 // pred_fallthru
    _
  // Predicated region
  $region26: #{encoder_forward.1} parent=0 // pred_check
    _
  $region27: #{encoder_forward.1} parent=0 // pred_check_branch
    %34 = sbr.rel (0) target = $region29
  $region28: #{encoder_forward.1} parent=0 // pred_region
    _
  $region29: #{encoder_forward.1} parent=0 // pred_fallthru
    _
  %s35 = smul.u32 0, 8
  %s36 = sld [smem:[#allocation5]]
  %p37 = scmp.eq.s32.totalorder 0, 0
  // Predicated region
  $region30: #{encoder_forward.1} parent=0 // pred_check
    %p38 = pneg %p37
  $region31: #{encoder_forward.1} parent=0 // pred_check_branch
    %40 = sbr.rel (%p38) target = $region33
  $region32: #{encoder_forward.1} parent=0 // pred_region
    %v41 = vld [vmem:[%s4] sm:$0xff]
    %42 = vst [vmem:[#allocation2] sm:$0xff] %v41
  $region33: #{encoder_forward.1} parent=0 // pred_fallthru
    _
  %p43 = scmp.lt.s32.totalorder %s35, %s36
  // Predicated region
  $region34: #{encoder_forward.1} parent=0 // pred_check
    %p44 = pneg %p43
  $region35: #{encoder_forward.1} parent=0 // pred_check_branch
    %46 = sbr.rel (%p44) target = $region37
  $region36: #{encoder_forward.1} parent=0 // pred_region
    %v47 = vld [vmem:[%s1] sm:$0xff]
    %v48 = vld [vmem:[%s1 + $0x8] sm:$0xff]
    %v49 = vld [vmem:[%s1 + $0x10] sm:$0xff]
    %v50 = vld [vmem:[%s1 + $0x18] sm:$0xff]
    %v51 = vld [vmem:[%s1 + $0x20] sm:$0xff]
    %v52 = vld [vmem:[%s1 + $0x28] sm:$0xff]
    %v53 = vld [vmem:[%s1 + $0x30] sm:$0xff]
    %v54 = vld [vmem:[%s1 + $0x38] sm:$0xff]
    %v55 = vld [vmem:[%s2] sm:$0xff]
    %v56 = vld [vmem:[%s2 + $0x8] sm:$0xff]
    %v57 = vld [vmem:[%s2 + $0x10] sm:$0xff]
    %v58 = vld [vmem:[%s2 + $0x18] sm:$0xff]
    %v59 = vld [vmem:[%s2 + $0x20] sm:$0xff]
    %v60 = vld [vmem:[%s2 + $0x28] sm:$0xff]
    %v61 = vld [vmem:[%s3] sm:$0x7]
    %v63 = vlaneseq
    %v64 = vshrl.u32 %v63, 7
    %v65 = vsub.s32 0, %v64
    %v66 = vrot.slane %v61, %v65
    %v67 = vlaneseq
    %v68 = vshrl.u32 %v67, 7
    %v69 = vsub.s32 1, %v68
    %v70 = vrot.slane %v61, %v69
    %v71 = vlaneseq
    %v72 = vshrl.u32 %v71, 7
    %v73 = vsub.s32 2, %v72
    %v74 = vrot.slane %v61, %v73
    %vm78 = vcmask 130048
    %v80 = vsel %vm78, %v47, 0
    %v83 = vsel %vm78, %v48, 0
    %v86 = vsel %vm78, %v49, 0
    %v89 = vsel %vm78, %v50, 0
    %v92 = vsel %vm78, %v51, 0
    %v95 = vsel %vm78, %v52, 0
    %v98 = vsel %vm78, %v53, 0
    %v101 = vsel %vm78, %v54, 0
    %103 = vmatprep.subr.mxu0 0.0
    %104 = vmatpush1.msra.mxu0 0.0
    %105 = vmatprep.subr.mxu0 0.0
    %106 = vmatpush1.msra.mxu0 0.0
    %107 = vmatprep.subr.mxu0 0.0
    %108 = vmatpush1.msra.mxu0 0.0
    %109 = vmatprep.subr.mxu0 0.0
    %110 = vmatpush1.msra.mxu0 0.0
    %111 = vmatprep.subr.mxu0 0.0
    %112 = vmatpush1.msra.mxu0 0.0
    %113 = vmatprep.subr.mxu0 0.0
    %114 = vmatpush1.msra.mxu0 0.0
    %115 = vmatprep.subr.mxu0 0.0
    %116 = vmatpush1.msra.mxu0 0.0
    %117 = vmatprep.subr.mxu0 0.0
    %118 = vmatpush1.msra.mxu0 0.0
    %119 = vmatprep.subr.mxu0 0.0
    %120 = vmatpush1.msra.mxu0 0.0
    %121 = vmatprep.subr.mxu0 0.0
    %122 = vmatpush1.msra.mxu0 0.0
    %123 = vmatprep.subr.mxu0 0.0
    %124 = vmatpush1.msra.mxu0 0.0
    %125 = vmatprep.subr.mxu0 0.0
    %126 = vmatpush1.msra.mxu0 0.0
    %127 = vmatprep.subr.mxu0 0.0
    %128 = vmatpush1.msra.mxu0 0.0
    %129 = vmatprep.subr.mxu0 0.0
    %130 = vmatpush1.msra.mxu0 0.0
    %131 = vmatprep.subr.mxu0 %v59
    %132 = vmatpush1.msra.mxu0 %v58
    %133 = vmatprep.subr.mxu0 %v56
    %134 = vmatpush1.msra.mxu0 %v55
    %135 = vmatprep.subr.mxu0 0.0
    %136 = vmatpush2.msra.mxu0 0.0
    %137 = vmatprep.subr.mxu0 0.0
    %138 = vmatpush2.msra.mxu0 0.0
    %139 = vmatprep.subr.mxu0 0.0
    %140 = vmatpush2.msra.mxu0 0.0
    %141 = vmatprep.subr.mxu0 0.0
    %142 = vmatpush2.msra.mxu0 0.0
    %143 = vmatprep.subr.mxu0 0.0
    %144 = vmatpush2.msra.mxu0 0.0
    %145 = vmatprep.subr.mxu0 0.0
    %146 = vmatpush2.msra.mxu0 0.0
    %147 = vmatprep.subr.mxu0 0.0
    %148 = vmatpush2.msra.mxu0 0.0
    %149 = vmatprep.subr.mxu0 0.0
    %150 = vmatpush2.msra.mxu0 0.0
    %151 = vmatprep.subr.mxu0 0.0
    %152 = vmatpush2.msra.mxu0 0.0
    %153 = vmatprep.subr.mxu0 0.0
    %154 = vmatpush2.msra.mxu0 0.0
    %155 = vmatprep.subr.mxu0 0.0
    %156 = vmatpush2.msra.mxu0 0.0
    %157 = vmatprep.subr.mxu0 0.0
    %158 = vmatpush2.msra.mxu0 0.0
    %159 = vmatprep.subr.mxu0 0.0
    %160 = vmatpush2.msra.mxu0 0.0
    %161 = vmatprep.subr.mxu0 0.0
    %162 = vmatpush2.msra.mxu0 0.0
    %163 = vmatprep.subr.mxu0 0.0
    %164 = vmatpush2.msra.mxu0 0.0
    %165 = vmatprep.subr.mxu0 0.0
    %166 = vmatpush2.msra.mxu0 0.0
    %167 = vmatprep.mubr.f32.mxu0 0.0
    %168 = vmatmul.mubr.f32.gmra.mxu0 %v80
    %v169 = vpop.f32.mrf.mxu0
    %v170 = vadd.f32 %v66, %v169
    %v171 = vpop.f32.mrf.mxu0
    %v172 = vadd.f32 %v70, %v171
    %173 = vmatprep.mubr.f32.mxu0 0.0
    %174 = vmatmul.mubr.f32.gmra.mxu0 %v83
    %v175 = vpop.f32.mrf.mxu0
    %v176 = vadd.f32 %v66, %v175
    %v177 = vpop.f32.mrf.mxu0
    %v178 = vadd.f32 %v70, %v177
    %179 = vmatprep.mubr.f32.mxu0 0.0
    %180 = vmatmul.mubr.f32.gmra.mxu0 %v86
    %v181 = vpop.f32.mrf.mxu0
    %v182 = vadd.f32 %v66, %v181
    %v183 = vpop.f32.mrf.mxu0
    %v184 = vadd.f32 %v70, %v183
    %185 = vmatprep.mubr.f32.mxu0 0.0
    %186 = vmatmul.mubr.f32.gmra.mxu0 %v89
    %v187 = vpop.f32.mrf.mxu0
    %v188 = vadd.f32 %v66, %v187
    %v189 = vpop.f32.mrf.mxu0
    %v190 = vadd.f32 %v70, %v189
    %191 = vmatprep.mubr.f32.mxu0 0.0
    %192 = vmatmul.mubr.f32.gmra.mxu0 %v92
    %v193 = vpop.f32.mrf.mxu0
    %v194 = vadd.f32 %v66, %v193
    %v195 = vpop.f32.mrf.mxu0
    %v196 = vadd.f32 %v70, %v195
    %197 = vmatprep.mubr.f32.mxu0 0.0
    %198 = vmatmul.mubr.f32.gmra.mxu0 %v95
    %v199 = vpop.f32.mrf.mxu0
    %v200 = vadd.f32 %v66, %v199
    %v201 = vpop.f32.mrf.mxu0
    %v202 = vadd.f32 %v70, %v201
    %203 = vmatprep.mubr.f32.mxu0 0.0
    %204 = vmatmul.mubr.f32.gmra.mxu0 %v98
    %v205 = vpop.f32.mrf.mxu0
    %v206 = vadd.f32 %v66, %v205
    %v207 = vpop.f32.mrf.mxu0
    %v208 = vadd.f32 %v70, %v207
    %209 = vmatprep.mubr.f32.mxu0 0.0
    %210 = vmatmul.mubr.f32.gmra.mxu0 %v101
    %v211 = vpop.f32.mrf.mxu0
    %v212 = vadd.f32 %v66, %v211
    %v213 = vpop.f32.mrf.mxu0
    %v214 = vadd.f32 %v70, %v213
    %215 = vdwg.mxu0
    %216 = vmatprep.subr.mxu0 0.0
    %217 = vmatpush1.msra.mxu0 0.0
    %218 = vmatprep.subr.mxu0 0.0
    %219 = vmatpush1.msra.mxu0 0.0
    %220 = vmatprep.subr.mxu0 0.0
    %221 = vmatpush1.msra.mxu0 0.0
    %222 = vmatprep.subr.mxu0 0.0
    %223 = vmatpush1.msra.mxu0 0.0
    %224 = vmatprep.subr.mxu0 0.0
    %225 = vmatpush1.msra.mxu0 0.0
    %226 = vmatprep.subr.mxu0 0.0
    %227 = vmatpush1.msra.mxu0 0.0
    %228 = vmatprep.subr.mxu0 0.0
    %229 = vmatpush1.msra.mxu0 0.0
    %230 = vmatprep.subr.mxu0 0.0
    %231 = vmatpush1.msra.mxu0 0.0
    %232 = vmatprep.subr.mxu0 0.0
    %233 = vmatpush1.msra.mxu0 0.0
    %234 = vmatprep.subr.mxu0 0.0
    %235 = vmatpush1.msra.mxu0 0.0
    %236 = vmatprep.subr.mxu0 0.0
    %237 = vmatpush1.msra.mxu0 0.0
    %238 = vmatprep.subr.mxu0 0.0
    %239 = vmatpush1.msra.mxu0 0.0
    %240 = vmatprep.subr.mxu0 0.0
    %241 = vmatpush1.msra.mxu0 0.0
    %242 = vmatprep.subr.mxu0 0.0
    %243 = vmatpush1.msra.mxu0 0.0
    %244 = vmatprep.subr.mxu0 0.0
    %245 = vmatpush1.msra.mxu0 %v60
    %246 = vmatprep.subr.mxu0 0.0
    %247 = vmatpush1.msra.mxu0 %v57
    %248 = vmatprep.subr.mxu0 0.0
    %249 = vmatpush2.msra.mxu0 0.0
    %250 = vmatprep.subr.mxu0 0.0
    %251 = vmatpush2.msra.mxu0 0.0
    %252 = vmatprep.subr.mxu0 0.0
    %253 = vmatpush2.msra.mxu0 0.0
    %254 = vmatprep.subr.mxu0 0.0
    %255 = vmatpush2.msra.mxu0 0.0
    %256 = vmatprep.subr.mxu0 0.0
    %257 = vmatpush2.msra.mxu0 0.0
    %258 = vmatprep.subr.mxu0 0.0
    %259 = vmatpush2.msra.mxu0 0.0
    %260 = vmatprep.subr.mxu0 0.0
    %261 = vmatpush2.msra.mxu0 0.0
    %262 = vmatprep.subr.mxu0 0.0
    %263 = vmatpush2.msra.mxu0 0.0
    %264 = vmatprep.subr.mxu0 0.0
    %265 = vmatpush2.msra.mxu0 0.0
    %266 = vmatprep.subr.mxu0 0.0
    %267 = vmatpush2.msra.mxu0 0.0
    %268 = vmatprep.subr.mxu0 0.0
    %269 = vmatpush2.msra.mxu0 0.0
    %270 = vmatprep.subr.mxu0 0.0
    %271 = vmatpush2.msra.mxu0 0.0
    %272 = vmatprep.subr.mxu0 0.0
    %273 = vmatpush2.msra.mxu0 0.0
    %274 = vmatprep.subr.mxu0 0.0
    %275 = vmatpush2.msra.mxu0 0.0
    %276 = vmatprep.subr.mxu0 0.0
    %277 = vmatpush2.msra.mxu0 0.0
    %278 = vmatprep.subr.mxu0 0.0
    %279 = vmatpush2.msra.mxu0 0.0
    %280 = vmatprep.mubr.f32.mxu0 0.0
    %281 = vmatmul.mubr.f32.gmra.mxu0 %v80
    %v282 = vpop.f32.mrf.mxu0
    %v283 = vadd.f32 %v74, %v282
    %v284 = vpop.f32.mrf.mxu0
    %285 = vmatprep.mubr.f32.mxu0 0.0
    %286 = vmatmul.mubr.f32.gmra.mxu0 %v83
    %v287 = vpop.f32.mrf.mxu0
    %v288 = vadd.f32 %v74, %v287
    %v289 = vpop.f32.mrf.mxu0
    %290 = vmatprep.mubr.f32.mxu0 0.0
    %291 = vmatmul.mubr.f32.gmra.mxu0 %v86
    %v292 = vpop.f32.mrf.mxu0
    %v293 = vadd.f32 %v74, %v292
    %v294 = vpop.f32.mrf.mxu0
    %295 = vmatprep.mubr.f32.mxu0 0.0
    %296 = vmatmul.mubr.f32.gmra.mxu0 %v89
    %v297 = vpop.f32.mrf.mxu0
    %v298 = vadd.f32 %v74, %v297
    %v299 = vpop.f32.mrf.mxu0
    %300 = vmatprep.mubr.f32.mxu0 0.0
    %301 = vmatmul.mubr.f32.gmra.mxu0 %v92
    %v302 = vpop.f32.mrf.mxu0
    %v303 = vadd.f32 %v74, %v302
    %v304 = vpop.f32.mrf.mxu0
    %305 = vmatprep.mubr.f32.mxu0 0.0
    %306 = vmatmul.mubr.f32.gmra.mxu0 %v95
    %v307 = vpop.f32.mrf.mxu0
    %v308 = vadd.f32 %v74, %v307
    %v309 = vpop.f32.mrf.mxu0
    %310 = vmatprep.mubr.f32.mxu0 0.0
    %311 = vmatmul.mubr.f32.gmra.mxu0 %v98
    %v312 = vpop.f32.mrf.mxu0
    %v313 = vadd.f32 %v74, %v312
    %v314 = vpop.f32.mrf.mxu0
    %315 = vmatprep.mubr.f32.mxu0 0.0
    %316 = vmatmul.mubr.f32.gmra.mxu0 %v101
    %v317 = vpop.f32.mrf.mxu0
    %v318 = vadd.f32 %v74, %v317
    %v319 = vpop.f32.mrf.mxu0
    %320 = vdwg.mxu0
    %321 = vst [vmem:[#allocation3] sm:$0xff] %v170
    %322 = vst [vmem:[#allocation3 + $0x8] sm:$0xff] %v172
    %323 = vst [vmem:[#allocation3 + $0x10] sm:$0xff] %v283
    %324 = vst [vmem:[#allocation3 + $0x18] sm:$0xff] %v176
    %325 = vst [vmem:[#allocation3 + $0x20] sm:$0xff] %v178
    %326 = vst [vmem:[#allocation3 + $0x28] sm:$0xff] %v288
    %327 = vst [vmem:[#allocation3 + $0x30] sm:$0xff] %v182
    %328 = vst [vmem:[#allocation3 + $0x38] sm:$0xff] %v184
    %329 = vst [vmem:[#allocation3 + $0x40] sm:$0xff] %v293
    %330 = vst [vmem:[#allocation3 + $0x48] sm:$0xff] %v188
    %331 = vst [vmem:[#allocation3 + $0x50] sm:$0xff] %v190
    %332 = vst [vmem:[#allocation3 + $0x58] sm:$0xff] %v298
    %333 = vst [vmem:[#allocation3 + $0x60] sm:$0xff] %v194
    %334 = vst [vmem:[#allocation3 + $0x68] sm:$0xff] %v196
    %335 = vst [vmem:[#allocation3 + $0x70] sm:$0xff] %v303
    %336 = vst [vmem:[#allocation3 + $0x78] sm:$0xff] %v200
    %337 = vst [vmem:[#allocation3 + $0x80] sm:$0xff] %v202
    %338 = vst [vmem:[#allocation3 + $0x88] sm:$0xff] %v308
    %339 = vst [vmem:[#allocation3 + $0x90] sm:$0xff] %v206
    %340 = vst [vmem:[#allocation3 + $0x98] sm:$0xff] %v208
    %341 = vst [vmem:[#allocation3 + $0xa0] sm:$0xff] %v313
    %342 = vst [vmem:[#allocation3 + $0xa8] sm:$0xff] %v212
    %343 = vst [vmem:[#allocation3 + $0xb0] sm:$0xff] %v214
    %344 = vst [vmem:[#allocation3 + $0xb8] sm:$0xff] %v318
    %v345 = vld [vmem:[%s7] sm:$0xff]
    %v346 = vld [vmem:[#allocation2] sm:$0xff]
    %s347 = smul.u32 0, 3
    %s348 = smul.addr %s347, 8
    %s349 = scalar_lea.vmem [#allocation3], %s348
    %v350 = vld [vmem:[%s349] sm:$0xff]
    %v351 = vld [vmem:[%s349 + $0x8] sm:$0xff]
    %v352 = vld [vmem:[%s349 + $0x10] sm:$0xff]
    %v353 = vld [vmem:[%s5] sm:$0xff]
    %v354 = vld [vmem:[%s5 + $0x8] sm:$0xff]
    %v355 = vld [vmem:[%s5 + $0x10] sm:$0xff]
    %v356 = vld [vmem:[%s5 + $0x18] sm:$0xff]
    %v357 = vld [vmem:[%s5 + $0x20] sm:$0xff]
    %v358 = vld [vmem:[%s5 + $0x28] sm:$0xff]
    %v359 = vld [vmem:[%s5 + $0x30] sm:$0xff]
    %v360 = vld [vmem:[%s5 + $0x38] sm:$0xff]
    %v361 = vld [vmem:[%s5 + $0x40] sm:$0xff]
    %v362 = vld [vmem:[%s5 + $0x48] sm:$0xff]
    %v363 = vld [vmem:[%s5 + $0x50] sm:$0xff]
    %v364 = vld [vmem:[%s5 + $0x58] sm:$0xff]
    %v365 = vld [vmem:[%s5 + $0x60] sm:$0xff]
    %v366 = vld [vmem:[%s5 + $0x68] sm:$0xff]
    %v367 = vld [vmem:[%s5 + $0x70] sm:$0xff]
    %v368 = vld [vmem:[%s5 + $0x78] sm:$0xff]
    %v369 = vld [vmem:[%s5 + $0x80] sm:$0xff]
    %v370 = vld [vmem:[%s5 + $0x88] sm:$0xff]
    %v371 = vld [vmem:[%s5 + $0x90] sm:$0xff]
    %v372 = vld [vmem:[%s5 + $0x98] sm:$0xff]
    %v373 = vld [vmem:[%s5 + $0xa0] sm:$0xff]
    %v374 = vld [vmem:[%s5 + $0xa8] sm:$0xff]
    %v375 = vld [vmem:[%s5 + $0xb0] sm:$0xff]
    %v376 = vld [vmem:[%s5 + $0xb8] sm:$0xff]
    %v377 = vld [vmem:[%s5 + $0xc0] sm:$0xff]
    %v378 = vld [vmem:[%s5 + $0xc8] sm:$0xff]
    %v379 = vld [vmem:[%s5 + $0xd0] sm:$0xff]
    %v380 = vld [vmem:[%s5 + $0xd8] sm:$0xff]
    %v381 = vld [vmem:[%s5 + $0xe0] sm:$0xff]
    %v382 = vld [vmem:[%s5 + $0xe8] sm:$0xff]
    %v383 = vld [vmem:[%s5 + $0xf0] sm:$0xff]
    %v384 = vld [vmem:[%s5 + $0xf8] sm:$0xff]
    %v385 = vld [vmem:[%s5 + $0x100] sm:$0xff]
    %v386 = vld [vmem:[%s5 + $0x108] sm:$0xff]
    %v387 = vld [vmem:[%s5 + $0x110] sm:$0xff]
    %v388 = vld [vmem:[%s5 + $0x118] sm:$0xff]
    %v389 = vld [vmem:[%s5 + $0x120] sm:$0xff]
    %v390 = vld [vmem:[%s5 + $0x128] sm:$0xff]
    %v391 = vld [vmem:[%s5 + $0x130] sm:$0xff]
    %v392 = vld [vmem:[%s5 + $0x138] sm:$0xff]
    %v393 = vld [vmem:[%s5 + $0x140] sm:$0xff]
    %v394 = vld [vmem:[%s5 + $0x148] sm:$0xff]
    %v395 = vld [vmem:[%s5 + $0x150] sm:$0xff]
    %v396 = vld [vmem:[%s5 + $0x158] sm:$0xff]
    %v397 = vld [vmem:[%s5 + $0x160] sm:$0xff]
    %v398 = vld [vmem:[%s5 + $0x168] sm:$0xff]
    %v399 = vld [vmem:[%s5 + $0x170] sm:$0xff]
    %v400 = vld [vmem:[%s5 + $0x178] sm:$0xff]
    %401 = vmatprep.subr.mxu0 %v399
    %402 = vmatpush1.msra.mxu0 %v398
    %403 = vmatprep.subr.mxu0 %v396
    %404 = vmatpush1.msra.mxu0 %v395
    %405 = vmatprep.subr.mxu0 %v393
    %406 = vmatpush1.msra.mxu0 %v392
    %407 = vmatprep.subr.mxu0 %v390
    %408 = vmatpush1.msra.mxu0 %v389
    %409 = vmatprep.subr.mxu0 %v387
    %410 = vmatpush1.msra.mxu0 %v386
    %411 = vmatprep.subr.mxu0 %v384
    %412 = vmatpush1.msra.mxu0 %v383
    %413 = vmatprep.subr.mxu0 %v381
    %414 = vmatpush1.msra.mxu0 %v380
    %415 = vmatprep.subr.mxu0 %v378
    %416 = vmatpush1.msra.mxu0 %v377
    %417 = vmatprep.subr.mxu0 %v375
    %418 = vmatpush1.msra.mxu0 %v374
    %419 = vmatprep.subr.mxu0 %v372
    %420 = vmatpush1.msra.mxu0 %v371
    %421 = vmatprep.subr.mxu0 %v369
    %422 = vmatpush1.msra.mxu0 %v368
    %423 = vmatprep.subr.mxu0 %v366
    %424 = vmatpush1.msra.mxu0 %v365
    %425 = vmatprep.subr.mxu0 %v363
    %426 = vmatpush1.msra.mxu0 %v362
    %427 = vmatprep.subr.mxu0 %v360
    %428 = vmatpush1.msra.mxu0 %v359
    %429 = vmatprep.subr.mxu0 %v357
    %430 = vmatpush1.msra.mxu0 %v356
    %431 = vmatprep.subr.mxu0 %v354
    %432 = vmatpush1.msra.mxu0 %v353
    %433 = vmatprep.subr.mxu0 0.0
    %434 = vmatpush2.msra.mxu0 0.0
    %435 = vmatprep.subr.mxu0 0.0
    %436 = vmatpush2.msra.mxu0 0.0
    %437 = vmatprep.subr.mxu0 0.0
    %438 = vmatpush2.msra.mxu0 0.0
    %439 = vmatprep.subr.mxu0 0.0
    %440 = vmatpush2.msra.mxu0 0.0
    %441 = vmatprep.subr.mxu0 0.0
    %442 = vmatpush2.msra.mxu0 0.0
    %443 = vmatprep.subr.mxu0 0.0
    %444 = vmatpush2.msra.mxu0 0.0
    %445 = vmatprep.subr.mxu0 0.0
    %446 = vmatpush2.msra.mxu0 0.0
    %447 = vmatprep.subr.mxu0 0.0
    %448 = vmatpush2.msra.mxu0 0.0
    %449 = vmatprep.subr.mxu0 0.0
    %450 = vmatpush2.msra.mxu0 0.0
    %451 = vmatprep.subr.mxu0 0.0
    %452 = vmatpush2.msra.mxu0 0.0
    %453 = vmatprep.subr.mxu0 0.0
    %454 = vmatpush2.msra.mxu0 0.0
    %455 = vmatprep.subr.mxu0 0.0
    %456 = vmatpush2.msra.mxu0 0.0
    %457 = vmatprep.subr.mxu0 0.0
    %458 = vmatpush2.msra.mxu0 0.0
    %459 = vmatprep.subr.mxu0 0.0
    %460 = vmatpush2.msra.mxu0 0.0
    %461 = vmatprep.subr.mxu0 0.0
    %462 = vmatpush2.msra.mxu0 0.0
    %463 = vmatprep.subr.mxu0 0.0
    %464 = vmatpush2.msra.mxu0 0.0
    %465 = vmatprep.mubr.f32.mxu0 0.0
    %466 = vmatmul.mubr.f32.gmra.mxu0 %v346
    %v467 = vpop.f32.mrf.mxu0
    %v468 = vadd.f32 0.0, %v467
    %v469 = vpop.f32.mrf.mxu0
    %v470 = vadd.f32 0.0, %v469
    %471 = vdwg.mxu0
    %472 = vmatprep.subr.mxu0 0.0
    %473 = vmatpush1.msra.mxu0 %v400
    %474 = vmatprep.subr.mxu0 0.0
    %475 = vmatpush1.msra.mxu0 %v397
    %476 = vmatprep.subr.mxu0 0.0
    %477 = vmatpush1.msra.mxu0 %v394
    %478 = vmatprep.subr.mxu0 0.0
    %479 = vmatpush1.msra.mxu0 %v391
    %480 = vmatprep.subr.mxu0 0.0
    %481 = vmatpush1.msra.mxu0 %v388
    %482 = vmatprep.subr.mxu0 0.0
    %483 = vmatpush1.msra.mxu0 %v385
    %484 = vmatprep.subr.mxu0 0.0
    %485 = vmatpush1.msra.mxu0 %v382
    %486 = vmatprep.subr.mxu0 0.0
    %487 = vmatpush1.msra.mxu0 %v379
    %488 = vmatprep.subr.mxu0 0.0
    %489 = vmatpush1.msra.mxu0 %v376
    %490 = vmatprep.subr.mxu0 0.0
    %491 = vmatpush1.msra.mxu0 %v373
    %492 = vmatprep.subr.mxu0 0.0
    %493 = vmatpush1.msra.mxu0 %v370
    %494 = vmatprep.subr.mxu0 0.0
    %495 = vmatpush1.msra.mxu0 %v367
    %496 = vmatprep.subr.mxu0 0.0
    %497 = vmatpush1.msra.mxu0 %v364
    %498 = vmatprep.subr.mxu0 0.0
    %499 = vmatpush1.msra.mxu0 %v361
    %500 = vmatprep.subr.mxu0 0.0
    %501 = vmatpush1.msra.mxu0 %v358
    %502 = vmatprep.subr.mxu0 0.0
    %503 = vmatpush1.msra.mxu0 %v355
    %504 = vmatprep.subr.mxu0 0.0
    %505 = vmatpush2.msra.mxu0 0.0
    %506 = vmatprep.subr.mxu0 0.0
    %507 = vmatpush2.msra.mxu0 0.0
    %508 = vmatprep.subr.mxu0 0.0
    %509 = vmatpush2.msra.mxu0 0.0
    %510 = vmatprep.subr.mxu0 0.0
    %511 = vmatpush2.msra.mxu0 0.0
    %512 = vmatprep.subr.mxu0 0.0
    %513 = vmatpush2.msra.mxu0 0.0
    %514 = vmatprep.subr.mxu0 0.0
    %515 = vmatpush2.msra.mxu0 0.0
    %516 = vmatprep.subr.mxu0 0.0
    %517 = vmatpush2.msra.mxu0 0.0
    %518 = vmatprep.subr.mxu0 0.0
    %519 = vmatpush2.msra.mxu0 0.0
    %520 = vmatprep.subr.mxu0 0.0
    %521 = vmatpush2.msra.mxu0 0.0
    %522 = vmatprep.subr.mxu0 0.0
    %523 = vmatpush2.msra.mxu0 0.0
    %524 = vmatprep.subr.mxu0 0.0
    %525 = vmatpush2.msra.mxu0 0.0
    %526 = vmatprep.subr.mxu0 0.0
    %527 = vmatpush2.msra.mxu0 0.0
    %528 = vmatprep.subr.mxu0 0.0
    %529 = vmatpush2.msra.mxu0 0.0
    %530 = vmatprep.subr.mxu0 0.0
    %531 = vmatpush2.msra.mxu0 0.0
    %532 = vmatprep.subr.mxu0 0.0
    %533 = vmatpush2.msra.mxu0 0.0
    %534 = vmatprep.subr.mxu0 0.0
    %535 = vmatpush2.msra.mxu0 0.0
    %536 = vmatprep.mubr.f32.mxu0 0.0
    %537 = vmatmul.mubr.f32.gmra.mxu0 %v346
    %v538 = vpop.f32.mrf.mxu0
    %v539 = vadd.f32 0.0, %v538
    %v540 = vpop.f32.mrf.mxu0
    %541 = vdwg.mxu0
    %v542 = vadd.f32 %v350, %v468
    %v543 = vmul.f32 %v542, 0.5
    %v544 = vtanh.pop %v543
    %v545 = vadd.f32 %v544, 1.0
    %v546 = vmul.f32 %v545, 0.5
    %v547 = vadd.f32 %v351, %v470
    %v548 = vmul.f32 %v547, 0.5
    %v549 = vtanh.pop %v548
    %v550 = vadd.f32 %v549, 1.0
    %v551 = vmul.f32 %v550, 0.5
    %v552 = vld [vmem:[%s6] sm:$0x1]
    %v554 = vlaneseq
    %v555 = vshrl.u32 %v554, 7
    %v556 = vsub.s32 0, %v555
    %v557 = vrot.slane %v552, %v556
    %v559 = vadd.f32 %v539, %v557
    %v560 = vmul.f32 %v546, %v559
    %v561 = vadd.f32 %v352, %v560
    %v562 = vtanh.pop %v561
    %v563 = vsub.f32 %v346, %v562
    %v564 = vmul.f32 %v551, %v563
    %v565 = vadd.f32 %v562, %v564
    %v566 = vstv %s35
    %vm567 = vcmp.lt.s32.totalorder %v566, %v345
    %v568 = vsel %vm567, 1, 0
    %569 = vset.pattern.permute.xlu0 0
    %570 = vperm.xlu0 %569, %v568
    %v571 = vpop.permute.xlu0 %570
    %vm572 = vcmp.eq.s32.totalorder %v571, 1
    %v573 = vsel %vm572, %v565, %v346
    %v574 = vsel %vm572, %v565, -1.5
    %575 = vst [vmem:[%s8] sm:$0xff] %v574
    %s576 = smul.u32 1, 3
    %s577 = smul.addr %s576, 8
    %s578 = scalar_lea.vmem [#allocation3], %s577
    %v579 = vld [vmem:[%s578] sm:$0xff]
    %v580 = vld [vmem:[%s578 + $0x8] sm:$0xff]
    %v581 = vld [vmem:[%s578 + $0x10] sm:$0xff]
    %v582 = vld [vmem:[%s5] sm:$0xff]
    %v583 = vld [vmem:[%s5 + $0x8] sm:$0xff]
    %v584 = vld [vmem:[%s5 + $0x10] sm:$0xff]
    %v585 = vld [vmem:[%s5 + $0x18] sm:$0xff]
    %v586 = vld [vmem:[%s5 + $0x20] sm:$0xff]
    %v587 = vld [vmem:[%s5 + $0x28] sm:$0xff]
    %v588 = vld [vmem:[%s5 + $0x30] sm:$0xff]
    %v589 = vld [vmem:[%s5 + $0x38] sm:$0xff]
    %v590 = vld [vmem:[%s5 + $0x40] sm:$0xff]
    %v591 = vld [vmem:[%s5 + $0x48] sm:$0xff]
    %v592 = vld [vmem:[%s5 + $0x50] sm:$0xff]
    %v593 = vld [vmem:[%s5 + $0x58] sm:$0xff]
    %v594 = vld [vmem:[%s5 + $0x60] sm:$0xff]
    %v595 = vld [vmem:[%s5 + $0x68] sm:$0xff]
    %v596 = vld [vmem:[%s5 + $0x70] sm:$0xff]
    %v597 = vld [vmem:[%s5 + $0x78] sm:$0xff]
    %v598 = vld [vmem:[%s5 + $0x80] sm:$0xff]
    %v599 = vld [vmem:[%s5 + $0x88] sm:$0xff]
    %v600 = vld [vmem:[%s5 + $0x90] sm:$0xff]
    %v601 = vld [vmem:[%s5 + $0x98] sm:$0xff]
    %v602 = vld [vmem:[%s5 + $0xa0] sm:$0xff]
    %v603 = vld [vmem:[%s5 + $0xa8] sm:$0xff]
    %v604 = vld [vmem:[%s5 + $0xb0] sm:$0xff]
    %v605 = vld [vmem:[%s5 + $0xb8] sm:$0xff]
    %v606 = vld [vmem:[%s5 + $0xc0] sm:$0xff]
    %v607 = vld [vmem:[%s5 + $0xc8] sm:$0xff]
    %v608 = vld [vmem:[%s5 + $0xd0] sm:$0xff]
    %v609 = vld [vmem:[%s5 + $0xd8] sm:$0xff]
    %v610 = vld [vmem:[%s5 + $0xe0] sm:$0xff]
    %v611 = vld [vmem:[%s5 + $0xe8] sm:$0xff]
    %v612 = vld [vmem:[%s5 + $0xf0] sm:$0xff]
    %v613 = vld [vmem:[%s5 + $0xf8] sm:$0xff]
    %v614 = vld [vmem:[%s5 + $0x100] sm:$0xff]
    %v615 = vld [vmem:[%s5 + $0x108] sm:$0xff]
    %v616 = vld [vmem:[%s5 + $0x110] sm:$0xff]
    %v617 = vld [vmem:[%s5 + $0x118] sm:$0xff]
    %v618 = vld [vmem:[%s5 + $0x120] sm:$0xff]
    %v619 = vld [vmem:[%s5 + $0x128] sm:$0xff]
    %v620 = vld [vmem:[%s5 + $0x130] sm:$0xff]
    %v621 = vld [vmem:[%s5 + $0x138] sm:$0xff]
    %v622 = vld [vmem:[%s5 + $0x140] sm:$0xff]
    %v623 = vld [vmem:[%s5 + $0x148] sm:$0xff]
    %v624 = vld [vmem:[%s5 + $0x150] sm:$0xff]
    %v625 = vld [vmem:[%s5 + $0x158] sm:$0xff]
    %v626 = vld [vmem:[%s5 + $0x160] sm:$0xff]
    %v627 = vld [vmem:[%s5 + $0x168] sm:$0xff]
    %v628 = vld [vmem:[%s5 + $0x170] sm:$0xff]
    %v629 = vld [vmem:[%s5 + $0x178] sm:$0xff]
    %630 = vmatprep.subr.mxu0 %v628
    %631 = vmatpush1.msra.mxu0 %v627
    %632 = vmatprep.subr.mxu0 %v625
    %633 = vmatpush1.msra.mxu0 %v624
    %634 = vmatprep.subr.mxu0 %v622
    %635 = vmatpush1.msra.mxu0 %v621
    %636 = vmatprep.subr.mxu0 %v619
    %637 = vmatpush1.msra.mxu0 %v618
    %638 = vmatprep.subr.mxu0 %v616
    %639 = vmatpush1.msra.mxu0 %v615
    %640 = vmatprep.subr.mxu0 %v613
    %641 = vmatpush1.msra.mxu0 %v612
    %642 = vmatprep.subr.mxu0 %v610
    %643 = vmatpush1.msra.mxu0 %v609
    %644 = vmatprep.subr.mxu0 %v607
    %645 = vmatpush1.msra.mxu0 %v606
    %646 = vmatprep.subr.mxu0 %v604
    %647 = vmatpush1.msra.mxu0 %v603
    %648 = vmatprep.subr.mxu0 %v601
    %649 = vmatpush1.msra.mxu0 %v600
    %650 = vmatprep.subr.mxu0 %v598
    %651 = vmatpush1.msra.mxu0 %v597
    %652 = vmatprep.subr.mxu0 %v595
    %653 = vmatpush1.msra.mxu0 %v594
    %654 = vmatprep.subr.mxu0 %v592
    %655 = vmatpush1.msra.mxu0 %v591
    %656 = vmatprep.subr.mxu0 %v589
    %657 = vmatpush1.msra.mxu0 %v588
    %658 = vmatprep.subr.mxu0 %v586
    %659 = vmatpush1.msra.mxu0 %v585
    %660 = vmatprep.subr.mxu0 %v583
    %661 = vmatpush1.msra.mxu0 %v582
    %662 = vmatprep.subr.mxu0 0.0
    %663 = vmatpush2.msra.mxu0 0.0
    %664 = vmatprep.subr.mxu0 0.0
    %665 = vmatpush2.msra.mxu0 0.0
    %666 = vmatprep.subr.mxu0 0.0
    %667 = vmatpush2.msra.mxu0 0.0
    %668 = vmatprep.subr.mxu0 0.0
    %669 = vmatpush2.msra.mxu0 0.0
    %670 = vmatprep.subr.mxu0 0.0
    %671 = vmatpush2.msra.mxu0 0.0
    %672 = vmatprep.subr.mxu0 0.0
    %673 = vmatpush2.msra.mxu0 0.0
    %674 = vmatprep.subr.mxu0 0.0
    %675 = vmatpush2.msra.mxu0 0.0
    %676 = vmatprep.subr.mxu0 0.0
    %677 = vmatpush2.msra.mxu0 0.0
    %678 = vmatprep.subr.mxu0 0.0
    %679 = vmatpush2.msra.mxu0 0.0
    %680 = vmatprep.subr.mxu0 0.0
    %681 = vmatpush2.msra.mxu0 0.0
    %682 = vmatprep.subr.mxu0 0.0
    %683 = vmatpush2.msra.mxu0 0.0
    %684 = vmatprep.subr.mxu0 0.0
    %685 = vmatpush2.msra.mxu0 0.0
    %686 = vmatprep.subr.mxu0 0.0
    %687 = vmatpush2.msra.mxu0 0.0
    %688 = vmatprep.subr.mxu0 0.0
    %689 = vmatpush2.msra.mxu0 0.0
    %690 = vmatprep.subr.mxu0 0.0
    %691 = vmatpush2.msra.mxu0 0.0
    %692 = vmatprep.subr.mxu0 0.0
    %693 = vmatpush2.msra.mxu0 0.0
    %694 = vmatprep.mubr.f32.mxu0 0.0
    %695 = vmatmul.mubr.f32.gmra.mxu0 %v573
    %v696 = vpop.f32.mrf.mxu0
    %v697 = vadd.f32 0.0, %v696
    %v698 = vpop.f32.mrf.mxu0
    %v699 = vadd.f32 0.0, %v698
    %700 = vdwg.mxu0
    %701 = vmatprep.subr.mxu0 0.0
    %702 = vmatpush1.msra.mxu0 %v629
    %703 = vmatprep.subr.mxu0 0.0
    %704 = vmatpush1.msra.mxu0 %v626
    %705 = vmatprep.subr.mxu0 0.0
    %706 = vmatpush1.msra.mxu0 %v623
    %707 = vmatprep.subr.mxu0 0.0
    %708 = vmatpush1.msra.mxu0 %v620
    %709 = vmatprep.subr.mxu0 0.0
    %710 = vmatpush1.msra.mxu0 %v617
    %711 = vmatprep.subr.mxu0 0.0
    %712 = vmatpush1.msra.mxu0 %v614
    %713 = vmatprep.subr.mxu0 0.0
    %714 = vmatpush1.msra.mxu0 %v611
    %715 = vmatprep.subr.mxu0 0.0
    %716 = vmatpush1.msra.mxu0 %v608
    %717 = vmatprep.subr.mxu0 0.0
    %718 = vmatpush1.msra.mxu0 %v605
    %719 = vmatprep.subr.mxu0 0.0
    %720 = vmatpush1.msra.mxu0 %v602
    %721 = vmatprep.subr.mxu0 0.0
    %722 = vmatpush1.msra.mxu0 %v599
    %723 = vmatprep.subr.mxu0 0.0
    %724 = vmatpush1.msra.mxu0 %v596
    %725 = vmatprep.subr.mxu0 0.0
    %726 = vmatpush1.msra.mxu0 %v593
    %727 = vmatprep.subr.mxu0 0.0
    %728 = vmatpush1.msra.mxu0 %v590
    %729 = vmatprep.subr.mxu0 0.0
    %730 = vmatpush1.msra.mxu0 %v587
    %731 = vmatprep.subr.mxu0 0.0
    %732 = vmatpush1.msra.mxu0 %v584
    %733 = vmatprep.subr.mxu0 0.0
    %734 = vmatpush2.msra.mxu0 0.0
    %735 = vmatprep.subr.mxu0 0.0
    %736 = vmatpush2.msra.mxu0 0.0
    %737 = vmatprep.subr.mxu0 0.0
    %738 = vmatpush2.msra.mxu0 0.0
    %739 = vmatprep.subr.mxu0 0.0
    %740 = vmatpush2.msra.mxu0 0.0
    %741 = vmatprep.subr.mxu0 0.0
    %742 = vmatpush2.msra.mxu0 0.0
    %743 = vmatprep.subr.mxu0 0.0
    %744 = vmatpush2.msra.mxu0 0.0
    %745 = vmatprep.subr.mxu0 0.0
    %746 = vmatpush2.msra.mxu0 0.0
    %747 = vmatprep.subr.mxu0 0.0
    %748 = vmatpush2.msra.mxu0 0.0
    %749 = vmatprep.subr.mxu0 0.0
    %750 = vmatpush2.msra.mxu0 0.0
    %751 = vmatprep.subr.mxu0 0.0
    %752 = vmatpush2.msra.mxu0 0.0
    %753 = vmatprep.subr.mxu0 0.0
    %754 = vmatpush2.msra.mxu0 0.0
    %755 = vmatprep.subr.mxu0 0.0
    %756 = vmatpush2.msra.mxu0 0.0
    %757 = vmatprep.subr.mxu0 0.0
    %758 = vmatpush2.msra.mxu0 0.0
    %759 = vmatprep.subr.mxu0 0.0
    %760 = vmatpush2.msra.mxu0 0.0
    %761 = vmatprep.subr.mxu0 0.0
    %762 = vmatpush2.msra.mxu0 0.0
    %763 = vmatprep.subr.mxu0 0.0
    %764 = vmatpush2.msra.mxu0 0.0
    %765 = vmatprep.mubr.f32.mxu0 0.0
    %766 = vmatmul.mubr.f32.gmra.mxu0 %v573
    %v767 = vpop.f32.mrf.mxu0
    %v768 = vadd.f32 0.0, %v767
    %v769 = vpop.f32.mrf.mxu0
    %770 = vdwg.mxu0
    %v771 = vadd.f32 %v579, %v697
    %v772 = vmul.f32 %v771, 0.5
    %v773 = vtanh.pop %v772
    %v774 = vadd.f32 %v773, 1.0
    %v775 = vmul.f32 %v774, 0.5
    %v776 = vadd.f32 %v580, %v699
    %v777 = vmul.f32 %v776, 0.5
    %v778 = vtanh.pop %v777
    %v779 = vadd.f32 %v778, 1.0
    %v780 = vmul.f32 %v779, 0.5
    %v781 = vld [vmem:[%s6] sm:$0x1]
    %v783 = vlaneseq
    %v784 = vshrl.u32 %v783, 7
    %v785 = vsub.s32 0, %v784
    %v786 = vrot.slane %v781, %v785
    %v788 = vadd.f32 %v768, %v786
    %v789 = vmul.f32 %v775, %v788
    %v790 = vadd.f32 %v581, %v789
    %v791 = vtanh.pop %v790
    %v792 = vsub.f32 %v573, %v791
    %v793 = vmul.f32 %v780, %v792
    %v794 = vadd.f32 %v791, %v793
    %s795 = sadd.s32 %s35, 1
    %v796 = vstv %s795
    %vm797 = vcmp.lt.s32.totalorder %v796, %v345
    %v798 = vsel %vm797, 1, 0
    %799 = vset.pattern.permute.xlu0 0
    %800 = vperm.xlu0 %799, %v798
    %v801 = vpop.permute.xlu0 %800
    %vm802 = vcmp.eq.s32.totalorder %v801, 1
    %v803 = vsel %vm802, %v794, %v573
    %v804 = vsel %vm802, %v794, -1.5
    %s805 = scalar_lea.vmem %s8, 8
    %806 = vst [vmem:[%s805] sm:$0xff] %v804
    %s807 = smul.u32 2, 3
    %s808 = smul.addr %s807, 8
    %s809 = scalar_lea.vmem [#allocation3], %s808
    %v810 = vld [vmem:[%s809] sm:$0xff]
    %v811 = vld [vmem:[%s809 + $0x8] sm:$0xff]
    %v812 = vld [vmem:[%s809 + $0x10] sm:$0xff]
    %v813 = vld [vmem:[%s5] sm:$0xff]
    %v814 = vld [vmem:[%s5 + $0x8] sm:$0xff]
    %v815 = vld [vmem:[%s5 + $0x10] sm:$0xff]
    %v816 = vld [vmem:[%s5 + $0x18] sm:$0xff]
    %v817 = vld [vmem:[%s5 + $0x20] sm:$0xff]
    %v818 = vld [vmem:[%s5 + $0x28] sm:$0xff]
    %v819 = vld [vmem:[%s5 + $0x30] sm:$0xff]
    %v820 = vld [vmem:[%s5 + $0x38] sm:$0xff]
    %v821 = vld [vmem:[%s5 + $0x40] sm:$0xff]
    %v822 = vld [vmem:[%s5 + $0x48] sm:$0xff]
    %v823 = vld [vmem:[%s5 + $0x50] sm:$0xff]
    %v824 = vld [vmem:[%s5 + $0x58] sm:$0xff]
    %v825 = vld [vmem:[%s5 + $0x60] sm:$0xff]
    %v826 = vld [vmem:[%s5 + $0x68] sm:$0xff]
    %v827 = vld [vmem:[%s5 + $0x70] sm:$0xff]
    %v828 = vld [vmem:[%s5 + $0x78] sm:$0xff]
    %v829 = vld [vmem:[%s5 + $0x80] sm:$0xff]
    %v830 = vld [vmem:[%s5 + $0x88] sm:$0xff]
    %v831 = vld [vmem:[%s5 + $0x90] sm:$0xff]
    %v832 = vld [vmem:[%s5 + $0x98] sm:$0xff]
    %v833 = vld [vmem:[%s5 + $0xa0] sm:$0xff]
    %v834 = vld [vmem:[%s5 + $0xa8] sm:$0xff]
    %v835 = vld [vmem:[%s5 + $0xb0] sm:$0xff]
    %v836 = vld [vmem:[%s5 + $0xb8] sm:$0xff]
    %v837 = vld [vmem:[%s5 + $0xc0] sm:$0xff]
    %v838 = vld [vmem:[%s5 + $0xc8] sm:$0xff]
    %v839 = vld [vmem:[%s5 + $0xd0] sm:$0xff]
    %v840 = vld [vmem:[%s5 + $0xd8] sm:$0xff]
    %v841 = vld [vmem:[%s5 + $0xe0] sm:$0xff]
    %v842 = vld [vmem:[%s5 + $0xe8] sm:$0xff]
    %v843 = vld [vmem:[%s5 + $0xf0] sm:$0xff]
    %v844 = vld [vmem:[%s5 + $0xf8] sm:$0xff]
    %v845 = vld [vmem:[%s5 + $0x100] sm:$0xff]
    %v846 = vld [vmem:[%s5 + $0x108] sm:$0xff]
    %v847 = vld [vmem:[%s5 + $0x110] sm:$0xff]
    %v848 = vld [vmem:[%s5 + $0x118] sm:$0xff]
    %v849 = vld [vmem:[%s5 + $0x120] sm:$0xff]
    %v850 = vld [vmem:[%s5 + $0x128] sm:$0xff]
    %v851 = vld [vmem:[%s5 + $0x130] sm:$0xff]
    %v852 = vld [vmem:[%s5 + $0x138] sm:$0xff]
    %v853 = vld [vmem:[%s5 + $0x140] sm:$0xff]
    %v854 = vld [vmem:[%s5 + $0x148] sm:$0xff]
    %v855 = vld [vmem:[%s5 + $0x150] sm:$0xff]
    %v856 = vld [vmem:[%s5 + $0x158] sm:$0xff]
    %v857 = vld [vmem:[%s5 + $0x160] sm:$0xff]
    %v858 = vld [vmem:[%s5 + $0x168] sm:$0xff]
    %v859 = vld [vmem:[%s5 + $0x170] sm:$0xff]
    %v860 = vld [vmem:[%s5 + $0x178] sm:$0xff]
    %861 = vmatprep.subr.mxu0 %v859
    %862 = vmatpush1.msra.mxu0 %v858
    %863 = vmatprep.subr.mxu0 %v856
    %864 = vmatpush1.msra.mxu0 %v855
    %865 = vmatprep.subr.mxu0 %v853
    %866 = vmatpush1.msra.mxu0 %v852
    %867 = vmatprep.subr.mxu0 %v850
    %868 = vmatpush1.msra.mxu0 %v849
    %869 = vmatprep.subr.mxu0 %v847
    %870 = vmatpush1.msra.mxu0 %v846
    %871 = vmatprep.subr.mxu0 %v844
    %872 = vmatpush1.msra.mxu0 %v843
    %873 = vmatprep.subr.mxu0 %v841
    %874 = vmatpush1.msra.mxu0 %v840
    %875 = vmatprep.subr.mxu0 %v838
    %876 = vmatpush1.msra.mxu0 %v837
    %877 = vmatprep.subr.mxu0 %v835
    %878 = vmatpush1.msra.mxu0 %v834
    %879 = vmatprep.subr.mxu0 %v832
    %880 = vmatpush1.msra.mxu0 %v831
    %881 = vmatprep.subr.mxu0 %v829
    %882 = vmatpush1.msra.mxu0 %v828
    %883 = vmatprep.subr.mxu0 %v826
    %884 = vmatpush1.msra.mxu0 %v825
    %885 = vmatprep.subr.mxu0 %v823
    %886 = vmatpush1.msra.mxu0 %v822
    %887 = vmatprep.subr.mxu0 %v820
    %888 = vmatpush1.msra.mxu0 %v819
    %889 = vmatprep.subr.mxu0 %v817
    %890 = vmatpush1.msra.mxu0 %v816
    %891 = vmatprep.subr.mxu0 %v814
    %892 = vmatpush1.msra.mxu0 %v813
    %893 = vmatprep.subr.mxu0 0.0
    %894 = vmatpush2.msra.mxu0 0.0
    %895 = vmatprep.subr.mxu0 0.0
    %896 = vmatpush2.msra.mxu0 0.0
    %897 = vmatprep.subr.mxu0 0.0
    %898 = vmatpush2.msra.mxu0 0.0
    %899 = vmatprep.subr.mxu0 0.0
    %900 = vmatpush2.msra.mxu0 0.0
    %901 = vmatprep.subr.mxu0 0.0
    %902 = vmatpush2.msra.mxu0 0.0
    %903 = vmatprep.subr.mxu0 0.0
    %904 = vmatpush2.msra.mxu0 0.0
    %905 = vmatprep.subr.mxu0 0.0
    %906 = vmatpush2.msra.mxu0 0.0
    %907 = vmatprep.subr.mxu0 0.0
    %908 = vmatpush2.msra.mxu0 0.0
    %909 = vmatprep.subr.mxu0 0.0
    %910 = vmatpush2.msra.mxu0 0.0
    %911 = vmatprep.subr.mxu0 0.0
    %912 = vmatpush2.msra.mxu0 0.0
    %913 = vmatprep.subr.mxu0 0.0
    %914 = vmatpush2.msra.mxu0 0.0
    %915 = vmatprep.subr.mxu0 0.0
    %916 = vmatpush2.msra.mxu0 0.0
    %917 = vmatprep.subr.mxu0 0.0
    %918 = vmatpush2.msra.mxu0 0.0
    %919 = vmatprep.subr.mxu0 0.0
    %920 = vmatpush2.msra.mxu0 0.0
    %921 = vmatprep.subr.mxu0 0.0
    %922 = vmatpush2.msra.mxu0 0.0
    %923 = vmatprep.subr.mxu0 0.0
    %924 = vmatpush2.msra.mxu0 0.0
    %925 = vmatprep.mubr.f32.mxu0 0.0
    %926 = vmatmul.mubr.f32.gmra.mxu0 %v803
    %v927 = vpop.f32.mrf.mxu0
    %v928 = vadd.f32 0.0, %v927
    %v929 = vpop.f32.mrf.mxu0
    %v930 = vadd.f32 0.0, %v929
    %931 = vdwg.mxu0
    %932 = vmatprep.subr.mxu0 0.0
    %933 = vmatpush1.msra.mxu0 %v860
    %934 = vmatprep.subr.mxu0 0.0
    %935 = vmatpush1.msra.mxu0 %v857
    %936 = vmatprep.subr.mxu0 0.0
    %937 = vmatpush1.msra.mxu0 %v854
    %938 = vmatprep.subr.mxu0 0.0
    %939 = vmatpush1.msra.mxu0 %v851
    %940 = vmatprep.subr.mxu0 0.0
    %941 = vmatpush1.msra.mxu0 %v848
    %942 = vmatprep.subr.mxu0 0.0
    %943 = vmatpush1.msra.mxu0 %v845
    %944 = vmatprep.subr.mxu0 0.0
    %945 = vmatpush1.msra.mxu0 %v842
    %946 = vmatprep.subr.mxu0 0.0
    %947 = vmatpush1.msra.mxu0 %v839
    %948 = vmatprep.subr.mxu0 0.0
    %949 = vmatpush1.msra.mxu0 %v836
    %950 = vmatprep.subr.mxu0 0.0
    %951 = vmatpush1.msra.mxu0 %v833
    %952 = vmatprep.subr.mxu0 0.0
    %953 = vmatpush1.msra.mxu0 %v830
    %954 = vmatprep.subr.mxu0 0.0
    %955 = vmatpush1.msra.mxu0 %v827
    %956 = vmatprep.subr.mxu0 0.0
    %957 = vmatpush1.msra.mxu0 %v824
    %958 = vmatprep.subr.mxu0 0.0
    %959 = vmatpush1.msra.mxu0 %v821
    %960 = vmatprep.subr.mxu0 0.0
    %961 = vmatpush1.msra.mxu0 %v818
    %962 = vmatprep.subr.mxu0 0.0
    %963 = vmatpush1.msra.mxu0 %v815
    %964 = vmatprep.subr.mxu0 0.0
    %965 = vmatpush2.msra.mxu0 0.0
    %966 = vmatprep.subr.mxu0 0.0
    %967 = vmatpush2.msra.mxu0 0.0
    %968 = vmatprep.subr.mxu0 0.0
    %969 = vmatpush2.msra.mxu0 0.0
    %970 = vmatprep.subr.mxu0 0.0
    %971 = vmatpush2.msra.mxu0 0.0
    %972 = vmatprep.subr.mxu0 0.0
    %973 = vmatpush2.msra.mxu0 0.0
    %974 = vmatprep.subr.mxu0 0.0
    %975 = vmatpush2.msra.mxu0 0.0
    %976 = vmatprep.subr.mxu0 0.0
    %977 = vmatpush2.msra.mxu0 0.0
    %978 = vmatprep.subr.mxu0 0.0
    %979 = vmatpush2.msra.mxu0 0.0
    %980 = vmatprep.subr.mxu0 0.0
    %981 = vmatpush2.msra.mxu0 0.0
    %982 = vmatprep.subr.mxu0 0.0
    %983 = vmatpush2.msra.mxu0 0.0
    %984 = vmatprep.subr.mxu0 0.0
    %985 = vmatpush2.msra.mxu0 0.0
    %986 = vmatprep.subr.mxu0 0.0
    %987 = vmatpush2.msra.mxu0 0.0
    %988 = vmatprep.subr.mxu0 0.0
    %989 = vmatpush2.msra.mxu0 0.0
    %990 = vmatprep.subr.mxu0 0.0
    %991 = vmatpush2.msra.mxu0 0.0
    %992 = vmatprep.subr.mxu0 0.0
    %993 = vmatpush2.msra.mxu0 0.0
    %994 = vmatprep.subr.mxu0 0.0
    %995 = vmatpush2.msra.mxu0 0.0
    %996 = vmatprep.mubr.f32.mxu0 0.0
    %997 = vmatmul.mubr.f32.gmra.mxu0 %v803
    %v998 = vpop.f32.mrf.mxu0
    %v999 = vadd.f32 0.0, %v998
    %v1000 = vpop.f32.mrf.mxu0
    %1001 = vdwg.mxu0
    %v1002 = vadd.f32 %v810, %v928
    %v1003 = vmul.f32 %v1002, 0.5
    %v1004 = vtanh.pop %v1003
    %v1005 = vadd.f32 %v1004, 1.0
    %v1006 = vmul.f32 %v1005, 0.5
    %v1007 = vadd.f32 %v811, %v930
    %v1008 = vmul.f32 %v1007, 0.5
    %v1009 = vtanh.pop %v1008
    %v1010 = vadd.f32 %v1009, 1.0
    %v1011 = vmul.f32 %v1010, 0.5
    %v1012 = vld [vmem:[%s6] sm:$0x1]
    %v1014 = vlaneseq
    %v1015 = vshrl.u32 %v1014, 7
    %v1016 = vsub.s32 0, %v1015
    %v1017 = vrot.slane %v1012, %v1016
    %v1019 = vadd.f32 %v999, %v1017
    %v1020 = vmul.f32 %v1006, %v1019
    %v1021 = vadd.f32 %v812, %v1020
    %v1022 = vtanh.pop %v1021
    %v1023 = vsub.f32 %v803, %v1022
    %v1024 = vmul.f32 %v1011, %v1023
    %v1025 = vadd.f32 %v1022, %v1024
    %s1026 = sadd.s32 %s35, 2
    %v1027 = vstv %s1026
    %vm1028 = vcmp.lt.s32.totalorder %v1027, %v345
    %v1029 = vsel %vm1028, 1, 0
    %1030 = vset.pattern.permute.xlu0 0
    %1031 = vperm.xlu0 %1030, %v1029
    %v1032 = vpop.permute.xlu0 %1031
    %vm1033 = vcmp.eq.s32.totalorder %v1032, 1
    %v1034 = vsel %vm1033, %v1025, %v803
    %v1035 = vsel %vm1033, %v1025, -1.5
    %s1036 = scalar_lea.vmem %s8, 16
    %1037 = vst [vmem:[%s1036] sm:$0xff] %v1035
    %s1038 = smul.u32 3, 3
    %s1039 = smul.addr %s1038, 8
    %s1040 = scalar_lea.vmem [#allocation3], %s1039
    %v1041 = vld [vmem:[%s1040] sm:$0xff]
    %v1042 = vld [vmem:[%s1040 + $0x8] sm:$0xff]
    %v1043 = vld [vmem:[%s1040 + $0x10] sm:$0xff]
    %v1044 = vld [vmem:[%s5] sm:$0xff]
    %v1045 = vld [vmem:[%s5 + $0x8] sm:$0xff]
    %v1046 = vld [vmem:[%s5 + $0x10] sm:$0xff]
    %v1047 = vld [vmem:[%s5 + $0x18] sm:$0xff]
    %v1048 = vld [vmem:[%s5 + $0x20] sm:$0xff]
    %v1049 = vld [vmem:[%s5 + $0x28] sm:$0xff]
    %v1050 = vld [vmem:[%s5 + $0x30] sm:$0xff]
    %v1051 = vld [vmem:[%s5 + $0x38] sm:$0xff]
    %v1052 = vld [vmem:[%s5 + $0x40] sm:$0xff]
    %v1053 = vld [vmem:[%s5 + $0x48] sm:$0xff]
    %v1054 = vld [vmem:[%s5 + $0x50] sm:$0xff]
    %v1055 = vld [vmem:[%s5 + $0x58] sm:$0xff]
    %v1056 = vld [vmem:[%s5 + $0x60] sm:$0xff]
    %v1057 = vld [vmem:[%s5 + $0x68] sm:$0xff]
    %v1058 = vld [vmem:[%s5 + $0x70] sm:$0xff]
    %v1059 = vld [vmem:[%s5 + $0x78] sm:$0xff]
    %v1060 = vld [vmem:[%s5 + $0x80] sm:$0xff]
    %v1061 = vld [vmem:[%s5 + $0x88] sm:$0xff]
    %v1062 = vld [vmem:[%s5 + $0x90] sm:$0xff]
    %v1063 = vld [vmem:[%s5 + $0x98] sm:$0xff]
    %v1064 = vld [vmem:[%s5 + $0xa0] sm:$0xff]
    %v1065 = vld [vmem:[%s5 + $0xa8] sm:$0xff]
    %v1066 = vld [vmem:[%s5 + $0xb0] sm:$0xff]
    %v1067 = vld [vmem:[%s5 + $0xb8] sm:$0xff]
    %v1068 = vld [vmem:[%s5 + $0xc0] sm:$0xff]
    %v1069 = vld [vmem:[%s5 + $0xc8] sm:$0xff]
    %v1070 = vld [vmem:[%s5 + $0xd0] sm:$0xff]
    %v1071 = vld [vmem:[%s5 + $0xd8] sm:$0xff]
    %v1072 = vld [vmem:[%s5 + $0xe0] sm:$0xff]
    %v1073 = vld [vmem:[%s5 + $0xe8] sm:$0xff]
    %v1074 = vld [vmem:[%s5 + $0xf0] sm:$0xff]
    %v1075 = vld [vmem:[%s5 + $0xf8] sm:$0xff]
    %v1076 = vld [vmem:[%s5 + $0x100] sm:$0xff]
    %v1077 = vld [vmem:[%s5 + $0x108] sm:$0xff]
    %v1078 = vld [vmem:[%s5 + $0x110] sm:$0xff]
    %v1079 = vld [vmem:[%s5 + $0x118] sm:$0xff]
    %v1080 = vld [vmem:[%s5 + $0x120] sm:$0xff]
    %v1081 = vld [vmem:[%s5 + $0x128] sm:$0xff]
    %v1082 = vld [vmem:[%s5 + $0x130] sm:$0xff]
    %v1083 = vld [vmem:[%s5 + $0x138] sm:$0xff]
    %v1084 = vld [vmem:[%s5 + $0x140] sm:$0xff]
    %v1085 = vld [vmem:[%s5 + $0x148] sm:$0xff]
    %v1086 = vld [vmem:[%s5 + $0x150] sm:$0xff]
    %v1087 = vld [vmem:[%s5 + $0x158] sm:$0xff]
    %v1088 = vld [vmem:[%s5 + $0x160] sm:$0xff]
    %v1089 = vld [vmem:[%s5 + $0x168] sm:$0xff]
    %v1090 = vld [vmem:[%s5 + $0x170] sm:$0xff]
    %v1091 = vld [vmem:[%s5 + $0x178] sm:$0xff]
    %1092 = vmatprep.subr.mxu0 %v1090
    %1093 = vmatpush1.msra.mxu0 %v1089
    %1094 = vmatprep.subr.mxu0 %v1087
    %1095 = vmatpush1.msra.mxu0 %v1086
    %1096 = vmatprep.subr.mxu0 %v1084
    %1097 = vmatpush1.msra.mxu0 %v1083
    %1098 = vmatprep.subr.mxu0 %v1081
    %1099 = vmatpush1.msra.mxu0 %v1080
    %1100 = vmatprep.subr.mxu0 %v1078
    %1101 = vmatpush1.msra.mxu0 %v1077
    %1102 = vmatprep.subr.mxu0 %v1075
    %1103 = vmatpush1.msra.mxu0 %v1074
    %1104 = vmatprep.subr.mxu0 %v1072
    %1105 = vmatpush1.msra.mxu0 %v1071
    %1106 = vmatprep.subr.mxu0 %v1069
    %1107 = vmatpush1.msra.mxu0 %v1068
    %1108 = vmatprep.subr.mxu0 %v1066
    %1109 = vmatpush1.msra.mxu0 %v1065
    %1110 = vmatprep.subr.mxu0 %v1063
    %1111 = vmatpush1.msra.mxu0 %v1062
    %1112 = vmatprep.subr.mxu0 %v1060
    %1113 = vmatpush1.msra.mxu0 %v1059
    %1114 = vmatprep.subr.mxu0 %v1057
    %1115 = vmatpush1.msra.mxu0 %v1056
    %1116 = vmatprep.subr.mxu0 %v1054
    %1117 = vmatpush1.msra.mxu0 %v1053
    %1118 = vmatprep.subr.mxu0 %v1051
    %1119 = vmatpush1.msra.mxu0 %v1050
    %1120 = vmatprep.subr.mxu0 %v1048
    %1121 = vmatpush1.msra.mxu0 %v1047
    %1122 = vmatprep.subr.mxu0 %v1045
    %1123 = vmatpush1.msra.mxu0 %v1044
    %1124 = vmatprep.subr.mxu0 0.0
    %1125 = vmatpush2.msra.mxu0 0.0
    %1126 = vmatprep.subr.mxu0 0.0
    %1127 = vmatpush2.msra.mxu0 0.0
    %1128 = vmatprep.subr.mxu0 0.0
    %1129 = vmatpush2.msra.mxu0 0.0
    %1130 = vmatprep.subr.mxu0 0.0
    %1131 = vmatpush2.msra.mxu0 0.0
    %1132 = vmatprep.subr.mxu0 0.0
    %1133 = vmatpush2.msra.mxu0 0.0
    %1134 = vmatprep.subr.mxu0 0.0
    %1135 = vmatpush2.msra.mxu0 0.0
    %1136 = vmatprep.subr.mxu0 0.0
    %1137 = vmatpush2.msra.mxu0 0.0
    %1138 = vmatprep.subr.mxu0 0.0
    %1139 = vmatpush2.msra.mxu0 0.0
    %1140 = vmatprep.subr.mxu0 0.0
    %1141 = vmatpush2.msra.mxu0 0.0
    %1142 = vmatprep.subr.mxu0 0.0
    %1143 = vmatpush2.msra.mxu0 0.0
    %1144 = vmatprep.subr.mxu0 0.0
    %1145 = vmatpush2.msra.mxu0 0.0
    %1146 = vmatprep.subr.mxu0 0.0
    %1147 = vmatpush2.msra.mxu0 0.0
    %1148 = vmatprep.subr.mxu0 0.0
    %1149 = vmatpush2.msra.mxu0 0.0
    %1150 = vmatprep.subr.mxu0 0.0
    %1151 = vmatpush2.msra.mxu0 0.0
    %1152 = vmatprep.subr.mxu0 0.0
    %1153 = vmatpush2.msra.mxu0 0.0
    %1154 = vmatprep.subr.mxu0 0.0
    %1155 = vmatpush2.msra.mxu0 0.0
    %1156 = vmatprep.mubr.f32.mxu0 0.0
    %1157 = vmatmul.mubr.f32.gmra.mxu0 %v1034
    %v1158 = vpop.f32.mrf.mxu0
    %v1159 = vadd.f32 0.0, %v1158
    %v1160 = vpop.f32.mrf.mxu0
    %v1161 = vadd.f32 0.0, %v1160
    %1162 = vdwg.mxu0
    %1163 = vmatprep.subr.mxu0 0.0
    %1164 = vmatpush1.msra.mxu0 %v1091
    %1165 = vmatprep.subr.mxu0 0.0
    %1166 = vmatpush1.msra.mxu0 %v1088
    %1167 = vmatprep.subr.mxu0 0.0
    %1168 = vmatpush1.msra.mxu0 %v1085
    %1169 = vmatprep.subr.mxu0 0.0
    %1170 = vmatpush1.msra.mxu0 %v1082
    %1171 = vmatprep.subr.mxu0 0.0
    %1172 = vmatpush1.msra.mxu0 %v1079
    %1173 = vmatprep.subr.mxu0 0.0
    %1174 = vmatpush1.msra.mxu0 %v1076
    %1175 = vmatprep.subr.mxu0 0.0
    %1176 = vmatpush1.msra.mxu0 %v1073
    %1177 = vmatprep.subr.mxu0 0.0
    %1178 = vmatpush1.msra.mxu0 %v1070
    %1179 = vmatprep.subr.mxu0 0.0
    %1180 = vmatpush1.msra.mxu0 %v1067
    %1181 = vmatprep.subr.mxu0 0.0
    %1182 = vmatpush1.msra.mxu0 %v1064
    %1183 = vmatprep.subr.mxu0 0.0
    %1184 = vmatpush1.msra.mxu0 %v1061
    %1185 = vmatprep.subr.mxu0 0.0
    %1186 = vmatpush1.msra.mxu0 %v1058
    %1187 = vmatprep.subr.mxu0 0.0
    %1188 = vmatpush1.msra.mxu0 %v1055
    %1189 = vmatprep.subr.mxu0 0.0
    %1190 = vmatpush1.msra.mxu0 %v1052
    %1191 = vmatprep.subr.mxu0 0.0
    %1192 = vmatpush1.msra.mxu0 %v1049
    %1193 = vmatprep.subr.mxu0 0.0
    %1194 = vmatpush1.msra.mxu0 %v1046
    %1195 = vmatprep.subr.mxu0 0.0
    %1196 = vmatpush2.msra.mxu0 0.0
    %1197 = vmatprep.subr.mxu0 0.0
    %1198 = vmatpush2.msra.mxu0 0.0
    %1199 = vmatprep.subr.mxu0 0.0
    %1200 = vmatpush2.msra.mxu0 0.0
    %1201 = vmatprep.subr.mxu0 0.0
    %1202 = vmatpush2.msra.mxu0 0.0
    %1203 = vmatprep.subr.mxu0 0.0
    %1204 = vmatpush2.msra.mxu0 0.0
    %1205 = vmatprep.subr.mxu0 0.0
    %1206 = vmatpush2.msra.mxu0 0.0
    %1207 = vmatprep.subr.mxu0 0.0
    %1208 = vmatpush2.msra.mxu0 0.0
    %1209 = vmatprep.subr.mxu0 0.0
    %1210 = vmatpush2.msra.mxu0 0.0
    %1211 = vmatprep.subr.mxu0 0.0
    %1212 = vmatpush2.msra.mxu0 0.0
    %1213 = vmatprep.subr.mxu0 0.0
    %1214 = vmatpush2.msra.mxu0 0.0
    %1215 = vmatprep.subr.mxu0 0.0
    %1216 = vmatpush2.msra.mxu0 0.0
    %1217 = vmatprep.subr.mxu0 0.0
    %1218 = vmatpush2.msra.mxu0 0.0
    %1219 = vmatprep.subr.mxu0 0.0
    %1220 = vmatpush2.msra.mxu0 0.0
    %1221 = vmatprep.subr.mxu0 0.0
    %1222 = vmatpush2.msra.mxu0 0.0
    %1223 = vmatprep.subr.mxu0 0.0
    %1224 = vmatpush2.msra.mxu0 0.0
    %1225 = vmatprep.subr.mxu0 0.0
    %1226 = vmatpush2.msra.mxu0 0.0
    %1227 = vmatprep.mubr.f32.mxu0 0.0
    %1228 = vmatmul.mubr.f32.gmra.mxu0 %v1034
    %v1229 = vpop.f32.mrf.mxu0
    %v1230 = vadd.f32 0.0, %v1229
    %v1231 = vpop.f32.mrf.mxu0
    %1232 = vdwg.mxu0
    %v1233 = vadd.f32 %v1041, %v1159
    %v1234 = vmul.f32 %v1233, 0.5
    %v1235 = vtanh.pop %v1234
    %v1236 = vadd.f32 %v1235, 1.0
    %v1237 = vmul.f32 %v1236, 0.5
    %v1238 = vadd.f32 %v1042, %v1161
    %v1239 = vmul.f32 %v1238, 0.5
    %v1240 = vtanh.pop %v1239
    %v1241 = vadd.f32 %v1240, 1.0
    %v1242 = vmul.f32 %v1241, 0.5
    %v1243 = vld [vmem:[%s6] sm:$0x1]
    %v1245 = vlaneseq
    %v1246 = vshrl.u32 %v1245, 7
    %v1247 = vsub.s32 0, %v1246
    %v1248 = vrot.slane %v1243, %v1247
    %v1250 = vadd.f32 %v1230, %v1248
    %v1251 = vmul.f32 %v1237, %v1250
    %v1252 = vadd.f32 %v1043, %v1251
    %v1253 = vtanh.pop %v1252
    %v1254 = vsub.f32 %v1034, %v1253
    %v1255 = vmul.f32 %v1242, %v1254
    %v1256 = vadd.f32 %v1253, %v1255
    %s1257 = sadd.s32 %s35, 3
    %v1258 = vstv %s1257
    %vm1259 = vcmp.lt.s32.totalorder %v1258, %v345
    %v1260 = vsel %vm1259, 1, 0
    %1261 = vset.pattern.permute.xlu0 0
    %1262 = vperm.xlu0 %1261, %v1260
    %v1263 = vpop.permute.xlu0 %1262
    %vm1264 = vcmp.eq.s32.totalorder %v1263, 1
    %v1265 = vsel %vm1264, %v1256, %v1034
    %v1266 = vsel %vm1264, %v1256, -1.5
    %s1267 = scalar_lea.vmem %s8, 24
    %1268 = vst [vmem:[%s1267] sm:$0xff] %v1266
    %s1269 = smul.u32 4, 3
    %s1270 = smul.addr %s1269, 8
    %s1271 = scalar_lea.vmem [#allocation3], %s1270
    %v1272 = vld [vmem:[%s1271] sm:$0xff]
    %v1273 = vld [vmem:[%s1271 + $0x8] sm:$0xff]
    %v1274 = vld [vmem:[%s1271 + $0x10] sm:$0xff]
    %v1275 = vld [vmem:[%s5] sm:$0xff]
    %v1276 = vld [vmem:[%s5 + $0x8] sm:$0xff]
    %v1277 = vld [vmem:[%s5 + $0x10] sm:$0xff]
    %v1278 = vld [vmem:[%s5 + $0x18] sm:$0xff]
    %v1279 = vld [vmem:[%s5 + $0x20] sm:$0xff]
    %v1280 = vld [vmem:[%s5 + $0x28] sm:$0xff]
    %v1281 = vld [vmem:[%s5 + $0x30] sm:$0xff]
    %v1282 = vld [vmem:[%s5 + $0x38] sm:$0xff]
    %v1283 = vld [vmem:[%s5 + $0x40] sm:$0xff]
    %v1284 = vld [vmem:[%s5 + $0x48] sm:$0xff]
    %v1285 = vld [vmem:[%s5 + $0x50] sm:$0xff]
    %v1286 = vld [vmem:[%s5 + $0x58] sm:$0xff]
    %v1287 = vld [vmem:[%s5 + $0x60] sm:$0xff]
    %v1288 = vld [vmem:[%s5 + $0x68] sm:$0xff]
    %v1289 = vld [vmem:[%s5 + $0x70] sm:$0xff]
    %v1290 = vld [vmem:[%s5 + $0x78] sm:$0xff]
    %v1291 = vld [vmem:[%s5 + $0x80] sm:$0xff]
    %v1292 = vld [vmem:[%s5 + $0x88] sm:$0xff]
    %v1293 = vld [vmem:[%s5 + $0x90] sm:$0xff]
    %v1294 = vld [vmem:[%s5 + $0x98] sm:$0xff]
    %v1295 = vld [vmem:[%s5 + $0xa0] sm:$0xff]
    %v1296 = vld [vmem:[%s5 + $0xa8] sm:$0xff]
    %v1297 = vld [vmem:[%s5 + $0xb0] sm:$0xff]
    %v1298 = vld [vmem:[%s5 + $0xb8] sm:$0xff]
    %v1299 = vld [vmem:[%s5 + $0xc0] sm:$0xff]
    %v1300 = vld [vmem:[%s5 + $0xc8] sm:$0xff]
    %v1301 = vld [vmem:[%s5 + $0xd0] sm:$0xff]
    %v1302 = vld [vmem:[%s5 + $0xd8] sm:$0xff]
    %v1303 = vld [vmem:[%s5 + $0xe0] sm:$0xff]
    %v1304 = vld [vmem:[%s5 + $0xe8] sm:$0xff]
    %v1305 = vld [vmem:[%s5 + $0xf0] sm:$0xff]
    %v1306 = vld [vmem:[%s5 + $0xf8] sm:$0xff]
    %v1307 = vld [vmem:[%s5 + $0x100] sm:$0xff]
    %v1308 = vld [vmem:[%s5 + $0x108] sm:$0xff]
    %v1309 = vld [vmem:[%s5 + $0x110] sm:$0xff]
    %v1310 = vld [vmem:[%s5 + $0x118] sm:$0xff]
    %v1311 = vld [vmem:[%s5 + $0x120] sm:$0xff]
    %v1312 = vld [vmem:[%s5 + $0x128] sm:$0xff]
    %v1313 = vld [vmem:[%s5 + $0x130] sm:$0xff]
    %v1314 = vld [vmem:[%s5 + $0x138] sm:$0xff]
    %v1315 = vld [vmem:[%s5 + $0x140] sm:$0xff]
    %v1316 = vld [vmem:[%s5 + $0x148] sm:$0xff]
    %v1317 = vld [vmem:[%s5 + $0x150] sm:$0xff]
    %v1318 = vld [vmem:[%s5 + $0x158] sm:$0xff]
    %v1319 = vld [vmem:[%s5 + $0x160] sm:$0xff]
    %v1320 = vld [vmem:[%s5 + $0x168] sm:$0xff]
    %v1321 = vld [vmem:[%s5 + $0x170] sm:$0xff]
    %v1322 = vld [vmem:[%s5 + $0x178] sm:$0xff]
    %1323 = vmatprep.subr.mxu0 %v1321
    %1324 = vmatpush1.msra.mxu0 %v1320
    %1325 = vmatprep.subr.mxu0 %v1318
    %1326 = vmatpush1.msra.mxu0 %v1317
    %1327 = vmatprep.subr.mxu0 %v1315
    %1328 = vmatpush1.msra.mxu0 %v1314
    %1329 = vmatprep.subr.mxu0 %v1312
    %1330 = vmatpush1.msra.mxu0 %v1311
    %1331 = vmatprep.subr.mxu0 %v1309
    %1332 = vmatpush1.msra.mxu0 %v1308
    %1333 = vmatprep.subr.mxu0 %v1306
    %1334 = vmatpush1.msra.mxu0 %v1305
    %1335 = vmatprep.subr.mxu0 %v1303
    %1336 = vmatpush1.msra.mxu0 %v1302
    %1337 = vmatprep.subr.mxu0 %v1300
    %1338 = vmatpush1.msra.mxu0 %v1299
    %1339 = vmatprep.subr.mxu0 %v1297
    %1340 = vmatpush1.msra.mxu0 %v1296
    %1341 = vmatprep.subr.mxu0 %v1294
    %1342 = vmatpush1.msra.mxu0 %v1293
    %1343 = vmatprep.subr.mxu0 %v1291
    %1344 = vmatpush1.msra.mxu0 %v1290
    %1345 = vmatprep.subr.mxu0 %v1288
    %1346 = vmatpush1.msra.mxu0 %v1287
    %1347 = vmatprep.subr.mxu0 %v1285
    %1348 = vmatpush1.msra.mxu0 %v1284
    %1349 = vmatprep.subr.mxu0 %v1282
    %1350 = vmatpush1.msra.mxu0 %v1281
    %1351 = vmatprep.subr.mxu0 %v1279
    %1352 = vmatpush1.msra.mxu0 %v1278
    %1353 = vmatprep.subr.mxu0 %v1276
    %1354 = vmatpush1.msra.mxu0 %v1275
    %1355 = vmatprep.subr.mxu0 0.0
    %1356 = vmatpush2.msra.mxu0 0.0
    %1357 = vmatprep.subr.mxu0 0.0
    %1358 = vmatpush2.msra.mxu0 0.0
    %1359 = vmatprep.subr.mxu0 0.0
    %1360 = vmatpush2.msra.mxu0 0.0
    %1361 = vmatprep.subr.mxu0 0.0
    %1362 = vmatpush2.msra.mxu0 0.0
    %1363 = vmatprep.subr.mxu0 0.0
    %1364 = vmatpush2.msra.mxu0 0.0
    %1365 = vmatprep.subr.mxu0 0.0
    %1366 = vmatpush2.msra.mxu0 0.0
    %1367 = vmatprep.subr.mxu0 0.0
    %1368 = vmatpush2.msra.mxu0 0.0
    %1369 = vmatprep.subr.mxu0 0.0
    %1370 = vmatpush2.msra.mxu0 0.0
    %1371 = vmatprep.subr.mxu0 0.0
    %1372 = vmatpush2.msra.mxu0 0.0
    %1373 = vmatprep.subr.mxu0 0.0
    %1374 = vmatpush2.msra.mxu0 0.0
    %1375 = vmatprep.subr.mxu0 0.0
    %1376 = vmatpush2.msra.mxu0 0.0
    %1377 = vmatprep.subr.mxu0 0.0
    %1378 = vmatpush2.msra.mxu0 0.0
    %1379 = vmatprep.subr.mxu0 0.0
    %1380 = vmatpush2.msra.mxu0 0.0
    %1381 = vmatprep.subr.mxu0 0.0
    %1382 = vmatpush2.msra.mxu0 0.0
    %1383 = vmatprep.subr.mxu0 0.0
    %1384 = vmatpush2.msra.mxu0 0.0
    %1385 = vmatprep.subr.mxu0 0.0
    %1386 = vmatpush2.msra.mxu0 0.0
    %1387 = vmatprep.mubr.f32.mxu0 0.0
    %1388 = vmatmul.mubr.f32.gmra.mxu0 %v1265
    %v1389 = vpop.f32.mrf.mxu0
    %v1390 = vadd.f32 0.0, %v1389
    %v1391 = vpop.f32.mrf.mxu0
    %v1392 = vadd.f32 0.0, %v1391
    %1393 = vdwg.mxu0
    %1394 = vmatprep.subr.mxu0 0.0
    %1395 = vmatpush1.msra.mxu0 %v1322
    %1396 = vmatprep.subr.mxu0 0.0
    %1397 = vmatpush1.msra.mxu0 %v1319
    %1398 = vmatprep.subr.mxu0 0.0
    %1399 = vmatpush1.msra.mxu0 %v1316
    %1400 = vmatprep.subr.mxu0 0.0
    %1401 = vmatpush1.msra.mxu0 %v1313
    %1402 = vmatprep.subr.mxu0 0.0
    %1403 = vmatpush1.msra.mxu0 %v1310
    %1404 = vmatprep.subr.mxu0 0.0
    %1405 = vmatpush1.msra.mxu0 %v1307
    %1406 = vmatprep.subr.mxu0 0.0
    %1407 = vmatpush1.msra.mxu0 %v1304
    %1408 = vmatprep.subr.mxu0 0.0
    %1409 = vmatpush1.msra.mxu0 %v1301
    %1410 = vmatprep.subr.mxu0 0.0
    %1411 = vmatpush1.msra.mxu0 %v1298
    %1412 = vmatprep.subr.mxu0 0.0
    %1413 = vmatpush1.msra.mxu0 %v1295
    %1414 = vmatprep.subr.mxu0 0.0
    %1415 = vmatpush1.msra.mxu0 %v1292
    %1416 = vmatprep.subr.mxu0 0.0
    %1417 = vmatpush1.msra.mxu0 %v1289
    %1418 = vmatprep.subr.mxu0 0.0
    %1419 = vmatpush1.msra.mxu0 %v1286
    %1420 = vmatprep.subr.mxu0 0.0
    %1421 = vmatpush1.msra.mxu0 %v1283
    %1422 = vmatprep.subr.mxu0 0.0
    %1423 = vmatpush1.msra.mxu0 %v1280
    %1424 = vmatprep.subr.mxu0 0.0
    %1425 = vmatpush1.msra.mxu0 %v1277
    %1426 = vmatprep.subr.mxu0 0.0
    %1427 = vmatpush2.msra.mxu0 0.0
    %1428 = vmatprep.subr.mxu0 0.0
    %1429 = vmatpush2.msra.mxu0 0.0
    %1430 = vmatprep.subr.mxu0 0.0
    %1431 = vmatpush2.msra.mxu0 0.0
    %1432 = vmatprep.subr.mxu0 0.0
    %1433 = vmatpush2.msra.mxu0 0.0
    %1434 = vmatprep.subr.mxu0 0.0
    %1435 = vmatpush2.msra.mxu0 0.0
    %1436 = vmatprep.subr.mxu0 0.0
    %1437 = vmatpush2.msra.mxu0 0.0
    %1438 = vmatprep.subr.mxu0 0.0
    %1439 = vmatpush2.msra.mxu0 0.0
    %1440 = vmatprep.subr.mxu0 0.0
    %1441 = vmatpush2.msra.mxu0 0.0
    %1442 = vmatprep.subr.mxu0 0.0
    %1443 = vmatpush2.msra.mxu0 0.0
    %1444 = vmatprep.subr.mxu0 0.0
    %1445 = vmatpush2.msra.mxu0 0.0
    %1446 = vmatprep.subr.mxu0 0.0
    %1447 = vmatpush2.msra.mxu0 0.0
    %1448 = vmatprep.subr.mxu0 0.0
    %1449 = vmatpush2.msra.mxu0 0.0
    %1450 = vmatprep.subr.mxu0 0.0
    %1451 = vmatpush2.msra.mxu0 0.0
    %1452 = vmatprep.subr.mxu0 0.0
    %1453 = vmatpush2.msra.mxu0 0.0
    %1454 = vmatprep.subr.mxu0 0.0
    %1455 = vmatpush2.msra.mxu0 0.0
    %1456 = vmatprep.subr.mxu0 0.0
    %1457 = vmatpush2.msra.mxu0 0.0
    %1458 = vmatprep.mubr.f32.mxu0 0.0
    %1459 = vmatmul.mubr.f32.gmra.mxu0 %v1265
    %v1460 = vpop.f32.mrf.mxu0
    %v1461 = vadd.f32 0.0, %v1460
    %v1462 = vpop.f32.mrf.mxu0
    %1463 = vdwg.mxu0
    %v1464 = vadd.f32 %v1272, %v1390
    %v1465 = vmul.f32 %v1464, 0.5
    %v1466 = vtanh.pop %v1465
    %v1467 = vadd.f32 %v1466, 1.0
    %v1468 = vmul.f32 %v1467, 0.5
    %v1469 = vadd.f32 %v1273, %v1392
    %v1470 = vmul.f32 %v1469, 0.5
    %v1471 = vtanh.pop %v1470
    %v1472 = vadd.f32 %v1471, 1.0
    %v1473 = vmul.f32 %v1472, 0.5
    %v1474 = vld [vmem:[%s6] sm:$0x1]
    %v1476 = vlaneseq
    %v1477 = vshrl.u32 %v1476, 7
    %v1478 = vsub.s32 0, %v1477
    %v1479 = vrot.slane %v1474, %v1478
    %v1481 = vadd.f32 %v1461, %v1479
    %v1482 = vmul.f32 %v1468, %v1481
    %v1483 = vadd.f32 %v1274, %v1482
    %v1484 = vtanh.pop %v1483
    %v1485 = vsub.f32 %v1265, %v1484
    %v1486 = vmul.f32 %v1473, %v1485
    %v1487 = vadd.f32 %v1484, %v1486
    %s1488 = sadd.s32 %s35, 4
    %v1489 = vstv %s1488
    %vm1490 = vcmp.lt.s32.totalorder %v1489, %v345
    %v1491 = vsel %vm1490, 1, 0
    %1492 = vset.pattern.permute.xlu0 0
    %1493 = vperm.xlu0 %1492, %v1491
    %v1494 = vpop.permute.xlu0 %1493
    %vm1495 = vcmp.eq.s32.totalorder %v1494, 1
    %v1496 = vsel %vm1495, %v1487, %v1265
    %v1497 = vsel %vm1495, %v1487, -1.5
    %s1498 = scalar_lea.vmem %s8, 32
    %1499 = vst [vmem:[%s1498] sm:$0xff] %v1497
    %s1500 = smul.u32 5, 3
    %s1501 = smul.addr %s1500, 8
    %s1502 = scalar_lea.vmem [#allocation3], %s1501
    %v1503 = vld [vmem:[%s1502] sm:$0xff]
    %v1504 = vld [vmem:[%s1502 + $0x8] sm:$0xff]
    %v1505 = vld [vmem:[%s1502 + $0x10] sm:$0xff]
    %v1506 = vld [vmem:[%s5] sm:$0xff]
    %v1507 = vld [vmem:[%s5 + $0x8] sm:$0xff]
    %v1508 = vld [vmem:[%s5 + $0x10] sm:$0xff]
    %v1509 = vld [vmem:[%s5 + $0x18] sm:$0xff]
    %v1510 = vld [vmem:[%s5 + $0x20] sm:$0xff]
    %v1511 = vld [vmem:[%s5 + $0x28] sm:$0xff]
    %v1512 = vld [vmem:[%s5 + $0x30] sm:$0xff]
    %v1513 = vld [vmem:[%s5 + $0x38] sm:$0xff]
    %v1514 = vld [vmem:[%s5 + $0x40] sm:$0xff]
    %v1515 = vld [vmem:[%s5 + $0x48] sm:$0xff]
    %v1516 = vld [vmem:[%s5 + $0x50] sm:$0xff]
    %v1517 = vld [vmem:[%s5 + $0x58] sm:$0xff]
    %v1518 = vld [vmem:[%s5 + $0x60] sm:$0xff]
    %v1519 = vld [vmem:[%s5 + $0x68] sm:$0xff]
    %v1520 = vld [vmem:[%s5 + $0x70] sm:$0xff]
    %v1521 = vld [vmem:[%s5 + $0x78] sm:$0xff]
    %v1522 = vld [vmem:[%s5 + $0x80] sm:$0xff]
    %v1523 = vld [vmem:[%s5 + $0x88] sm:$0xff]
    %v1524 = vld [vmem:[%s5 + $0x90] sm:$0xff]
    %v1525 = vld [vmem:[%s5 + $0x98] sm:$0xff]
    %v1526 = vld [vmem:[%s5 + $0xa0] sm:$0xff]
    %v1527 = vld [vmem:[%s5 + $0xa8] sm:$0xff]
    %v1528 = vld [vmem:[%s5 + $0xb0] sm:$0xff]
    %v1529 = vld [vmem:[%s5 + $0xb8] sm:$0xff]
    %v1530 = vld [vmem:[%s5 + $0xc0] sm:$0xff]
    %v1531 = vld [vmem:[%s5 + $0xc8] sm:$0xff]
    %v1532 = vld [vmem:[%s5 + $0xd0] sm:$0xff]
    %v1533 = vld [vmem:[%s5 + $0xd8] sm:$0xff]
    %v1534 = vld [vmem:[%s5 + $0xe0] sm:$0xff]
    %v1535 = vld [vmem:[%s5 + $0xe8] sm:$0xff]
    %v1536 = vld [vmem:[%s5 + $0xf0] sm:$0xff]
    %v1537 = vld [vmem:[%s5 + $0xf8] sm:$0xff]
    %v1538 = vld [vmem:[%s5 + $0x100] sm:$0xff]
    %v1539 = vld [vmem:[%s5 + $0x108] sm:$0xff]
    %v1540 = vld [vmem:[%s5 + $0x110] sm:$0xff]
    %v1541 = vld [vmem:[%s5 + $0x118] sm:$0xff]
    %v1542 = vld [vmem:[%s5 + $0x120] sm:$0xff]
    %v1543 = vld [vmem:[%s5 + $0x128] sm:$0xff]
    %v1544 = vld [vmem:[%s5 + $0x130] sm:$0xff]
    %v1545 = vld [vmem:[%s5 + $0x138] sm:$0xff]
    %v1546 = vld [vmem:[%s5 + $0x140] sm:$0xff]
    %v1547 = vld [vmem:[%s5 + $0x148] sm:$0xff]
    %v1548 = vld [vmem:[%s5 + $0x150] sm:$0xff]
    %v1549 = vld [vmem:[%s5 + $0x158] sm:$0xff]
    %v1550 = vld [vmem:[%s5 + $0x160] sm:$0xff]
    %v1551 = vld [vmem:[%s5 + $0x168] sm:$0xff]
    %v1552 = vld [vmem:[%s5 + $0x170] sm:$0xff]
    %v1553 = vld [vmem:[%s5 + $0x178] sm:$0xff]
    %1554 = vmatprep.subr.mxu0 %v1552
    %1555 = vmatpush1.msra.mxu0 %v1551
    %1556 = vmatprep.subr.mxu0 %v1549
    %1557 = vmatpush1.msra.mxu0 %v1548
    %1558 = vmatprep.subr.mxu0 %v1546
    %1559 = vmatpush1.msra.mxu0 %v1545
    %1560 = vmatprep.subr.mxu0 %v1543
    %1561 = vmatpush1.msra.mxu0 %v1542
    %1562 = vmatprep.subr.mxu0 %v1540
    %1563 = vmatpush1.msra.mxu0 %v1539
    %1564 = vmatprep.subr.mxu0 %v1537
    %1565 = vmatpush1.msra.mxu0 %v1536
    %1566 = vmatprep.subr.mxu0 %v1534
    %1567 = vmatpush1.msra.mxu0 %v1533
    %1568 = vmatprep.subr.mxu0 %v1531
    %1569 = vmatpush1.msra.mxu0 %v1530
    %1570 = vmatprep.subr.mxu0 %v1528
    %1571 = vmatpush1.msra.mxu0 %v1527
    %1572 = vmatprep.subr.mxu0 %v1525
    %1573 = vmatpush1.msra.mxu0 %v1524
    %1574 = vmatprep.subr.mxu0 %v1522
    %1575 = vmatpush1.msra.mxu0 %v1521
    %1576 = vmatprep.subr.mxu0 %v1519
    %1577 = vmatpush1.msra.mxu0 %v1518
    %1578 = vmatprep.subr.mxu0 %v1516
    %1579 = vmatpush1.msra.mxu0 %v1515
    %1580 = vmatprep.subr.mxu0 %v1513
    %1581 = vmatpush1.msra.mxu0 %v1512
    %1582 = vmatprep.subr.mxu0 %v1510
    %1583 = vmatpush1.msra.mxu0 %v1509
    %1584 = vmatprep.subr.mxu0 %v1507
    %1585 = vmatpush1.msra.mxu0 %v1506
    %1586 = vmatprep.subr.mxu0 0.0
    %1587 = vmatpush2.msra.mxu0 0.0
    %1588 = vmatprep.subr.mxu0 0.0
    %1589 = vmatpush2.msra.mxu0 0.0
    %1590 = vmatprep.subr.mxu0 0.0
    %1591 = vmatpush2.msra.mxu0 0.0
    %1592 = vmatprep.subr.mxu0 0.0
    %1593 = vmatpush2.msra.mxu0 0.0
    %1594 = vmatprep.subr.mxu0 0.0
    %1595 = vmatpush2.msra.mxu0 0.0
    %1596 = vmatprep.subr.mxu0 0.0
    %1597 = vmatpush2.msra.mxu0 0.0
    %1598 = vmatprep.subr.mxu0 0.0
    %1599 = vmatpush2.msra.mxu0 0.0
    %1600 = vmatprep.subr.mxu0 0.0
    %1601 = vmatpush2.msra.mxu0 0.0
    %1602 = vmatprep.subr.mxu0 0.0
    %1603 = vmatpush2.msra.mxu0 0.0
    %1604 = vmatprep.subr.mxu0 0.0
    %1605 = vmatpush2.msra.mxu0 0.0
    %1606 = vmatprep.subr.mxu0 0.0
    %1607 = vmatpush2.msra.mxu0 0.0
    %1608 = vmatprep.subr.mxu0 0.0
    %1609 = vmatpush2.msra.mxu0 0.0
    %1610 = vmatprep.subr.mxu0 0.0
    %1611 = vmatpush2.msra.mxu0 0.0
    %1612 = vmatprep.subr.mxu0 0.0
    %1613 = vmatpush2.msra.mxu0 0.0
    %1614 = vmatprep.subr.mxu0 0.0
    %1615 = vmatpush2.msra.mxu0 0.0
    %1616 = vmatprep.subr.mxu0 0.0
    %1617 = vmatpush2.msra.mxu0 0.0
    %1618 = vmatprep.mubr.f32.mxu0 0.0
    %1619 = vmatmul.mubr.f32.gmra.mxu0 %v1496
    %v1620 = vpop.f32.mrf.mxu0
    %v1621 = vadd.f32 0.0, %v1620
    %v1622 = vpop.f32.mrf.mxu0
    %v1623 = vadd.f32 0.0, %v1622
    %1624 = vdwg.mxu0
    %1625 = vmatprep.subr.mxu0 0.0
    %1626 = vmatpush1.msra.mxu0 %v1553
    %1627 = vmatprep.subr.mxu0 0.0
    %1628 = vmatpush1.msra.mxu0 %v1550
    %1629 = vmatprep.subr.mxu0 0.0
    %1630 = vmatpush1.msra.mxu0 %v1547
    %1631 = vmatprep.subr.mxu0 0.0
    %1632 = vmatpush1.msra.mxu0 %v1544
    %1633 = vmatprep.subr.mxu0 0.0
    %1634 = vmatpush1.msra.mxu0 %v1541
    %1635 = vmatprep.subr.mxu0 0.0
    %1636 = vmatpush1.msra.mxu0 %v1538
    %1637 = vmatprep.subr.mxu0 0.0
    %1638 = vmatpush1.msra.mxu0 %v1535
    %1639 = vmatprep.subr.mxu0 0.0
    %1640 = vmatpush1.msra.mxu0 %v1532
    %1641 = vmatprep.subr.mxu0 0.0
    %1642 = vmatpush1.msra.mxu0 %v1529
    %1643 = vmatprep.subr.mxu0 0.0
    %1644 = vmatpush1.msra.mxu0 %v1526
    %1645 = vmatprep.subr.mxu0 0.0
    %1646 = vmatpush1.msra.mxu0 %v1523
    %1647 = vmatprep.subr.mxu0 0.0
    %1648 = vmatpush1.msra.mxu0 %v1520
    %1649 = vmatprep.subr.mxu0 0.0
    %1650 = vmatpush1.msra.mxu0 %v1517
    %1651 = vmatprep.subr.mxu0 0.0
    %1652 = vmatpush1.msra.mxu0 %v1514
    %1653 = vmatprep.subr.mxu0 0.0
    %1654 = vmatpush1.msra.mxu0 %v1511
    %1655 = vmatprep.subr.mxu0 0.0
    %1656 = vmatpush1.msra.mxu0 %v1508
    %1657 = vmatprep.subr.mxu0 0.0
    %1658 = vmatpush2.msra.mxu0 0.0
    %1659 = vmatprep.subr.mxu0 0.0
    %1660 = vmatpush2.msra.mxu0 0.0
    %1661 = vmatprep.subr.mxu0 0.0
    %1662 = vmatpush2.msra.mxu0 0.0
    %1663 = vmatprep.subr.mxu0 0.0
    %1664 = vmatpush2.msra.mxu0 0.0
    %1665 = vmatprep.subr.mxu0 0.0
    %1666 = vmatpush2.msra.mxu0 0.0
    %1667 = vmatprep.subr.mxu0 0.0
    %1668 = vmatpush2.msra.mxu0 0.0
    %1669 = vmatprep.subr.mxu0 0.0
    %1670 = vmatpush2.msra.mxu0 0.0
    %1671 = vmatprep.subr.mxu0 0.0
    %1672 = vmatpush2.msra.mxu0 0.0
    %1673 = vmatprep.subr.mxu0 0.0
    %1674 = vmatpush2.msra.mxu0 0.0
    %1675 = vmatprep.subr.mxu0 0.0
    %1676 = vmatpush2.msra.mxu0 0.0
    %1677 = vmatprep.subr.mxu0 0.0
    %1678 = vmatpush2.msra.mxu0 0.0
    %1679 = vmatprep.subr.mxu0 0.0
    %1680 = vmatpush2.msra.mxu0 0.0
    %1681 = vmatprep.subr.mxu0 0.0
    %1682 = vmatpush2.msra.mxu0 0.0
    %1683 = vmatprep.subr.mxu0 0.0
    %1684 = vmatpush2.msra.mxu0 0.0
    %1685 = vmatprep.subr.mxu0 0.0
    %1686 = vmatpush2.msra.mxu0 0.0
    %1687 = vmatprep.subr.mxu0 0.0
    %1688 = vmatpush2.msra.mxu0 0.0
    %1689 = vmatprep.mubr.f32.mxu0 0.0
    %1690 = vmatmul.mubr.f32.gmra.mxu0 %v1496
    %v1691 = vpop.f32.mrf.mxu0
    %v1692 = vadd.f32 0.0, %v1691
    %v1693 = vpop.f32.mrf.mxu0
    %1694 = vdwg.mxu0
    %v1695 = vadd.f32 %v1503, %v1621
    %v1696 = vmul.f32 %v1695, 0.5
    %v1697 = vtanh.pop %v1696
    %v1698 = vadd.f32 %v1697, 1.0
    %v1699 = vmul.f32 %v1698, 0.5
    %v1700 = vadd.f32 %v1504, %v1623
    %v1701 = vmul.f32 %v1700, 0.5
    %v1702 = vtanh.pop %v1701
    %v1703 = vadd.f32 %v1702, 1.0
    %v1704 = vmul.f32 %v1703, 0.5
    %v1705 = vld [vmem:[%s6] sm:$0x1]
    %v1707 = vlaneseq
    %v1708 = vshrl.u32 %v1707, 7
    %v1709 = vsub.s32 0, %v1708
    %v1710 = vrot.slane %v1705, %v1709
    %v1712 = vadd.f32 %v1692, %v1710
    %v1713 = vmul.f32 %v1699, %v1712
    %v1714 = vadd.f32 %v1505, %v1713
    %v1715 = vtanh.pop %v1714
    %v1716 = vsub.f32 %v1496, %v1715
    %v1717 = vmul.f32 %v1704, %v1716
    %v1718 = vadd.f32 %v1715, %v1717
    %s1719 = sadd.s32 %s35, 5
    %v1720 = vstv %s1719
    %vm1721 = vcmp.lt.s32.totalorder %v1720, %v345
    %v1722 = vsel %vm1721, 1, 0
    %1723 = vset.pattern.permute.xlu0 0
    %1724 = vperm.xlu0 %1723, %v1722
    %v1725 = vpop.permute.xlu0 %1724
    %vm1726 = vcmp.eq.s32.totalorder %v1725, 1
    %v1727 = vsel %vm1726, %v1718, %v1496
    %v1728 = vsel %vm1726, %v1718, -1.5
    %s1729 = scalar_lea.vmem %s8, 40
    %1730 = vst [vmem:[%s1729] sm:$0xff] %v1728
    %s1731 = smul.u32 6, 3
    %s1732 = smul.addr %s1731, 8
    %s1733 = scalar_lea.vmem [#allocation3], %s1732
    %v1734 = vld [vmem:[%s1733] sm:$0xff]
    %v1735 = vld [vmem:[%s1733 + $0x8] sm:$0xff]
    %v1736 = vld [vmem:[%s1733 + $0x10] sm:$0xff]
    %v1737 = vld [vmem:[%s5] sm:$0xff]
    %v1738 = vld [vmem:[%s5 + $0x8] sm:$0xff]
    %v1739 = vld [vmem:[%s5 + $0x10] sm:$0xff]
    %v1740 = vld [vmem:[%s5 + $0x18] sm:$0xff]
    %v1741 = vld [vmem:[%s5 + $0x20] sm:$0xff]
    %v1742 = vld [vmem:[%s5 + $0x28] sm:$0xff]
    %v1743 = vld [vmem:[%s5 + $0x30] sm:$0xff]
    %v1744 = vld [vmem:[%s5 + $0x38] sm:$0xff]
    %v1745 = vld [vmem:[%s5 + $0x40] sm:$0xff]
    %v1746 = vld [vmem:[%s5 + $0x48] sm:$0xff]
    %v1747 = vld [vmem:[%s5 + $0x50] sm:$0xff]
    %v1748 = vld [vmem:[%s5 + $0x58] sm:$0xff]
    %v1749 = vld [vmem:[%s5 + $0x60] sm:$0xff]
    %v1750 = vld [vmem:[%s5 + $0x68] sm:$0xff]
    %v1751 = vld [vmem:[%s5 + $0x70] sm:$0xff]
    %v1752 = vld [vmem:[%s5 + $0x78] sm:$0xff]
    %v1753 = vld [vmem:[%s5 + $0x80] sm:$0xff]
    %v1754 = vld [vmem:[%s5 + $0x88] sm:$0xff]
    %v1755 = vld [vmem:[%s5 + $0x90] sm:$0xff]
    %v1756 = vld [vmem:[%s5 + $0x98] sm:$0xff]
    %v1757 = vld [vmem:[%s5 + $0xa0] sm:$0xff]
    %v1758 = vld [vmem:[%s5 + $0xa8] sm:$0xff]
    %v1759 = vld [vmem:[%s5 + $0xb0] sm:$0xff]
    %v1760 = vld [vmem:[%s5 + $0xb8] sm:$0xff]
    %v1761 = vld [vmem:[%s5 + $0xc0] sm:$0xff]
    %v1762 = vld [vmem:[%s5 + $0xc8] sm:$0xff]
    %v1763 = vld [vmem:[%s5 + $0xd0] sm:$0xff]
    %v1764 = vld [vmem:[%s5 + $0xd8] sm:$0xff]
    %v1765 = vld [vmem:[%s5 + $0xe0] sm:$0xff]
    %v1766 = vld [vmem:[%s5 + $0xe8] sm:$0xff]
    %v1767 = vld [vmem:[%s5 + $0xf0] sm:$0xff]
    %v1768 = vld [vmem:[%s5 + $0xf8] sm:$0xff]
    %v1769 = vld [vmem:[%s5 + $0x100] sm:$0xff]
    %v1770 = vld [vmem:[%s5 + $0x108] sm:$0xff]
    %v1771 = vld [vmem:[%s5 + $0x110] sm:$0xff]
    %v1772 = vld [vmem:[%s5 + $0x118] sm:$0xff]
    %v1773 = vld [vmem:[%s5 + $0x120] sm:$0xff]
    %v1774 = vld [vmem:[%s5 + $0x128] sm:$0xff]
    %v1775 = vld [vmem:[%s5 + $0x130] sm:$0xff]
    %v1776 = vld [vmem:[%s5 + $0x138] sm:$0xff]
    %v1777 = vld [vmem:[%s5 + $0x140] sm:$0xff]
    %v1778 = vld [vmem:[%s5 + $0x148] sm:$0xff]
    %v1779 = vld [vmem:[%s5 + $0x150] sm:$0xff]
    %v1780 = vld [vmem:[%s5 + $0x158] sm:$0xff]
    %v1781 = vld [vmem:[%s5 + $0x160] sm:$0xff]
    %v1782 = vld [vmem:[%s5 + $0x168] sm:$0xff]
    %v1783 = vld [vmem:[%s5 + $0x170] sm:$0xff]
    %v1784 = vld [vmem:[%s5 + $0x178] sm:$0xff]
    %1785 = vmatprep.subr.mxu0 %v1783
    %1786 = vmatpush1.msra.mxu0 %v1782
    %1787 = vmatprep.subr.mxu0 %v1780
    %1788 = vmatpush1.msra.mxu0 %v1779
    %1789 = vmatprep.subr.mxu0 %v1777
    %1790 = vmatpush1.msra.mxu0 %v1776
    %1791 = vmatprep.subr.mxu0 %v1774
    %1792 = vmatpush1.msra.mxu0 %v1773
    %1793 = vmatprep.subr.mxu0 %v1771
    %1794 = vmatpush1.msra.mxu0 %v1770
    %1795 = vmatprep.subr.mxu0 %v1768
    %1796 = vmatpush1.msra.mxu0 %v1767
    %1797 = vmatprep.subr.mxu0 %v1765
    %1798 = vmatpush1.msra.mxu0 %v1764
    %1799 = vmatprep.subr.mxu0 %v1762
    %1800 = vmatpush1.msra.mxu0 %v1761
    %1801 = vmatprep.subr.mxu0 %v1759
    %1802 = vmatpush1.msra.mxu0 %v1758
    %1803 = vmatprep.subr.mxu0 %v1756
    %1804 = vmatpush1.msra.mxu0 %v1755
    %1805 = vmatprep.subr.mxu0 %v1753
    %1806 = vmatpush1.msra.mxu0 %v1752
    %1807 = vmatprep.subr.mxu0 %v1750
    %1808 = vmatpush1.msra.mxu0 %v1749
    %1809 = vmatprep.subr.mxu0 %v1747
    %1810 = vmatpush1.msra.mxu0 %v1746
    %1811 = vmatprep.subr.mxu0 %v1744
    %1812 = vmatpush1.msra.mxu0 %v1743
    %1813 = vmatprep.subr.mxu0 %v1741
    %1814 = vmatpush1.msra.mxu0 %v1740
    %1815 = vmatprep.subr.mxu0 %v1738
    %1816 = vmatpush1.msra.mxu0 %v1737
    %1817 = vmatprep.subr.mxu0 0.0
    %1818 = vmatpush2.msra.mxu0 0.0
    %1819 = vmatprep.subr.mxu0 0.0
    %1820 = vmatpush2.msra.mxu0 0.0
    %1821 = vmatprep.subr.mxu0 0.0
    %1822 = vmatpush2.msra.mxu0 0.0
    %1823 = vmatprep.subr.mxu0 0.0
    %1824 = vmatpush2.msra.mxu0 0.0
    %1825 = vmatprep.subr.mxu0 0.0
    %1826 = vmatpush2.msra.mxu0 0.0
    %1827 = vmatprep.subr.mxu0 0.0
    %1828 = vmatpush2.msra.mxu0 0.0
    %1829 = vmatprep.subr.mxu0 0.0
    %1830 = vmatpush2.msra.mxu0 0.0
    %1831 = vmatprep.subr.mxu0 0.0
    %1832 = vmatpush2.msra.mxu0 0.0
    %1833 = vmatprep.subr.mxu0 0.0
    %1834 = vmatpush2.msra.mxu0 0.0
    %1835 = vmatprep.subr.mxu0 0.0
    %1836 = vmatpush2.msra.mxu0 0.0
    %1837 = vmatprep.subr.mxu0 0.0
    %1838 = vmatpush2.msra.mxu0 0.0
    %1839 = vmatprep.subr.mxu0 0.0
    %1840 = vmatpush2.msra.mxu0 0.0
    %1841 = vmatprep.subr.mxu0 0.0
    %1842 = vmatpush2.msra.mxu0 0.0
    %1843 = vmatprep.subr.mxu0 0.0
    %1844 = vmatpush2.msra.mxu0 0.0
    %1845 = vmatprep.subr.mxu0 0.0
    %1846 = vmatpush2.msra.mxu0 0.0
    %1847 = vmatprep.subr.mxu0 0.0
    %1848 = vmatpush2.msra.mxu0 0.0
    %1849 = vmatprep.mubr.f32.mxu0 0.0
    %1850 = vmatmul.mubr.f32.gmra.mxu0 %v1727
    %v1851 = vpop.f32.mrf.mxu0
    %v1852 = vadd.f32 0.0, %v1851
    %v1853 = vpop.f32.mrf.mxu0
    %v1854 = vadd.f32 0.0, %v1853
    %1855 = vdwg.mxu0
    %1856 = vmatprep.subr.mxu0 0.0
    %1857 = vmatpush1.msra.mxu0 %v1784
    %1858 = vmatprep.subr.mxu0 0.0
    %1859 = vmatpush1.msra.mxu0 %v1781
    %1860 = vmatprep.subr.mxu0 0.0
    %1861 = vmatpush1.msra.mxu0 %v1778
    %1862 = vmatprep.subr.mxu0 0.0
    %1863 = vmatpush1.msra.mxu0 %v1775
    %1864 = vmatprep.subr.mxu0 0.0
    %1865 = vmatpush1.msra.mxu0 %v1772
    %1866 = vmatprep.subr.mxu0 0.0
    %1867 = vmatpush1.msra.mxu0 %v1769
    %1868 = vmatprep.subr.mxu0 0.0
    %1869 = vmatpush1.msra.mxu0 %v1766
    %1870 = vmatprep.subr.mxu0 0.0
    %1871 = vmatpush1.msra.mxu0 %v1763
    %1872 = vmatprep.subr.mxu0 0.0
    %1873 = vmatpush1.msra.mxu0 %v1760
    %1874 = vmatprep.subr.mxu0 0.0
    %1875 = vmatpush1.msra.mxu0 %v1757
    %1876 = vmatprep.subr.mxu0 0.0
    %1877 = vmatpush1.msra.mxu0 %v1754
    %1878 = vmatprep.subr.mxu0 0.0
    %1879 = vmatpush1.msra.mxu0 %v1751
    %1880 = vmatprep.subr.mxu0 0.0
    %1881 = vmatpush1.msra.mxu0 %v1748
    %1882 = vmatprep.subr.mxu0 0.0
    %1883 = vmatpush1.msra.mxu0 %v1745
    %1884 = vmatprep.subr.mxu0 0.0
    %1885 = vmatpush1.msra.mxu0 %v1742
    %1886 = vmatprep.subr.mxu0 0.0
    %1887 = vmatpush1.msra.mxu0 %v1739
    %1888 = vmatprep.subr.mxu0 0.0
    %1889 = vmatpush2.msra.mxu0 0.0
    %1890 = vmatprep.subr.mxu0 0.0
    %1891 = vmatpush2.msra.mxu0 0.0
    %1892 = vmatprep.subr.mxu0 0.0
    %1893 = vmatpush2.msra.mxu0 0.0
    %1894 = vmatprep.subr.mxu0 0.0
    %1895 = vmatpush2.msra.mxu0 0.0
    %1896 = vmatprep.subr.mxu0 0.0
    %1897 = vmatpush2.msra.mxu0 0.0
    %1898 = vmatprep.subr.mxu0 0.0
    %1899 = vmatpush2.msra.mxu0 0.0
    %1900 = vmatprep.subr.mxu0 0.0
    %1901 = vmatpush2.msra.mxu0 0.0
    %1902 = vmatprep.subr.mxu0 0.0
    %1903 = vmatpush2.msra.mxu0 0.0
    %1904 = vmatprep.subr.mxu0 0.0
    %1905 = vmatpush2.msra.mxu0 0.0
    %1906 = vmatprep.subr.mxu0 0.0
    %1907 = vmatpush2.msra.mxu0 0.0
    %1908 = vmatprep.subr.mxu0 0.0
    %1909 = vmatpush2.msra.mxu0 0.0
    %1910 = vmatprep.subr.mxu0 0.0
    %1911 = vmatpush2.msra.mxu0 0.0
    %1912 = vmatprep.subr.mxu0 0.0
    %1913 = vmatpush2.msra.mxu0 0.0
    %1914 = vmatprep.subr.mxu0 0.0
    %1915 = vmatpush2.msra.mxu0 0.0
    %1916 = vmatprep.subr.mxu0 0.0
    %1917 = vmatpush2.msra.mxu0 0.0
    %1918 = vmatprep.subr.mxu0 0.0
    %1919 = vmatpush2.msra.mxu0 0.0
    %1920 = vmatprep.mubr.f32.mxu0 0.0
    %1921 = vmatmul.mubr.f32.gmra.mxu0 %v1727
    %v1922 = vpop.f32.mrf.mxu0
    %v1923 = vadd.f32 0.0, %v1922
    %v1924 = vpop.f32.mrf.mxu0
    %1925 = vdwg.mxu0
    %v1926 = vadd.f32 %v1734, %v1852
    %v1927 = vmul.f32 %v1926, 0.5
    %v1928 = vtanh.pop %v1927
    %v1929 = vadd.f32 %v1928, 1.0
    %v1930 = vmul.f32 %v1929, 0.5
    %v1931 = vadd.f32 %v1735, %v1854
    %v1932 = vmul.f32 %v1931, 0.5
    %v1933 = vtanh.pop %v1932
    %v1934 = vadd.f32 %v1933, 1.0
    %v1935 = vmul.f32 %v1934, 0.5
    %v1936 = vld [vmem:[%s6] sm:$0x1]
    %v1938 = vlaneseq
    %v1939 = vshrl.u32 %v1938, 7
    %v1940 = vsub.s32 0, %v1939
    %v1941 = vrot.slane %v1936, %v1940
    %v1943 = vadd.f32 %v1923, %v1941
    %v1944 = vmul.f32 %v1930, %v1943
    %v1945 = vadd.f32 %v1736, %v1944
    %v1946 = vtanh.pop %v1945
    %v1947 = vsub.f32 %v1727, %v1946
    %v1948 = vmul.f32 %v1935, %v1947
    %v1949 = vadd.f32 %v1946, %v1948
    %s1950 = sadd.s32 %s35, 6
    %v1951 = vstv %s1950
    %vm1952 = vcmp.lt.s32.totalorder %v1951, %v345
    %v1953 = vsel %vm1952, 1, 0
    %1954 = vset.pattern.permute.xlu0 0
    %1955 = vperm.xlu0 %1954, %v1953
    %v1956 = vpop.permute.xlu0 %1955
    %vm1957 = vcmp.eq.s32.totalorder %v1956, 1
    %v1958 = vsel %vm1957, %v1949, %v1727
    %v1959 = vsel %vm1957, %v1949, -1.5
    %s1960 = scalar_lea.vmem %s8, 48
    %1961 = vst [vmem:[%s1960] sm:$0xff] %v1959
    %s1962 = smul.u32 7, 3
    %s1963 = smul.addr %s1962, 8
    %s1964 = scalar_lea.vmem [#allocation3], %s1963
    %v1965 = vld [vmem:[%s1964] sm:$0xff]
    %v1966 = vld [vmem:[%s1964 + $0x8] sm:$0xff]
    %v1967 = vld [vmem:[%s1964 + $0x10] sm:$0xff]
    %v1968 = vld [vmem:[%s5] sm:$0xff]
    %v1969 = vld [vmem:[%s5 + $0x8] sm:$0xff]
    %v1970 = vld [vmem:[%s5 + $0x10] sm:$0xff]
    %v1971 = vld [vmem:[%s5 + $0x18] sm:$0xff]
    %v1972 = vld [vmem:[%s5 + $0x20] sm:$0xff]
    %v1973 = vld [vmem:[%s5 + $0x28] sm:$0xff]
    %v1974 = vld [vmem:[%s5 + $0x30] sm:$0xff]
    %v1975 = vld [vmem:[%s5 + $0x38] sm:$0xff]
    %v1976 = vld [vmem:[%s5 + $0x40] sm:$0xff]
    %v1977 = vld [vmem:[%s5 + $0x48] sm:$0xff]
    %v1978 = vld [vmem:[%s5 + $0x50] sm:$0xff]
    %v1979 = vld [vmem:[%s5 + $0x58] sm:$0xff]
    %v1980 = vld [vmem:[%s5 + $0x60] sm:$0xff]
    %v1981 = vld [vmem:[%s5 + $0x68] sm:$0xff]
    %v1982 = vld [vmem:[%s5 + $0x70] sm:$0xff]
    %v1983 = vld [vmem:[%s5 + $0x78] sm:$0xff]
    %v1984 = vld [vmem:[%s5 + $0x80] sm:$0xff]
    %v1985 = vld [vmem:[%s5 + $0x88] sm:$0xff]
    %v1986 = vld [vmem:[%s5 + $0x90] sm:$0xff]
    %v1987 = vld [vmem:[%s5 + $0x98] sm:$0xff]
    %v1988 = vld [vmem:[%s5 + $0xa0] sm:$0xff]
    %v1989 = vld [vmem:[%s5 + $0xa8] sm:$0xff]
    %v1990 = vld [vmem:[%s5 + $0xb0] sm:$0xff]
    %v1991 = vld [vmem:[%s5 + $0xb8] sm:$0xff]
    %v1992 = vld [vmem:[%s5 + $0xc0] sm:$0xff]
    %v1993 = vld [vmem:[%s5 + $0xc8] sm:$0xff]
    %v1994 = vld [vmem:[%s5 + $0xd0] sm:$0xff]
    %v1995 = vld [vmem:[%s5 + $0xd8] sm:$0xff]
    %v1996 = vld [vmem:[%s5 + $0xe0] sm:$0xff]
    %v1997 = vld [vmem:[%s5 + $0xe8] sm:$0xff]
    %v1998 = vld [vmem:[%s5 + $0xf0] sm:$0xff]
    %v1999 = vld [vmem:[%s5 + $0xf8] sm:$0xff]
    %v2000 = vld [vmem:[%s5 + $0x100] sm:$0xff]
    %v2001 = vld [vmem:[%s5 + $0x108] sm:$0xff]
    %v2002 = vld [vmem:[%s5 + $0x110] sm:$0xff]
    %v2003 = vld [vmem:[%s5 + $0x118] sm:$0xff]
    %v2004 = vld [vmem:[%s5 + $0x120] sm:$0xff]
    %v2005 = vld [vmem:[%s5 + $0x128] sm:$0xff]
    %v2006 = vld [vmem:[%s5 + $0x130] sm:$0xff]
    %v2007 = vld [vmem:[%s5 + $0x138] sm:$0xff]
    %v2008 = vld [vmem:[%s5 + $0x140] sm:$0xff]
    %v2009 = vld [vmem:[%s5 + $0x148] sm:$0xff]
    %v2010 = vld [vmem:[%s5 + $0x150] sm:$0xff]
    %v2011 = vld [vmem:[%s5 + $0x158] sm:$0xff]
    %v2012 = vld [vmem:[%s5 + $0x160] sm:$0xff]
    %v2013 = vld [vmem:[%s5 + $0x168] sm:$0xff]
    %v2014 = vld [vmem:[%s5 + $0x170] sm:$0xff]
    %v2015 = vld [vmem:[%s5 + $0x178] sm:$0xff]
    %2016 = vmatprep.subr.mxu0 %v2014
    %2017 = vmatpush1.msra.mxu0 %v2013
    %2018 = vmatprep.subr.mxu0 %v2011
    %2019 = vmatpush1.msra.mxu0 %v2010
    %2020 = vmatprep.subr.mxu0 %v2008
    %2021 = vmatpush1.msra.mxu0 %v2007
    %2022 = vmatprep.subr.mxu0 %v2005
    %2023 = vmatpush1.msra.mxu0 %v2004
    %2024 = vmatprep.subr.mxu0 %v2002
    %2025 = vmatpush1.msra.mxu0 %v2001
    %2026 = vmatprep.subr.mxu0 %v1999
    %2027 = vmatpush1.msra.mxu0 %v1998
    %2028 = vmatprep.subr.mxu0 %v1996
    %2029 = vmatpush1.msra.mxu0 %v1995
    %2030 = vmatprep.subr.mxu0 %v1993
    %2031 = vmatpush1.msra.mxu0 %v1992
    %2032 = vmatprep.subr.mxu0 %v1990
    %2033 = vmatpush1.msra.mxu0 %v1989
    %2034 = vmatprep.subr.mxu0 %v1987
    %2035 = vmatpush1.msra.mxu0 %v1986
    %2036 = vmatprep.subr.mxu0 %v1984
    %2037 = vmatpush1.msra.mxu0 %v1983
    %2038 = vmatprep.subr.mxu0 %v1981
    %2039 = vmatpush1.msra.mxu0 %v1980
    %2040 = vmatprep.subr.mxu0 %v1978
    %2041 = vmatpush1.msra.mxu0 %v1977
    %2042 = vmatprep.subr.mxu0 %v1975
    %2043 = vmatpush1.msra.mxu0 %v1974
    %2044 = vmatprep.subr.mxu0 %v1972
    %2045 = vmatpush1.msra.mxu0 %v1971
    %2046 = vmatprep.subr.mxu0 %v1969
    %2047 = vmatpush1.msra.mxu0 %v1968
    %2048 = vmatprep.subr.mxu0 0.0
    %2049 = vmatpush2.msra.mxu0 0.0
    %2050 = vmatprep.subr.mxu0 0.0
    %2051 = vmatpush2.msra.mxu0 0.0
    %2052 = vmatprep.subr.mxu0 0.0
    %2053 = vmatpush2.msra.mxu0 0.0
    %2054 = vmatprep.subr.mxu0 0.0
    %2055 = vmatpush2.msra.mxu0 0.0
    %2056 = vmatprep.subr.mxu0 0.0
    %2057 = vmatpush2.msra.mxu0 0.0
    %2058 = vmatprep.subr.mxu0 0.0
    %2059 = vmatpush2.msra.mxu0 0.0
    %2060 = vmatprep.subr.mxu0 0.0
    %2061 = vmatpush2.msra.mxu0 0.0
    %2062 = vmatprep.subr.mxu0 0.0
    %2063 = vmatpush2.msra.mxu0 0.0
    %2064 = vmatprep.subr.mxu0 0.0
    %2065 = vmatpush2.msra.mxu0 0.0
    %2066 = vmatprep.subr.mxu0 0.0
    %2067 = vmatpush2.msra.mxu0 0.0
    %2068 = vmatprep.subr.mxu0 0.0
    %2069 = vmatpush2.msra.mxu0 0.0
    %2070 = vmatprep.subr.mxu0 0.0
    %2071 = vmatpush2.msra.mxu0 0.0
    %2072 = vmatprep.subr.mxu0 0.0
    %2073 = vmatpush2.msra.mxu0 0.0
    %2074 = vmatprep.subr.mxu0 0.0
    %2075 = vmatpush2.msra.mxu0 0.0
    %2076 = vmatprep.subr.mxu0 0.0
    %2077 = vmatpush2.msra.mxu0 0.0
    %2078 = vmatprep.subr.mxu0 0.0
    %2079 = vmatpush2.msra.mxu0 0.0
    %2080 = vmatprep.mubr.f32.mxu0 0.0
    %2081 = vmatmul.mubr.f32.gmra.mxu0 %v1958
    %v2082 = vpop.f32.mrf.mxu0
    %v2083 = vadd.f32 0.0, %v2082
    %v2084 = vpop.f32.mrf.mxu0
    %v2085 = vadd.f32 0.0, %v2084
    %2086 = vdwg.mxu0
    %2087 = vmatprep.subr.mxu0 0.0
    %2088 = vmatpush1.msra.mxu0 %v2015
    %2089 = vmatprep.subr.mxu0 0.0
    %2090 = vmatpush1.msra.mxu0 %v2012
    %2091 = vmatprep.subr.mxu0 0.0
    %2092 = vmatpush1.msra.mxu0 %v2009
    %2093 = vmatprep.subr.mxu0 0.0
    %2094 = vmatpush1.msra.mxu0 %v2006
    %2095 = vmatprep.subr.mxu0 0.0
    %2096 = vmatpush1.msra.mxu0 %v2003
    %2097 = vmatprep.subr.mxu0 0.0
    %2098 = vmatpush1.msra.mxu0 %v2000
    %2099 = vmatprep.subr.mxu0 0.0
    %2100 = vmatpush1.msra.mxu0 %v1997
    %2101 = vmatprep.subr.mxu0 0.0
    %2102 = vmatpush1.msra.mxu0 %v1994
    %2103 = vmatprep.subr.mxu0 0.0
    %2104 = vmatpush1.msra.mxu0 %v1991
    %2105 = vmatprep.subr.mxu0 0.0
    %2106 = vmatpush1.msra.mxu0 %v1988
    %2107 = vmatprep.subr.mxu0 0.0
    %2108 = vmatpush1.msra.mxu0 %v1985
    %2109 = vmatprep.subr.mxu0 0.0
    %2110 = vmatpush1.msra.mxu0 %v1982
    %2111 = vmatprep.subr.mxu0 0.0
    %2112 = vmatpush1.msra.mxu0 %v1979
    %2113 = vmatprep.subr.mxu0 0.0
    %2114 = vmatpush1.msra.mxu0 %v1976
    %2115 = vmatprep.subr.mxu0 0.0
    %2116 = vmatpush1.msra.mxu0 %v1973
    %2117 = vmatprep.subr.mxu0 0.0
    %2118 = vmatpush1.msra.mxu0 %v1970
    %2119 = vmatprep.subr.mxu0 0.0
    %2120 = vmatpush2.msra.mxu0 0.0
    %2121 = vmatprep.subr.mxu0 0.0
    %2122 = vmatpush2.msra.mxu0 0.0
    %2123 = vmatprep.subr.mxu0 0.0
    %2124 = vmatpush2.msra.mxu0 0.0
    %2125 = vmatprep.subr.mxu0 0.0
    %2126 = vmatpush2.msra.mxu0 0.0
    %2127 = vmatprep.subr.mxu0 0.0
    %2128 = vmatpush2.msra.mxu0 0.0
    %2129 = vmatprep.subr.mxu0 0.0
    %2130 = vmatpush2.msra.mxu0 0.0
    %2131 = vmatprep.subr.mxu0 0.0
    %2132 = vmatpush2.msra.mxu0 0.0
    %2133 = vmatprep.subr.mxu0 0.0
    %2134 = vmatpush2.msra.mxu0 0.0
    %2135 = vmatprep.subr.mxu0 0.0
    %2136 = vmatpush2.msra.mxu0 0.0
    %2137 = vmatprep.subr.mxu0 0.0
    %2138 = vmatpush2.msra.mxu0 0.0
    %2139 = vmatprep.subr.mxu0 0.0
    %2140 = vmatpush2.msra.mxu0 0.0
    %2141 = vmatprep.subr.mxu0 0.0
    %2142 = vmatpush2.msra.mxu0 0.0
    %2143 = vmatprep.subr.mxu0 0.0
    %2144 = vmatpush2.msra.mxu0 0.0
    %2145 = vmatprep.subr.mxu0 0.0
    %2146 = vmatpush2.msra.mxu0 0.0
    %2147 = vmatprep.subr.mxu0 0.0
    %2148 = vmatpush2.msra.mxu0 0.0
    %2149 = vmatprep.subr.mxu0 0.0
    %2150 = vmatpush2.msra.mxu0 0.0
    %2151 = vmatprep.mubr.f32.mxu0 0.0
    %2152 = vmatmul.mubr.f32.gmra.mxu0 %v1958
    %v2153 = vpop.f32.mrf.mxu0
    %v2154 = vadd.f32 0.0, %v2153
    %v2155 = vpop.f32.mrf.mxu0
    %2156 = vdwg.mxu0
    %v2157 = vadd.f32 %v1965, %v2083
    %v2158 = vmul.f32 %v2157, 0.5
    %v2159 = vtanh.pop %v2158
    %v2160 = vadd.f32 %v2159, 1.0
    %v2161 = vmul.f32 %v2160, 0.5
    %v2162 = vadd.f32 %v1966, %v2085
    %v2163 = vmul.f32 %v2162, 0.5
    %v2164 = vtanh.pop %v2163
    %v2165 = vadd.f32 %v2164, 1.0
    %v2166 = vmul.f32 %v2165, 0.5
    %v2167 = vld [vmem:[%s6] sm:$0x1]
    %v2169 = vlaneseq
    %v2170 = vshrl.u32 %v2169, 7
    %v2171 = vsub.s32 0, %v2170
    %v2172 = vrot.slane %v2167, %v2171
    %v2174 = vadd.f32 %v2154, %v2172
    %v2175 = vmul.f32 %v2161, %v2174
    %v2176 = vadd.f32 %v1967, %v2175
    %v2177 = vtanh.pop %v2176
    %v2178 = vsub.f32 %v1958, %v2177
    %v2179 = vmul.f32 %v2166, %v2178
    %v2180 = vadd.f32 %v2177, %v2179
    %s2181 = sadd.s32 %s35, 7
    %v2182 = vstv %s2181
    %vm2183 = vcmp.lt.s32.totalorder %v2182, %v345
    %v2184 = vsel %vm2183, 1, 0
    %2185 = vset.pattern.permute.xlu0 0
    %2186 = vperm.xlu0 %2185, %v2184
    %v2187 = vpop.permute.xlu0 %2186
    %vm2188 = vcmp.eq.s32.totalorder %v2187, 1
    %v2189 = vsel %vm2188, %v2180, %v1958
    %v2190 = vsel %vm2188, %v2180, -1.5
    %s2191 = scalar_lea.vmem %s8, 56
    %2192 = vst [vmem:[%s2191] sm:$0xff] %v2190
    %2193 = vst [vmem:[#allocation2] sm:$0xff] %v2189
  $region37: #{encoder_forward.1} parent=0 // pred_fallthru
    _
  %p2194 = scmp.ge.s32.totalorder %s35, %s36
  // Predicated region
  $region38: #{encoder_forward.1} parent=0 // pred_check
    %p2195 = pneg %p2194
  $region39: #{encoder_forward.1} parent=0 // pred_check_branch
    %2197 = sbr.rel (%p2195) target = $region41
  $region40: #{encoder_forward.1} parent=0 // pred_region
    %2198 = vst [vmem:[%s8] sm:$0xff] -1.5
    %2199 = vst [vmem:[%s8 + $0x8] sm:$0xff] -1.5
    %2200 = vst [vmem:[%s8 + $0x10] sm:$0xff] -1.5
    %2201 = vst [vmem:[%s8 + $0x18] sm:$0xff] -1.5
    %2202 = vst [vmem:[%s8 + $0x20] sm:$0xff] -1.5
    %2203 = vst [vmem:[%s8 + $0x28] sm:$0xff] -1.5
    %2204 = vst [vmem:[%s8 + $0x30] sm:$0xff] -1.5
    %2205 = vst [vmem:[%s8 + $0x38] sm:$0xff] -1.5
  $region41: #{encoder_forward.1} parent=0 // pred_fallthru
    _
  // Predicated region
  $region42: #{encoder_forward.1} parent=0 // pred_check
    %p2206 = pneg %p37
  $region43: #{encoder_forward.1} parent=0 // pred_check_branch
    %2208 = sbr.rel (%p2206) target = $region45
  $region44: #{encoder_forward.1} parent=0 // pred_region
    %v2209 = vld [vmem:[#allocation2] sm:$0xff]
    %2210 = vst [vmem:[%s9] sm:$0xff] %v2209
  $region45: #{encoder_forward.1} parent=0 // pred_fallthru
    _
  // Predicated region
  $region46: #{encoder_forward.1} parent=0 // pred_check
    _
  $region47: #{encoder_forward.1} parent=0 // pred_check_branch
    %2212 = sbr.rel (0) target = $region49
  $region48: #{encoder_forward.1} parent=0 // pred_region
    _
  $region49: #{encoder_forward.1} parent=0 // pred_fallthru
    _
  // Predicated region
  $region50: #{encoder_forward.1} parent=0 // pred_check
    _
  $region51: #{encoder_forward.1} parent=0 // pred_check_branch
    %2214 = sbr.rel (0) target = $region53
  $region52: #{encoder_forward.1} parent=0 // pred_region
    _
  $region53: #{encoder_forward.1} parent=0 // pred_fallthru
    _
  // Predicated region
  $region54: #{encoder_forward.1} parent=0 // pred_check
    _
  $region55: #{encoder_forward.1} parent=0 // pred_check_branch
    %2216 = sbr.rel (0) target = $region57
  $region56: #{encoder_forward.1} parent=0 // pred_region
    _
  $region57: #{encoder_forward.1} parent=0 // pred_fallthru
    _
  // Predicated region
  $region58: #{encoder_forward.1} parent=0 // pred_check
    _
  $region59: #{encoder_forward.1} parent=0 // pred_check_branch
    %2218 = sbr.rel (0) target = $region61
  $region60: #{encoder_forward.1} parent=0 // pred_region
    _
  $region61: #{encoder_forward.1} parent=0 // pred_fallthru
    _

</llo_original>
